<compile_context>
chip_gen: v5e
topology: v5e:2x2
jax: 0.10.0
libtpu: 0.0.40
codegen_flags: <defaults>
</compile_context>

<pallas_src>
import functools

import jax
import jax.numpy as jnp
from jax.experimental import pallas as pl
from jax.experimental.pallas import tpu as pltpu

EMBED_DIMS = 192  # self.embed_dims in the reference module


def _round_up(x, m):
    return ((x + m - 1) // m) * m


# ---------------------------------------------------------------------------
# Pallas kernel 1: fused linear (+ optional ReLU), bf16 MXU inputs, f32 accum.
#   used for: camera_encoder stand-ins (patch-embed / 1x1 conv as matmul),
#             lidar_encoder stand-in (1x1 conv over concat(range, cam feats)).
# ---------------------------------------------------------------------------
def _linear_kernel(x_ref, w_ref, b_ref, o_ref, *, relu):
    x = x_ref[...]
    w = w_ref[...]
    if w.dtype == jnp.bfloat16:
        x = x.astype(jnp.bfloat16)
    acc = jnp.dot(x, w, preferred_element_type=jnp.float32)
    acc = acc + b_ref[...]                      # bias / ReLU stay in f32 (v5e)
    if relu:
        acc = jnp.maximum(acc, 0.0)
    o_ref[...] = acc.astype(o_ref.dtype)


def pallas_linear(x, w, b, relu=False, tm=512):
    """o = relu?(x @ w + b).  x: (M, K) f32, w: (K, N) bf16/f32, b: (1, N) f32."""
    M, K = x.shape
    N = w.shape[1]
    tm = min(tm, _round_up(M, 128))             # big tiles, no K padding
    Mp = _round_up(M, tm)
    if Mp != M:
        x = jnp.pad(x, ((0, Mp - M), (0, 0)))
    out = pl.pallas_call(
        functools.partial(_linear_kernel, relu=relu),
        out_shape=jax.ShapeDtypeStruct((Mp, N), jnp.float32),
        grid=(Mp // tm,),
        in_specs=[
            pl.BlockSpec((tm, K), lambda i: (i, 0)),
            pl.BlockSpec((K, N), lambda i: (0, 0)),    # weights stay resident
            pl.BlockSpec((1, N), lambda i: (0, 0)),
        ],
        out_specs=pl.BlockSpec((tm, N), lambda i: (i, 0)),
        compiler_params=pltpu.CompilerParams(
            dimension_semantics=("parallel",),
            vmem_limit_bytes=32 * 1024 * 1024),
    )(x, w, b)
    return out[:M] if Mp != M else out


# ---------------------------------------------------------------------------
# Pallas kernel 2: fused position_encoder MLP
#   Linear(3, 768) -> ReLU -> Linear(768, 192) in a single kernel; the (tm, 768)
#   hidden activation never touches HBM.  Layer 1 (K=3) is a VPU outer product.
# ---------------------------------------------------------------------------
def _pos_mlp_kernel(x_ref, w1_ref, b1_ref, w2_ref, b2_ref, o_ref):
    x = x_ref[...]                                          # (tm, 3) f32
    h = (x[:, 0:1] * w1_ref[0:1, :]
         + x[:, 1:2] * w1_ref[1:2, :]
         + x[:, 2:3] * w1_ref[2:3, :]
         + b1_ref[...])
    h = jnp.maximum(h, 0.0)                                 # (tm, 768) in VMEM
    o = jnp.dot(h.astype(w2_ref.dtype), w2_ref[...],
                preferred_element_type=jnp.float32) + b2_ref[...]
    o_ref[...] = o.astype(o_ref.dtype)


def position_encoder(params, pts_flat):
    M = pts_flat.shape[0]
    Dh = params['pos_w1'].shape[1]
    Do = params['pos_w2'].shape[1]
    tm = min(512, _round_up(M, 128))
    Mp = _round_up(M, tm)
    x = pts_flat if Mp == M else jnp.pad(pts_flat, ((0, Mp - M), (0, 0)))
    out = pl.pallas_call(
        _pos_mlp_kernel,
        out_shape=jax.ShapeDtypeStruct((Mp, Do), jnp.float32),
        grid=(Mp // tm,),
        in_specs=[
            pl.BlockSpec((tm, 3), lambda i: (i, 0)),
            pl.BlockSpec((3, Dh), lambda i: (0, 0)),
            pl.BlockSpec((1, Dh), lambda i: (0, 0)),
            pl.BlockSpec((Dh, Do), lambda i: (0, 0)),
            pl.BlockSpec((1, Do), lambda i: (0, 0)),
        ],
        out_specs=pl.BlockSpec((tm, Do), lambda i: (i, 0)),
        compiler_params=pltpu.CompilerParams(
            dimension_semantics=("parallel",),
            vmem_limit_bytes=32 * 1024 * 1024),
    )(x, params['pos_w1'], params['pos_b1'], params['pos_w2'], params['pos_b2'])
    return out[:M] if Mp != M else out


# ---------------------------------------------------------------------------
# Pallas kernel 3: lidar -> image projection (the hot loop of `interact`)
#   Lane-dense layout: points are (3, TP) rows, output is (2, TP) rows.
#   Per-(batch, camera) scalars (4x4 matrix, resize/crop/flip) live in SMEM.
# ---------------------------------------------------------------------------
def _project_kernel(mat_ref, aug_ref, pts_ref, coor_ref, *, img_w):
    b = pl.program_id(0)
    c = pl.program_id(1)
    idx = b * pl.num_programs(1) + c

    px = pts_ref[0, 0:1, :]                                 # (1, TP) lane-dense
    py = pts_ref[0, 1:2, :]
    pz = pts_ref[0, 2:3, :]

    def mrow(r):  # row r of lidar2image applied to the homogeneous point
        return (mat_ref[idx, 4 * r + 0] * px + mat_ref[idx, 4 * r + 1] * py
                + mat_ref[idx, 4 * r + 2] * pz + mat_ref[idx, 4 * r + 3])

    cx, cy, cz = mrow(0), mrow(1), mrow(2)
    z = jnp.maximum(cz, 1e-5)
    x = cx / z
    y = cy / z

    resize = aug_ref[idx, 0]
    crop_x = aug_ref[idx, 1]
    crop_y = aug_ref[idx, 2]
    flip = aug_ref[idx, 3]
    x = x * resize - crop_x
    y = y * resize - crop_y
    x = jnp.where(flip > 0.5, img_w - x, x)
    # NOTE: rotation with h = 0.0 (hard-coded in the reference) is the identity,
    # so the -W/2 / +W/2 recentring cancels exactly and is omitted.
    coor_ref[0, 0, 0:1, :] = x
    coor_ref[0, 0, 1:2, :] = y


def project_points(pts_t, lidar2imgs, aug, img_w, tp):
    """pts_t: (B, 3, Pp); lidar2imgs: (B, N, 4, 4); aug: (B*N, 4) -> (B, N, 2, Pp)."""
    B, _, Pp = pts_t.shape
    N = lidar2imgs.shape[1]
    mat_flat = lidar2imgs.reshape(B * N, 16).astype(jnp.float32)
    return pl.pallas_call(
        functools.partial(_project_kernel, img_w=float(img_w)),
        out_shape=jax.ShapeDtypeStruct((B, N, 2, Pp), jnp.float32),
        grid=(B, N, Pp // tp),
        in_specs=[
            pl.BlockSpec(memory_space=pltpu.MemorySpace.SMEM),
            pl.BlockSpec(memory_space=pltpu.MemorySpace.SMEM),
            pl.BlockSpec((1, 3, tp), lambda b, c, t: (b, 0, t)),
        ],
        out_specs=pl.BlockSpec((1, 1, 2, tp), lambda b, c, t: (b, c, 0, t)),
        compiler_params=pltpu.CompilerParams(
            dimension_semantics=("parallel", "parallel", "parallel")),
    )(mat_flat, aug, pts_t)


# ---------------------------------------------------------------------------
# Pallas kernel 4: camera-feature gather + pos-embed scatter as one-hot matmuls.
#   gather:  onehot^T(P,hw) @ feat(hw,Cf)   -> cam_range, accumulated over cams
#   scatter: onehot(hw,P)   @ pos(P,Cf)     -> added in place to img_features
#   img_features is updated via input_output_aliases (no extra copy).
#   NOTE: duplicate (row,col) hits accumulate here; the PyTorch `x[idx] += v`
#   is undefined for duplicates, so this is an accepted semantic choice.
# ---------------------------------------------------------------------------
def _gather_scatter_kernel(feat_ref, lin_ref, msk_ref, pos_ref,
                           feat_out_ref, crf_ref):
    cam = pl.program_id(1)

    @pl.when(cam == 0)
    def _():
        crf_ref[...] = jnp.zeros_like(crf_ref)

    hw = feat_ref.shape[2]
    pp = lin_ref.shape[3]

    lin = lin_ref[0, 0]                                     # (1, Pp) int32
    msk = msk_ref[0, 0]                                     # (1, Pp) f32
    row_ids = jax.lax.broadcasted_iota(jnp.int32, (hw, pp), 0)
    onehot_t = jnp.where(row_ids == lin, msk, 0.0)          # (hw, Pp), masked

    feat = feat_ref[0, 0]                                   # (hw, Cf) f32
    pos = pos_ref[0]                                        # (Pp, Cf) f32

    # gather (exact in f32): contract the hw axis of both operands.
    gathered = jax.lax.dot_general(
        onehot_t, feat, dimension_numbers=(((0,), (0,)), ((), ())),
        preferred_element_type=jnp.float32)                 # (Pp, Cf)
    crf_ref[...] += gathered[None]

    # scatter-add of position embeddings into the camera feature map.
    upd = jnp.dot(onehot_t, pos, preferred_element_type=jnp.float32)  # (hw, Cf)
    feat_out_ref[...] = (feat + upd)[None, None]


def gather_scatter(feat, lin, msk, pos):
    """feat: (B,N,hw,Cf); lin/msk: (B,N,1,Pp); pos: (B,Pp,Cf)."""
    # TODO(synk): for production range images (P ~ 1e5) tile Pp / hw and keep a
    # VMEM accumulator for feat instead of a single (hw, Pp) one-hot block.
    B, N, hw, Cf = feat.shape
    Pp = lin.shape[-1]
    return pl.pallas_call(
        _gather_scatter_kernel,
        out_shape=(jax.ShapeDtypeStruct((B, N, hw, Cf), jnp.float32),
                   jax.ShapeDtypeStruct((B, Pp, Cf), jnp.float32)),
        grid=(B, N),
        in_specs=[
            pl.BlockSpec((1, 1, hw, Cf), lambda b, c: (b, c, 0, 0)),
            pl.BlockSpec((1, 1, 1, Pp), lambda b, c: (b, c, 0, 0)),
            pl.BlockSpec((1, 1, 1, Pp), lambda b, c: (b, c, 0, 0)),
            pl.BlockSpec((1, Pp, Cf), lambda b, c: (b, 0, 0)),
        ],
        out_specs=(
            pl.BlockSpec((1, 1, hw, Cf), lambda b, c: (b, c, 0, 0)),
            pl.BlockSpec((1, Pp, Cf), lambda b, c: (b, 0, 0)),   # cam accumulator
        ),
        input_output_aliases={0: 0},
        compiler_params=pltpu.CompilerParams(
            dimension_semantics=("parallel", "arbitrary")),
    )(feat, lin, msk, pos)


# ---------------------------------------------------------------------------
# Encoder stand-ins (channels-last internally)
# TODO(synk): camera_encoder / lidar_encoder are config-built mmdet3d backbones;
# they are replaced here by deterministic single-layer Pallas stand-ins
# (4x4 patch-embed and 1x1 conv projections) with mae_cfg = None.
# ---------------------------------------------------------------------------
def camera_forward1(params, img):
    # img: (B*N, C, H, W) NCHW -> 4x4 patchify -> linear(C*16 -> 192) -> NHWC
    BN, C, H, W = img.shape
    p = 4
    h, w = H // p, W // p
    patches = img.reshape(BN, C, h, p, w, p).transpose(0, 2, 4, 1, 3, 5)
    patches = patches.reshape(BN * h * w, C * p * p)
    feat = pallas_linear(patches, params['cam1_w'], params['cam1_b'])
    return feat.reshape(BN, h, w, EMBED_DIMS)               # channels-last


def camera_forward2(params, feat_cl):
    B, N, h, w, Cf = feat_cl.shape
    rows = feat_cl.reshape(B * N * h * w, Cf)
    out = pallas_linear(rows, params['cam2_w'], params['cam2_b'])
    return out.reshape(B, N, h, w, EMBED_DIMS)


def lidar_encoder_apply(params, range_cat_cl):
    B, Hr, Wr, Cin = range_cat_cl.shape
    rows = range_cat_cl.reshape(B * Hr * Wr, Cin)
    feat = pallas_linear(rows, params['lidar_w'], params['lidar_b'], relu=True)
    feat = feat.reshape(B, Hr, Wr, EMBED_DIMS).transpose(0, 3, 1, 2)  # boundary
    mask = jnp.zeros((B, Hr, Wr), jnp.bool_)
    return feat, mask


# ---------------------------------------------------------------------------
# interact(): dense / masked re-formulation of the reference per-camera loop.
# ---------------------------------------------------------------------------
def interact(params, img_features_cl, range_image, lidar2imgs, aug, img_shape,
             range_points):
    B, N, h, w, Cf = img_features_cl.shape
    Hr, Wr = range_image.shape[2], range_image.shape[3]
    P = Hr * Wr
    resize_dims = img_shape[::-1]                # img_shape = (W, H) -> (H, W)
    H_img, W_img = resize_dims

    pts = range_points.reshape(B, P, 3)
    TP = min(512, _round_up(P, 128))
    Pp = _round_up(P, TP)
    pts_t = pts.transpose(0, 2, 1)               # (B, 3, P) lane-dense points
    if Pp != P:
        pts_t = jnp.pad(pts_t, ((0, 0), (0, 0), (0, Pp - P)))

    coors = project_points(pts_t, lidar2imgs, aug, W_img, TP)  # (B, N, 2, Pp)
    x = coors[:, :, 0, :P]
    y = coors[:, :, 1, :P]

    bounds_valid = (y < H_img) & (x < W_img) & (y >= 0) & (x >= 0)   # (B,N,P)
    no_point = ~(jnp.sum(pts == 0, axis=-1) == 3)                    # (B,P)
    range_pos = range_image.reshape(B, P) > 0                        # (B,P)
    valid_coor_mask = bounds_valid & no_point[:, None, :]
    valid_feat_mask = valid_coor_mask & range_pos[:, None, :]

    # range_cam_coors: (row, col) where valid, else -1
    coor_swapped = jnp.stack([y, x], axis=-1)
    range_cam_coors = jnp.where(valid_coor_mask[..., None], coor_swapped, -1.0)
    range_cam_coors = range_cam_coors.reshape(B, N, Hr, Wr, 2)

    # integer coords at the feature-map resolution (trunc == floor for valid)
    row = jnp.clip(y * (float(h) / float(H_img)), 0.0, h - 1).astype(jnp.int32)
    col = jnp.clip(x * (float(w) / float(W_img)), 0.0, w - 1).astype(jnp.int32)
    lin = row * w + col                                              # (B,N,P)

    # position embeddings for all range points (fused MLP kernel)
    pos_embed = position_encoder(params, pts.reshape(B * P, 3)).reshape(B, P, Cf)

    pad_p = Pp - P
    lin_p = jnp.pad(lin, ((0, 0), (0, 0), (0, pad_p))).reshape(B, N, 1, Pp)
    msk_p = jnp.pad(valid_feat_mask.astype(jnp.float32),
                    ((0, 0), (0, 0), (0, pad_p))).reshape(B, N, 1, Pp)
    pos_p = jnp.pad(pos_embed, ((0, 0), (0, pad_p), (0, 0)))

    feat_flat = img_features_cl.reshape(B, N, h * w, Cf)
    feat_new, cam_range = gather_scatter(feat_flat, lin_p, msk_p, pos_p)

    cam_range = cam_range[:, :P].reshape(B, Hr, Wr, Cf)
    img_features_new = feat_new.reshape(B, N, h, w, Cf)

    range_image_cl = range_image.transpose(0, 2, 3, 1)               # (B,Hr,Wr,1)
    range_cat_cl = jnp.concatenate([range_image_cl, cam_range], axis=-1)
    return range_cat_cl, img_features_new, range_cam_coors


# ---------------------------------------------------------------------------
# JointEncoder.forward
# ---------------------------------------------------------------------------
@functools.partial(jax.jit, static_argnames=("img_shape",))
def _forward_impl(params, img, range_image, lidar2imgs, aug, range_points,
                  img_shape):
    B, N, C, H, W = img.shape
    img_flat = img.reshape(B * N, C, H, W)

    mid_cl = camera_forward1(params, img_flat)             # mae_cfg is None
    h, w = mid_cl.shape[1], mid_cl.shape[2]
    mid_cl = mid_cl.reshape(B, N, h, w, EMBED_DIMS)

    # lidar_encoder.create_masked_input stand-in (identity, no MAE masking)
    range_cat_cl, image_features_cl, range_cam_coors = interact(
        params, mid_cl, range_image, lidar2imgs, aug, img_shape, range_points)

    range_features, range_mask = lidar_encoder_apply(params, range_cat_cl)

    image_features_cl = camera_forward2(params, image_features_cl)  # mae_cfg None
    image_features = image_features_cl.transpose(0, 1, 4, 2, 3)     # boundary NCHW
    img_mask = 0
    return range_features, range_mask, image_features, img_mask, range_cam_coors


def joint_encoder_forward(params, img, range_image, img_metas, range_points):
    lidar2imgs = jnp.stack(
        [jnp.asarray(m['lidar2image'], jnp.float32) for m in img_metas], axis=0)
    aug_rows = []
    for m in img_metas:
        for a in m['imgs_aug']:
            aug_rows.append([float(a['resize']), float(a['crop'][0]),
                             float(a['crop'][1]), 1.0 if a['flip'] else 0.0])
    aug = jnp.asarray(aug_rows, jnp.float32)               # (B*N, 4)
    img_shape = tuple(int(v) for v in img_metas[0]['img_shape'])
    return _forward_impl(params, img, range_image, lidar2imgs, aug,
                         range_points, img_shape=img_shape)


def init_params(key):
    ks = jax.random.split(key, 5)

    def w(k, shape, dtype=jnp.bfloat16):
        return (jax.random.normal(k, shape, jnp.float32) * 0.02).astype(dtype)

    return {
        'cam1_w': w(ks[0], (3 * 16, EMBED_DIMS)),
        'cam1_b': jnp.zeros((1, EMBED_DIMS), jnp.float32),
        'cam2_w': w(ks[1], (EMBED_DIMS, EMBED_DIMS)),
        'cam2_b': jnp.zeros((1, EMBED_DIMS), jnp.float32),
        'lidar_w': w(ks[2], (1 + EMBED_DIMS, EMBED_DIMS)),
        'lidar_b': jnp.zeros((1, EMBED_DIMS), jnp.float32),
        # position_encoder: Linear(3, 4*192) -> ReLU -> Linear(4*192, 192)
        'pos_w1': w(ks[3], (3, EMBED_DIMS * 4), jnp.float32),
        'pos_b1': jnp.zeros((1, EMBED_DIMS * 4), jnp.float32),
        'pos_w2': w(ks[4], (EMBED_DIMS * 4, EMBED_DIMS)),
        'pos_b2': jnp.zeros((1, EMBED_DIMS), jnp.float32),
    }


if __name__ == "__main__":
    key = jax.random.PRNGKey(0)
    pkey, ikey, rkey, ppkey = jax.random.split(key, 4)
    params = init_params(pkey)

    B, N, C, H, W = 1, 2, 3, 32, 32
    Hr, Wr = 8, 16

    img = jax.random.normal(ikey, (B, N, C, H, W), jnp.float32)
    range_image = jax.random.uniform(
        rkey, (B, 1, Hr, Wr), jnp.float32, minval=-0.2, maxval=5.0)
    range_points = jax.random.uniform(
        ppkey, (B, Hr, Wr, 3), jnp.float32, minval=-10.0, maxval=10.0)
    # a few all-zero points to exercise the "no point" mask
    range_points = range_points.at[:, 0, :4, :].set(0.0)

    # simple pinhole-style lidar->image matrices
    f = 20.0
    l2i = []
    for cam in range(N):
        sign = 1.0 if cam == 0 else -1.0
        l2i.append([[f * sign, 0.0, W / 2.0, 0.0],
                    [0.0, f, H / 2.0, 0.0],
                    [0.0, 0.0, 1.0, 0.0],
                    [0.0, 0.0, 0.0, 1.0]])
    lidar2image = jnp.asarray(l2i, jnp.float32)            # (N, 4, 4)

    img_metas = [{
        'img_shape': (W, H),                               # (W, H) as in mmdet3d
        'lidar2image': lidar2image,
        'imgs_aug': [
            {'resize': 1.0, 'crop': (0.0, 0.0), 'flip': False},
            {'resize': 0.9, 'crop': (1.0, 2.0), 'flip': True},
        ][:N],
    } for _ in range(B)]

    outs = joint_encoder_forward(params, img, range_image, img_metas,
                                 range_points)
    range_features, range_mask, image_features, img_mask, range_cam_coors = outs
    jax.block_until_ready((range_features, range_mask, image_features,
                           range_cam_coors))
    assert range_features.shape == (B, EMBED_DIMS, Hr, Wr)
    assert image_features.shape == (B, N, EMBED_DIMS, H // 4, W // 4)
    assert range_cam_coors.shape == (B, N, Hr, Wr, 2)
    print("KERNEL_OK")
</pallas_src>

<mosaic_0001>
module attributes {stable_mosaic.version = 11 : i64} {
  func.func @_linear_kernel(%arg0: i32, %arg1: memref<128x48xf32, #tpu.memory_space<vmem>>, %arg2: memref<48x192xbf16, #tpu.memory_space<vmem>>, %arg3: memref<1x192xf32, #tpu.memory_space<vmem>>, %arg4: memref<128x192xf32, #tpu.memory_space<vmem>>) attributes {dimension_semantics = [#tpu.dimension_semantics<parallel>], iteration_bounds = array<i64: 1>, scalar_prefetch = 0 : i64, scratch_operands = 0 : i64, tpu.core_type = #tpu.core_type<tc>, window_params = [{transform_indices = @transform_0, window_bounds = array<i64: 128, 48>}, {pipeline_mode = #tpu.pipeline_mode<synchronous>, transform_indices = @transform_1, window_bounds = array<i64: 48, 192>}, {pipeline_mode = #tpu.pipeline_mode<synchronous>, transform_indices = @transform_2, window_bounds = array<i64: 1, 192>}, {transform_indices = @transform_3, window_bounds = array<i64: 128, 192>}]} {
    %c0 = arith.constant 0 : index
    %c0_0 = arith.constant 0 : index
    %0 = vector.load %arg1[%c0, %c0_0] : memref<128x48xf32, #tpu.memory_space<vmem>>, vector<128x48xf32>
    %c0_1 = arith.constant 0 : index
    %c0_2 = arith.constant 0 : index
    %1 = vector.load %arg2[%c0_1, %c0_2] : memref<48x192xbf16, #tpu.memory_space<vmem>>, vector<48x192xbf16>
    %2 = arith.truncf %0 : vector<128x48xf32> to vector<128x48xbf16>
    %cst = arith.constant dense<0.000000e+00> : vector<128x192xf32>
    %3 = tpu.matmul %2, %1, %cst {dimension_numbers = #tpu.dot_dimension_numbers<[1], [0], [0], [1], [0, 0, 1, 1], [], []>} : vector<128x48xbf16>, vector<48x192xbf16>, vector<128x192xf32> -> vector<128x192xf32>
    %c0_3 = arith.constant 0 : index
    %c0_4 = arith.constant 0 : index
    %4 = vector.load %arg3[%c0_3, %c0_4] : memref<1x192xf32, #tpu.memory_space<vmem>>, vector<1x192xf32>
    %5 = vector.broadcast %4 : vector<1x192xf32> to vector<128x192xf32>
    %6 = arith.addf %3, %5 : vector<128x192xf32>
    %c0_5 = arith.constant 0 : index
    %c0_6 = arith.constant 0 : index
    %7 = vector.load %arg4[%c0_5, %c0_6] : memref<128x192xf32, #tpu.memory_space<vmem>>, vector<128x192xf32>
    tpu.vector_store %arg4[%c0_5, %c0_6], %6 {strides = array<i32>} : memref<128x192xf32, #tpu.memory_space<vmem>>, vector<128x192xf32>,
    return
  }
  func.func @transform_0(%arg0: i32) -> (i32, i32) {
    %c0_i32 = arith.constant 0 : i32
    %c0_i32_0 = arith.constant 0 : i32
    return %arg0, %c0_i32 : i32, i32
  }
  func.func @transform_1(%arg0: i32) -> (i32, i32) {
    %c0_i32 = arith.constant 0 : i32
    %c0_i32_0 = arith.constant 0 : i32
    %c0_i32_1 = arith.constant 0 : i32
    return %c0_i32, %c0_i32_0 : i32, i32
  }
  func.func @transform_2(%arg0: i32) -> (i32, i32) {
    %c0_i32 = arith.constant 0 : i32
    %c0_i32_0 = arith.constant 0 : i32
    %c0_i32_1 = arith.constant 0 : i32
    return %c0_i32, %c0_i32_0 : i32, i32
  }
  func.func @transform_3(%arg0: i32) -> (i32, i32) {
    %c0_i32 = arith.constant 0 : i32
    %c0_i32_0 = arith.constant 0 : i32
    return %arg0, %c0_i32 : i32, i32
  }
}

module attributes {stable_mosaic.version = 11 : i64} {
  func.func @_project_kernel(%arg0: i32, %arg1: i32, %arg2: i32, %arg3: memref<2x16xf32, #tpu.memory_space<smem>>, %arg4: memref<2x4xf32, #tpu.memory_space<smem>>, %arg5: memref<1x3x128xf32, #tpu.memory_space<vmem>>, %arg6: memref<1x1x2x128xf32, #tpu.memory_space<vmem>>) attributes {dimension_semantics = [#tpu.dimension_semantics<parallel>, #tpu.dimension_semantics<parallel>, #tpu.dimension_semantics<parallel>], iteration_bounds = array<i64: 1, 2, 1>, scalar_prefetch = 0 : i64, scratch_operands = 0 : i64, tpu.core_type = #tpu.core_type<tc>, window_params = [{transform_indices = @transform_0, window_bounds = array<i64: 2, 16>}, {transform_indices = @transform_1, window_bounds = array<i64: 2, 4>}, {transform_indices = @transform_2, window_bounds = array<i64: 1, 3, 128>}, {transform_indices = @transform_3, window_bounds = array<i64: 1, 1, 2, 128>}]} {
    %c2_i32 = arith.constant 2 : i32
    %0 = arith.muli %arg0, %c2_i32 : i32
    %1 = arith.addi %0, %arg1 : i32
    %c0 = arith.constant 0 : index
    %c0_0 = arith.constant 0 : index
    %c0_1 = arith.constant 0 : index
    %2 = vector.load %arg5[%c0, %c0_0, %c0_1] : memref<1x3x128xf32, #tpu.memory_space<vmem>>, vector<1x1x128xf32>
    %3 = vector.shape_cast %2 : vector<1x1x128xf32> to vector<1x128xf32>
    %c0_2 = arith.constant 0 : index
    %c1 = arith.constant 1 : index
    %c0_3 = arith.constant 0 : index
    %4 = vector.load %arg5[%c0_2, %c1, %c0_3] : memref<1x3x128xf32, #tpu.memory_space<vmem>>, vector<1x1x128xf32>
    %5 = vector.shape_cast %4 : vector<1x1x128xf32> to vector<1x128xf32>
    %c0_4 = arith.constant 0 : index
    %c2 = arith.constant 2 : index
    %c0_5 = arith.constant 0 : index
    %6 = vector.load %arg5[%c0_4, %c2, %c0_5] : memref<1x3x128xf32, #tpu.memory_space<vmem>>, vector<1x1x128xf32>
    %7 = vector.shape_cast %6 : vector<1x1x128xf32> to vector<1x128xf32>
    %8 = arith.index_cast %1 : i32 to index
    %c0_6 = arith.constant 0 : index
    %9 = memref.load %arg3[%8, %c0_6] : memref<2x16xf32, #tpu.memory_space<smem>>
    %10 = vector.broadcast %9 : f32 to vector<1x128xf32>
    %11 = arith.mulf %10, %3 : vector<1x128xf32>
    %12 = arith.index_cast %1 : i32 to index
    %c1_7 = arith.constant 1 : index
    %13 = memref.load %arg3[%12, %c1_7] : memref<2x16xf32, #tpu.memory_space<smem>>
    %14 = vector.broadcast %13 : f32 to vector<1x128xf32>
    %15 = arith.mulf %14, %5 : vector<1x128xf32>
    %16 = arith.addf %11, %15 : vector<1x128xf32>
    %17 = arith.index_cast %1 : i32 to index
    %c2_8 = arith.constant 2 : index
    %18 = memref.load %arg3[%17, %c2_8] : memref<2x16xf32, #tpu.memory_space<smem>>
    %19 = vector.broadcast %18 : f32 to vector<1x128xf32>
    %20 = arith.mulf %19, %7 : vector<1x128xf32>
    %21 = arith.addf %16, %20 : vector<1x128xf32>
    %22 = arith.index_cast %1 : i32 to index
    %c3 = arith.constant 3 : index
    %23 = memref.load %arg3[%22, %c3] : memref<2x16xf32, #tpu.memory_space<smem>>
    %24 = vector.broadcast %23 : f32 to vector<1x128xf32>
    %25 = arith.addf %21, %24 : vector<1x128xf32>
    %26 = arith.index_cast %1 : i32 to index
    %c4 = arith.constant 4 : index
    %27 = memref.load %arg3[%26, %c4] : memref<2x16xf32, #tpu.memory_space<smem>>
    %28 = vector.broadcast %27 : f32 to vector<1x128xf32>
    %29 = arith.mulf %28, %3 : vector<1x128xf32>
    %30 = arith.index_cast %1 : i32 to index
    %c5 = arith.constant 5 : index
    %31 = memref.load %arg3[%30, %c5] : memref<2x16xf32, #tpu.memory_space<smem>>
    %32 = vector.broadcast %31 : f32 to vector<1x128xf32>
    %33 = arith.mulf %32, %5 : vector<1x128xf32>
    %34 = arith.addf %29, %33 : vector<1x128xf32>
    %35 = arith.index_cast %1 : i32 to index
    %c6 = arith.constant 6 : index
    %36 = memref.load %arg3[%35, %c6] : memref<2x16xf32, #tpu.memory_space<smem>>
    %37 = vector.broadcast %36 : f32 to vector<1x128xf32>
    %38 = arith.mulf %37, %7 : vector<1x128xf32>
    %39 = arith.addf %34, %38 : vector<1x128xf32>
    %40 = arith.index_cast %1 : i32 to index
    %c7 = arith.constant 7 : index
    %41 = memref.load %arg3[%40, %c7] : memref<2x16xf32, #tpu.memory_space<smem>>
    %42 = vector.broadcast %41 : f32 to vector<1x128xf32>
    %43 = arith.addf %39, %42 : vector<1x128xf32>
    %44 = arith.index_cast %1 : i32 to index
    %c8 = arith.constant 8 : index
    %45 = memref.load %arg3[%44, %c8] : memref<2x16xf32, #tpu.memory_space<smem>>
    %46 = vector.broadcast %45 : f32 to vector<1x128xf32>
    %47 = arith.mulf %46, %3 : vector<1x128xf32>
    %48 = arith.index_cast %1 : i32 to index
    %c9 = arith.constant 9 : index
    %49 = memref.load %arg3[%48, %c9] : memref<2x16xf32, #tpu.memory_space<smem>>
    %50 = vector.broadcast %49 : f32 to vector<1x128xf32>
    %51 = arith.mulf %50, %5 : vector<1x128xf32>
    %52 = arith.addf %47, %51 : vector<1x128xf32>
    %53 = arith.index_cast %1 : i32 to index
    %c10 = arith.constant 10 : index
    %54 = memref.load %arg3[%53, %c10] : memref<2x16xf32, #tpu.memory_space<smem>>
    %55 = vector.broadcast %54 : f32 to vector<1x128xf32>
    %56 = arith.mulf %55, %7 : vector<1x128xf32>
    %57 = arith.addf %52, %56 : vector<1x128xf32>
    %58 = arith.index_cast %1 : i32 to index
    %c11 = arith.constant 11 : index
    %59 = memref.load %arg3[%58, %c11] : memref<2x16xf32, #tpu.memory_space<smem>>
    %60 = vector.broadcast %59 : f32 to vector<1x128xf32>
    %61 = arith.addf %57, %60 : vector<1x128xf32>
    %cst = arith.constant 9.99999974E-6 : f32
    %62 = vector.broadcast %cst : f32 to vector<1x128xf32>
    %63 = arith.maximumf %61, %62 : vector<1x128xf32>
    %64 = arith.divf %25, %63 : vector<1x128xf32>
    %65 = arith.divf %43, %63 : vector<1x128xf32>
    %66 = arith.index_cast %1 : i32 to index
    %c0_9 = arith.constant 0 : index
    %67 = memref.load %arg4[%66, %c0_9] : memref<2x4xf32, #tpu.memory_space<smem>>
    %68 = arith.index_cast %1 : i32 to index
    %c1_10 = arith.constant 1 : index
    %69 = memref.load %arg4[%68, %c1_10] : memref<2x4xf32, #tpu.memory_space<smem>>
    %70 = arith.index_cast %1 : i32 to index
    %c2_11 = arith.constant 2 : index
    %71 = memref.load %arg4[%70, %c2_11] : memref<2x4xf32, #tpu.memory_space<smem>>
    %72 = arith.index_cast %1 : i32 to index
    %c3_12 = arith.constant 3 : index
    %73 = memref.load %arg4[%72, %c3_12] : memref<2x4xf32, #tpu.memory_space<smem>>
    %74 = vector.broadcast %67 : f32 to vector<1x128xf32>
    %75 = arith.mulf %64, %74 : vector<1x128xf32>
    %76 = vector.broadcast %69 : f32 to vector<1x128xf32>
    %77 = arith.subf %75, %76 : vector<1x128xf32>
    %78 = vector.broadcast %67 : f32 to vector<1x128xf32>
    %79 = arith.mulf %65, %78 : vector<1x128xf32>
    %80 = vector.broadcast %71 : f32 to vector<1x128xf32>
    %81 = arith.subf %79, %80 : vector<1x128xf32>
    %cst_13 = arith.constant 5.000000e-01 : f32
    %82 = arith.cmpf ogt, %73, %cst_13 : f32
    %cst_14 = arith.constant 3.200000e+01 : f32
    %83 = vector.broadcast %cst_14 : f32 to vector<1x128xf32>
    %84 = arith.subf %83, %77 : vector<1x128xf32>
    %85 = arith.select %82, %84, %77 : vector<1x128xf32>
    %c0_15 = arith.constant 0 : index
    %c0_16 = arith.constant 0 : index
    %c0_17 = arith.constant 0 : index
    %c0_18 = arith.constant 0 : index
    %86 = vector.load %arg6[%c0_15, %c0_16, %c0_17, %c0_18] : memref<1x1x2x128xf32, #tpu.memory_space<vmem>>, vector<1x1x1x128xf32>
    %87 = vector.shape_cast %86 : vector<1x1x1x128xf32> to vector<1x128xf32>
    %88 = vector.shape_cast %85 : vector<1x128xf32> to vector<1x1x1x128xf32>
    tpu.vector_store %arg6[%c0_15, %c0_16, %c0_17, %c0_18], %88 {strides = array<i32>} : memref<1x1x2x128xf32, #tpu.memory_space<vmem>>, vector<1x1x1x128xf32>,
    %c0_19 = arith.constant 0 : index
    %c0_20 = arith.constant 0 : index
    %c1_21 = arith.constant 1 : index
    %c0_22 = arith.constant 0 : index
    %89 = vector.load %arg6[%c0_19, %c0_20, %c1_21, %c0_22] : memref<1x1x2x128xf32, #tpu.memory_space<vmem>>, vector<1x1x1x128xf32>
    %90 = vector.shape_cast %89 : vector<1x1x1x128xf32> to vector<1x128xf32>
    %91 = vector.shape_cast %81 : vector<1x128xf32> to vector<1x1x1x128xf32>
    tpu.vector_store %arg6[%c0_19, %c0_20, %c1_21, %c0_22], %91 {strides = array<i32>} : memref<1x1x2x128xf32, #tpu.memory_space<vmem>>, vector<1x1x1x128xf32>,
    return
  }
  func.func @transform_0(%arg0: i32, %arg1: i32, %arg2: i32) -> (i32, i32) {
    %c0_i32 = arith.constant 0 : i32
    %c0_i32_0 = arith.constant 0 : i32
    %c0_i32_1 = arith.constant 0 : i32
    return %c0_i32, %c0_i32_0 : i32, i32
  }
  func.func @transform_1(%arg0: i32, %arg1: i32, %arg2: i32) -> (i32, i32) {
    %c0_i32 = arith.constant 0 : i32
    %c0_i32_0 = arith.constant 0 : i32
    %c0_i32_1 = arith.constant 0 : i32
    return %c0_i32, %c0_i32_0 : i32, i32
  }
  func.func @transform_2(%arg0: i32, %arg1: i32, %arg2: i32) -> (i32, i32, i32) {
    %c0_i32 = arith.constant 0 : i32
    %c0_i32_0 = arith.constant 0 : i32
    return %arg0, %c0_i32, %arg2 : i32, i32, i32
  }
  func.func @transform_3(%arg0: i32, %arg1: i32, %arg2: i32) -> (i32, i32, i32, i32) {
    %c0_i32 = arith.constant 0 : i32
    %c0_i32_0 = arith.constant 0 : i32
    return %arg0, %arg1, %c0_i32, %arg2 : i32, i32, i32, i32
  }
}

module attributes {stable_mosaic.version = 11 : i64} {
  func.func @_gather_scatter_kernel(%arg0: i32, %arg1: i32, %arg2: memref<1x1x64x192xf32, #tpu.memory_space<vmem>>, %arg3: memref<1x1x1x128xi32, #tpu.memory_space<vmem>>, %arg4: memref<1x1x1x128xf32, #tpu.memory_space<vmem>>, %arg5: memref<1x128x192xf32, #tpu.memory_space<vmem>>, %arg6: memref<1x1x64x192xf32, #tpu.memory_space<vmem>>, %arg7: memref<1x128x192xf32, #tpu.memory_space<vmem>>) attributes {dimension_semantics = [#tpu.dimension_semantics<parallel>, #tpu.dimension_semantics<arbitrary>], iteration_bounds = array<i64: 1, 2>, scalar_prefetch = 0 : i64, scratch_operands = 0 : i64, tpu.core_type = #tpu.core_type<tc>, window_params = [{transform_indices = @transform_0, window_bounds = array<i64: 1, 1, 64, 192>}, {transform_indices = @transform_1, window_bounds = array<i64: 1, 1, 1, 128>}, {transform_indices = @transform_2, window_bounds = array<i64: 1, 1, 1, 128>}, {transform_indices = @transform_3, window_bounds = array<i64: 1, 128, 192>}, {transform_indices = @transform_4, window_bounds = array<i64: 1, 1, 64, 192>}, {transform_indices = @transform_5, window_bounds = array<i64: 1, 128, 192>}]} {
    %c0_i32 = arith.constant 0 : i32
    %0 = arith.cmpi eq, %arg1, %c0_i32 : i32
    %1 = arith.extui %0 : i1 to i32
    %c0_i32_0 = arith.constant 0 : i32
    %2 = arith.cmpi ne, %1, %c0_i32_0 : i32
    scf.if %2 {
      %cst_27 = arith.constant 0.000000e+00 : f32
      %27 = vector.broadcast %cst_27 : f32 to vector<1x128x192xf32>
      %c0_28 = arith.constant 0 : index
      %c0_29 = arith.constant 0 : index
      %c0_30 = arith.constant 0 : index
      %28 = vector.load %arg7[%c0_28, %c0_29, %c0_30] : memref<1x128x192xf32, #tpu.memory_space<vmem>>, vector<1x128x192xf32>
      tpu.vector_store %arg7[%c0_28, %c0_29, %c0_30], %27 {strides = array<i32>} : memref<1x128x192xf32, #tpu.memory_space<vmem>>, vector<1x128x192xf32>,
    } else {
    }
    %c0 = arith.constant 0 : index
    %c0_1 = arith.constant 0 : index
    %c0_2 = arith.constant 0 : index
    %c0_3 = arith.constant 0 : index
    %3 = vector.load %arg3[%c0, %c0_1, %c0_2, %c0_3] : memref<1x1x1x128xi32, #tpu.memory_space<vmem>>, vector<1x1x1x128xi32>
    %4 = vector.shape_cast %3 : vector<1x1x1x128xi32> to vector<1x128xi32>
    %c0_4 = arith.constant 0 : index
    %c0_5 = arith.constant 0 : index
    %c0_6 = arith.constant 0 : index
    %c0_7 = arith.constant 0 : index
    %5 = vector.load %arg4[%c0_4, %c0_5, %c0_6, %c0_7] : memref<1x1x1x128xf32, #tpu.memory_space<vmem>>, vector<1x1x1x128xf32>
    %6 = vector.shape_cast %5 : vector<1x1x1x128xf32> to vector<1x128xf32>
    %7 = tpu.iota {dimensions = array<i32: 0>} : vector<64x128xi32>
    %8 = vector.broadcast %4 : vector<1x128xi32> to vector<64x128xi32>
    %9 = arith.cmpi eq, %7, %8 : vector<64x128xi32>
    %cst = arith.constant 0.000000e+00 : f32
    %10 = vector.shape_cast %6 : vector<1x128xf32> to vector<1x128xf32>
    %11 = vector.broadcast %10 : vector<1x128xf32> to vector<64x128xf32>
    %12 = vector.broadcast %cst : f32 to vector<64x128xf32>
    %13 = arith.select %9, %11, %12 : vector<64x128xi1>, vector<64x128xf32>
    %c0_8 = arith.constant 0 : index
    %c0_9 = arith.constant 0 : index
    %c0_10 = arith.constant 0 : index
    %c0_11 = arith.constant 0 : index
    %14 = vector.load %arg2[%c0_8, %c0_9, %c0_10, %c0_11] : memref<1x1x64x192xf32, #tpu.memory_space<vmem>>, vector<1x1x64x192xf32>
    %15 = vector.shape_cast %14 : vector<1x1x64x192xf32> to vector<64x192xf32>
    %c0_12 = arith.constant 0 : index
    %c0_13 = arith.constant 0 : index
    %c0_14 = arith.constant 0 : index
    %16 = vector.load %arg5[%c0_12, %c0_13, %c0_14] : memref<1x128x192xf32, #tpu.memory_space<vmem>>, vector<1x128x192xf32>
    %17 = vector.shape_cast %16 : vector<1x128x192xf32> to vector<128x192xf32>
    %cst_15 = arith.constant dense<0.000000e+00> : vector<128x192xf32>
    %18 = tpu.matmul %13, %15, %cst_15 {dimension_numbers = #tpu.dot_dimension_numbers<[0], [0], [1], [1], [0, 1, 1, 1], [], []>} : vector<64x128xf32>, vector<64x192xf32>, vector<128x192xf32> -> vector<128x192xf32>
    %c0_16 = arith.constant 0 : index
    %c0_17 = arith.constant 0 : index
    %c0_18 = arith.constant 0 : index
    %19 = vector.load %arg7[%c0_16, %c0_17, %c0_18] : memref<1x128x192xf32, #tpu.memory_space<vmem>>, vector<1x128x192xf32>
    %20 = vector.shape_cast %18 : vector<128x192xf32> to vector<1x128x192xf32>
    %21 = arith.addf %19, %20 : vector<1x128x192xf32>
    %c0_19 = arith.constant 0 : index
    %c0_20 = arith.constant 0 : index
    %c0_21 = arith.constant 0 : index
    %22 = vector.load %arg7[%c0_19, %c0_20, %c0_21] : memref<1x128x192xf32, #tpu.memory_space<vmem>>, vector<1x128x192xf32>
    tpu.vector_store %arg7[%c0_19, %c0_20, %c0_21], %21 {strides = array<i32>} : memref<1x128x192xf32, #tpu.memory_space<vmem>>, vector<1x128x192xf32>,
    %cst_22 = arith.constant dense<0.000000e+00> : vector<64x192xf32>
    %23 = tpu.matmul %13, %17, %cst_22 {dimension_numbers = #tpu.dot_dimension_numbers<[1], [0], [0], [1], [0, 0, 1, 1], [], []>} : vector<64x128xf32>, vector<128x192xf32>, vector<64x192xf32> -> vector<64x192xf32>
    %24 = arith.addf %15, %23 : vector<64x192xf32>
    %25 = vector.shape_cast %24 : vector<64x192xf32> to vector<1x1x64x192xf32>
    %c0_23 = arith.constant 0 : index
    %c0_24 = arith.constant 0 : index
    %c0_25 = arith.constant 0 : index
    %c0_26 = arith.constant 0 : index
    %26 = vector.load %arg6[%c0_23, %c0_24, %c0_25, %c0_26] : memref<1x1x64x192xf32, #tpu.memory_space<vmem>>, vector<1x1x64x192xf32>
    tpu.vector_store %arg6[%c0_23, %c0_24, %c0_25, %c0_26], %25 {strides = array<i32>} : memref<1x1x64x192xf32, #tpu.memory_space<vmem>>, vector<1x1x64x192xf32>,
    return
  }
  func.func @transform_0(%arg0: i32, %arg1: i32) -> (i32, i32, i32, i32) {
    %c0_i32 = arith.constant 0 : i32
    %c0_i32_0 = arith.constant 0 : i32
    %c0_i32_1 = arith.constant 0 : i32
    return %arg0, %arg1, %c0_i32, %c0_i32_0 : i32, i32, i32, i32
  }
  func.func @transform_1(%arg0: i32, %arg1: i32) -> (i32, i32, i32, i32) {
    %c0_i32 = arith.constant 0 : i32
    %c0_i32_0 = arith.constant 0 : i32
    %c0_i32_1 = arith.constant 0 : i32
    return %arg0, %arg1, %c0_i32, %c0_i32_0 : i32, i32, i32, i32
  }
  func.func @transform_2(%arg0: i32, %arg1: i32) -> (i32, i32, i32, i32) {
    %c0_i32 = arith.constant 0 : i32
    %c0_i32_0 = arith.constant 0 : i32
    %c0_i32_1 = arith.constant 0 : i32
    return %arg0, %arg1, %c0_i32, %c0_i32_0 : i32, i32, i32, i32
  }
  func.func @transform_3(%arg0: i32, %arg1: i32) -> (i32, i32, i32) {
    %c0_i32 = arith.constant 0 : i32
    %c0_i32_0 = arith.constant 0 : i32
    %c0_i32_1 = arith.constant 0 : i32
    return %arg0, %c0_i32, %c0_i32_0 : i32, i32, i32
  }
  func.func @transform_4(%arg0: i32, %arg1: i32) -> (i32, i32, i32, i32) {
    %c0_i32 = arith.constant 0 : i32
    %c0_i32_0 = arith.constant 0 : i32
    %c0_i32_1 = arith.constant 0 : i32
    return %arg0, %arg1, %c0_i32, %c0_i32_0 : i32, i32, i32, i32
  }
  func.func @transform_5(%arg0: i32, %arg1: i32) -> (i32, i32, i32) {
    %c0_i32 = arith.constant 0 : i32
    %c0_i32_0 = arith.constant 0 : i32
    %c0_i32_1 = arith.constant 0 : i32
    return %arg0, %c0_i32, %c0_i32_0 : i32, i32, i32
  }
}

module attributes {stable_mosaic.version = 11 : i64} {
  func.func @_pos_mlp_kernel(%arg0: i32, %arg1: memref<128x3xf32, #tpu.memory_space<vmem>>, %arg2: memref<3x768xf32, #tpu.memory_space<vmem>>, %arg3: memref<1x768xf32, #tpu.memory_space<vmem>>, %arg4: memref<768x192xbf16, #tpu.memory_space<vmem>>, %arg5: memref<1x192xf32, #tpu.memory_space<vmem>>, %arg6: memref<128x192xf32, #tpu.memory_space<vmem>>) attributes {dimension_semantics = [#tpu.dimension_semantics<parallel>], iteration_bounds = array<i64: 1>, scalar_prefetch = 0 : i64, scratch_operands = 0 : i64, tpu.core_type = #tpu.core_type<tc>, window_params = [{transform_indices = @transform_0, window_bounds = array<i64: 128, 3>}, {pipeline_mode = #tpu.pipeline_mode<synchronous>, transform_indices = @transform_1, window_bounds = array<i64: 3, 768>}, {pipeline_mode = #tpu.pipeline_mode<synchronous>, transform_indices = @transform_2, window_bounds = array<i64: 1, 768>}, {pipeline_mode = #tpu.pipeline_mode<synchronous>, transform_indices = @transform_3, window_bounds = array<i64: 768, 192>}, {pipeline_mode = #tpu.pipeline_mode<synchronous>, transform_indices = @transform_4, window_bounds = array<i64: 1, 192>}, {transform_indices = @transform_5, window_bounds = array<i64: 128, 192>}]} {
    %c0 = arith.constant 0 : index
    %c0_0 = arith.constant 0 : index
    %0 = vector.load %arg1[%c0, %c0_0] : memref<128x3xf32, #tpu.memory_space<vmem>>, vector<128x3xf32>
    %1 = vector.extract_strided_slice %0 {offsets = [0, 0], sizes = [128, 1], strides = [1, 1]} : vector<128x3xf32> to vector<128x1xf32>
    %c0_1 = arith.constant 0 : index
    %c0_2 = arith.constant 0 : index
    %2 = vector.load %arg2[%c0_1, %c0_2] : memref<3x768xf32, #tpu.memory_space<vmem>>, vector<1x768xf32>
    %3 = vector.broadcast %1 : vector<128x1xf32> to vector<128x768xf32>
    %4 = vector.broadcast %2 : vector<1x768xf32> to vector<128x768xf32>
    %5 = arith.mulf %3, %4 : vector<128x768xf32>
    %6 = vector.extract_strided_slice %0 {offsets = [0, 1], sizes = [128, 1], strides = [1, 1]} : vector<128x3xf32> to vector<128x1xf32>
    %c1 = arith.constant 1 : index
    %c0_3 = arith.constant 0 : index
    %7 = vector.load %arg2[%c1, %c0_3] : memref<3x768xf32, #tpu.memory_space<vmem>>, vector<1x768xf32>
    %8 = vector.broadcast %6 : vector<128x1xf32> to vector<128x768xf32>
    %9 = vector.broadcast %7 : vector<1x768xf32> to vector<128x768xf32>
    %10 = arith.mulf %8, %9 : vector<128x768xf32>
    %11 = arith.addf %5, %10 : vector<128x768xf32>
    %12 = vector.extract_strided_slice %0 {offsets = [0, 2], sizes = [128, 1], strides = [1, 1]} : vector<128x3xf32> to vector<128x1xf32>
    %c2 = arith.constant 2 : index
    %c0_4 = arith.constant 0 : index
    %13 = vector.load %arg2[%c2, %c0_4] : memref<3x768xf32, #tpu.memory_space<vmem>>, vector<1x768xf32>
    %14 = vector.broadcast %12 : vector<128x1xf32> to vector<128x768xf32>
    %15 = vector.broadcast %13 : vector<1x768xf32> to vector<128x768xf32>
    %16 = arith.mulf %14, %15 : vector<128x768xf32>
    %17 = arith.addf %11, %16 : vector<128x768xf32>
    %c0_5 = arith.constant 0 : index
    %c0_6 = arith.constant 0 : index
    %18 = vector.load %arg3[%c0_5, %c0_6] : memref<1x768xf32, #tpu.memory_space<vmem>>, vector<1x768xf32>
    %19 = vector.broadcast %18 : vector<1x768xf32> to vector<128x768xf32>
    %20 = arith.addf %17, %19 : vector<128x768xf32>
    %cst = arith.constant 0.000000e+00 : f32
    %21 = vector.broadcast %cst : f32 to vector<128x768xf32>
    %22 = arith.maximumf %20, %21 : vector<128x768xf32>
    %23 = arith.truncf %22 : vector<128x768xf32> to vector<128x768xbf16>
    %c0_7 = arith.constant 0 : index
    %c0_8 = arith.constant 0 : index
    %24 = vector.load %arg4[%c0_7, %c0_8] : memref<768x192xbf16, #tpu.memory_space<vmem>>, vector<768x192xbf16>
    %cst_9 = arith.constant dense<0.000000e+00> : vector<128x192xf32>
    %25 = tpu.matmul %23, %24, %cst_9 {dimension_numbers = #tpu.dot_dimension_numbers<[1], [0], [0], [1], [0, 0, 1, 1], [], []>} : vector<128x768xbf16>, vector<768x192xbf16>, vector<128x192xf32> -> vector<128x192xf32>
    %c0_10 = arith.constant 0 : index
    %c0_11 = arith.constant 0 : index
    %26 = vector.load %arg5[%c0_10, %c0_11] : memref<1x192xf32, #tpu.memory_space<vmem>>, vector<1x192xf32>
    %27 = vector.broadcast %26 : vector<1x192xf32> to vector<128x192xf32>
    %28 = arith.addf %25, %27 : vector<128x192xf32>
    %c0_12 = arith.constant 0 : index
    %c0_13 = arith.constant 0 : index
    %29 = vector.load %arg6[%c0_12, %c0_13] : memref<128x192xf32, #tpu.memory_space<vmem>>, vector<128x192xf32>
    tpu.vector_store %arg6[%c0_12, %c0_13], %28 {strides = array<i32>} : memref<128x192xf32, #tpu.memory_space<vmem>>, vector<128x192xf32>,
    return
  }
  func.func @transform_0(%arg0: i32) -> (i32, i32) {
    %c0_i32 = arith.constant 0 : i32
    %c0_i32_0 = arith.constant 0 : i32
    return %arg0, %c0_i32 : i32, i32
  }
  func.func @transform_1(%arg0: i32) -> (i32, i32) {
    %c0_i32 = arith.constant 0 : i32
    %c0_i32_0 = arith.constant 0 : i32
    %c0_i32_1 = arith.constant 0 : i32
    return %c0_i32, %c0_i32_0 : i32, i32
  }
  func.func @transform_2(%arg0: i32) -> (i32, i32) {
    %c0_i32 = arith.constant 0 : i32
    %c0_i32_0 = arith.constant 0 : i32
    %c0_i32_1 = arith.constant 0 : i32
    return %c0_i32, %c0_i32_0 : i32, i32
  }
  func.func @transform_3(%arg0: i32) -> (i32, i32) {
    %c0_i32 = arith.constant 0 : i32
    %c0_i32_0 = arith.constant 0 : i32
    %c0_i32_1 = arith.constant 0 : i32
    return %c0_i32, %c0_i32_0 : i32, i32
  }
  func.func @transform_4(%arg0: i32) -> (i32, i32) {
    %c0_i32 = arith.constant 0 : i32
    %c0_i32_0 = arith.constant 0 : i32
    %c0_i32_1 = arith.constant 0 : i32
    return %c0_i32, %c0_i32_0 : i32, i32
  }
  func.func @transform_5(%arg0: i32) -> (i32, i32) {
    %c0_i32 = arith.constant 0 : i32
    %c0_i32_0 = arith.constant 0 : i32
    return %arg0, %c0_i32 : i32, i32
  }
}

module attributes {stable_mosaic.version = 11 : i64} {
  func.func @_linear_kernel(%arg0: i32, %arg1: memref<128x193xf32, #tpu.memory_space<vmem>>, %arg2: memref<193x192xbf16, #tpu.memory_space<vmem>>, %arg3: memref<1x192xf32, #tpu.memory_space<vmem>>, %arg4: memref<128x192xf32, #tpu.memory_space<vmem>>) attributes {dimension_semantics = [#tpu.dimension_semantics<parallel>], iteration_bounds = array<i64: 1>, scalar_prefetch = 0 : i64, scratch_operands = 0 : i64, tpu.core_type = #tpu.core_type<tc>, window_params = [{transform_indices = @transform_0, window_bounds = array<i64: 128, 193>}, {pipeline_mode = #tpu.pipeline_mode<synchronous>, transform_indices = @transform_1, window_bounds = array<i64: 193, 192>}, {pipeline_mode = #tpu.pipeline_mode<synchronous>, transform_indices = @transform_2, window_bounds = array<i64: 1, 192>}, {transform_indices = @transform_3, window_bounds = array<i64: 128, 192>}]} {
    %c0 = arith.constant 0 : index
    %c0_0 = arith.constant 0 : index
    %0 = vector.load %arg1[%c0, %c0_0] : memref<128x193xf32, #tpu.memory_space<vmem>>, vector<128x193xf32>
    %c0_1 = arith.constant 0 : index
    %c0_2 = arith.constant 0 : index
    %1 = vector.load %arg2[%c0_1, %c0_2] : memref<193x192xbf16, #tpu.memory_space<vmem>>, vector<193x192xbf16>
    %2 = arith.truncf %0 : vector<128x193xf32> to vector<128x193xbf16>
    %cst = arith.constant dense<0.000000e+00> : vector<128x192xf32>
    %3 = tpu.matmul %2, %1, %cst {dimension_numbers = #tpu.dot_dimension_numbers<[1], [0], [0], [1], [0, 0, 1, 1], [], []>} : vector<128x193xbf16>, vector<193x192xbf16>, vector<128x192xf32> -> vector<128x192xf32>
    %c0_3 = arith.constant 0 : index
    %c0_4 = arith.constant 0 : index
    %4 = vector.load %arg3[%c0_3, %c0_4] : memref<1x192xf32, #tpu.memory_space<vmem>>, vector<1x192xf32>
    %5 = vector.broadcast %4 : vector<1x192xf32> to vector<128x192xf32>
    %6 = arith.addf %3, %5 : vector<128x192xf32>
    %cst_5 = arith.constant 0.000000e+00 : f32
    %7 = vector.broadcast %cst_5 : f32 to vector<128x192xf32>
    %8 = arith.maximumf %6, %7 : vector<128x192xf32>
    %c0_6 = arith.constant 0 : index
    %c0_7 = arith.constant 0 : index
    %9 = vector.load %arg4[%c0_6, %c0_7] : memref<128x192xf32, #tpu.memory_space<vmem>>, vector<128x192xf32>
    tpu.vector_store %arg4[%c0_6, %c0_7], %8 {strides = array<i32>} : memref<128x192xf32, #tpu.memory_space<vmem>>, vector<128x192xf32>,
    return
  }
  func.func @transform_0(%arg0: i32) -> (i32, i32) {
    %c0_i32 = arith.constant 0 : i32
    %c0_i32_0 = arith.constant 0 : i32
    return %arg0, %c0_i32 : i32, i32
  }
  func.func @transform_1(%arg0: i32) -> (i32, i32) {
    %c0_i32 = arith.constant 0 : i32
    %c0_i32_0 = arith.constant 0 : i32
    %c0_i32_1 = arith.constant 0 : i32
    return %c0_i32, %c0_i32_0 : i32, i32
  }
  func.func @transform_2(%arg0: i32) -> (i32, i32) {
    %c0_i32 = arith.constant 0 : i32
    %c0_i32_0 = arith.constant 0 : i32
    %c0_i32_1 = arith.constant 0 : i32
    return %c0_i32, %c0_i32_0 : i32, i32
  }
  func.func @transform_3(%arg0: i32) -> (i32, i32) {
    %c0_i32 = arith.constant 0 : i32
    %c0_i32_0 = arith.constant 0 : i32
    return %arg0, %c0_i32 : i32, i32
  }
}

module attributes {stable_mosaic.version = 11 : i64} {
  func.func @_linear_kernel(%arg0: i32, %arg1: memref<128x192xf32, #tpu.memory_space<vmem>>, %arg2: memref<192x192xbf16, #tpu.memory_space<vmem>>, %arg3: memref<1x192xf32, #tpu.memory_space<vmem>>, %arg4: memref<128x192xf32, #tpu.memory_space<vmem>>) attributes {dimension_semantics = [#tpu.dimension_semantics<parallel>], iteration_bounds = array<i64: 1>, scalar_prefetch = 0 : i64, scratch_operands = 0 : i64, tpu.core_type = #tpu.core_type<tc>, window_params = [{transform_indices = @transform_0, window_bounds = array<i64: 128, 192>}, {pipeline_mode = #tpu.pipeline_mode<synchronous>, transform_indices = @transform_1, window_bounds = array<i64: 192, 192>}, {pipeline_mode = #tpu.pipeline_mode<synchronous>, transform_indices = @transform_2, window_bounds = array<i64: 1, 192>}, {transform_indices = @transform_3, window_bounds = array<i64: 128, 192>}]} {
    %c0 = arith.constant 0 : index
    %c0_0 = arith.constant 0 : index
    %0 = vector.load %arg1[%c0, %c0_0] : memref<128x192xf32, #tpu.memory_space<vmem>>, vector<128x192xf32>
    %c0_1 = arith.constant 0 : index
    %c0_2 = arith.constant 0 : index
    %1 = vector.load %arg2[%c0_1, %c0_2] : memref<192x192xbf16, #tpu.memory_space<vmem>>, vector<192x192xbf16>
    %2 = arith.truncf %0 : vector<128x192xf32> to vector<128x192xbf16>
    %cst = arith.constant dense<0.000000e+00> : vector<128x192xf32>
    %3 = tpu.matmul %2, %1, %cst {dimension_numbers = #tpu.dot_dimension_numbers<[1], [0], [0], [1], [0, 0, 1, 1], [], []>} : vector<128x192xbf16>, vector<192x192xbf16>, vector<128x192xf32> -> vector<128x192xf32>
    %c0_3 = arith.constant 0 : index
    %c0_4 = arith.constant 0 : index
    %4 = vector.load %arg3[%c0_3, %c0_4] : memref<1x192xf32, #tpu.memory_space<vmem>>, vector<1x192xf32>
    %5 = vector.broadcast %4 : vector<1x192xf32> to vector<128x192xf32>
    %6 = arith.addf %3, %5 : vector<128x192xf32>
    %c0_5 = arith.constant 0 : index
    %c0_6 = arith.constant 0 : index
    %7 = vector.load %arg4[%c0_5, %c0_6] : memref<128x192xf32, #tpu.memory_space<vmem>>, vector<128x192xf32>
    tpu.vector_store %arg4[%c0_5, %c0_6], %6 {strides = array<i32>} : memref<128x192xf32, #tpu.memory_space<vmem>>, vector<128x192xf32>,
    return
  }
  func.func @transform_0(%arg0: i32) -> (i32, i32) {
    %c0_i32 = arith.constant 0 : i32
    %c0_i32_0 = arith.constant 0 : i32
    return %arg0, %c0_i32 : i32, i32
  }
  func.func @transform_1(%arg0: i32) -> (i32, i32) {
    %c0_i32 = arith.constant 0 : i32
    %c0_i32_0 = arith.constant 0 : i32
    %c0_i32_1 = arith.constant 0 : i32
    return %c0_i32, %c0_i32_0 : i32, i32
  }
  func.func @transform_2(%arg0: i32) -> (i32, i32) {
    %c0_i32 = arith.constant 0 : i32
    %c0_i32_0 = arith.constant 0 : i32
    %c0_i32_1 = arith.constant 0 : i32
    return %c0_i32, %c0_i32_0 : i32, i32
  }
  func.func @transform_3(%arg0: i32) -> (i32, i32) {
    %c0_i32 = arith.constant 0 : i32
    %c0_i32_0 = arith.constant 0 : i32
    return %arg0, %c0_i32 : i32, i32
  }
}

</mosaic_0001>

<llo_original>
// kernel: _forward_impl.7
$region0: #{_forward_impl.7}
  #allocation0 [shape = 'u32[]', space=smem, size = 0x4, offset = 0x4, fixed_abs, tag = 'smem constant byte address 0x4 - core index']
  #allocation1 [shape = 'u32[72,128]{1,0:T(1,128)}', space=vmem, size = 0x9000, scoped, tag = 'internal scratch']
  %s0 = inlined_call_operand.vmem [shape: f32[2,16], index: 0, kind: input, shape index: {}]
  %s1 = inlined_call_operand.vmem [shape: f32[2,4], index: 1, kind: input, shape index: {}]
  %s2 = inlined_call_operand.vmem [shape: f32[1,3,128], index: 2, kind: input, shape index: {}]
  %s3 = inlined_call_operand.vmem [shape: f32[1,2,2,128], index: 3, kind: output, shape index: {}]
  %s4 = sld [smem:[#allocation0]]
  $region53: #{_forward_impl.7} parent=0
    _
  %s6 = ssub.s32 1, %s4
  %s7 = scalar_select 0, %s6, %s4
  $region1: #{_forward_impl.7} parent=0
    #allocation2 [shape = 'u8[1024]{0}', space=smem, size = 0x400, scoped, tag = 'input window, operand 0, single buffered']
    #allocation3 [shape = 's32[2]{0}', space=sflag, size = 0x8, scoped, tag = 'scoped memory for _forward_impl.7']
    #allocation4 [shape = 'u8[1024]{0}', space=smem, size = 0x400, scoped, tag = 'input window, operand 1, single buffered']
    #allocation5 [shape = 's32[1]{0}', space=sflag, size = 0x4, scoped, tag = 'scoped memory for _forward_impl.7']
    %8 = vsyncpa [#allocation3], 0
    %9 = vsyncpa [#allocation5], 0
    loop: start=0, step=1, limit=4
    $region2: #{_forward_impl.7} parent=1 // loop_pre_header
      _
    $region3: #{_forward_impl.7} parent=1 // loop_header
      %s11 = sphi 0, %s15
      %p12 = scmp.ge.s32.totalorder %s11, 4
      %s18 = sphi 0, %s37
      %s19 = sphi 0, %s33
      %s20 = sphi 0, %s29
      %s21 = sphi 0, %s18
      %s22 = sphi 0, %s19
      %s23 = sphi 0, %s20
      %s24 = sphi 0, %s21
      %s25 = sphi 0, %s22
      %s26 = sphi 0, %s23
      %s38 = sphi 0, %s38
      %s40 = sphi 0, %s38
      %s41 = sphi 0, %s40
      %s55 = sphi 0, %s41
      %s59 = sphi 0, %s59
      %s61 = sphi 0, %s59
      %s62 = sphi 0, %s61
      %s76 = sphi 0, %s62
      %s84 = sphi 0, %s86
      %s87 = sphi 0, %s84
      %s88 = sphi 0, %s87
      %s104 = sphi 0, %s88
      %s114 = sphi 0, %s116
      %s117 = sphi 0, %s114
      %s118 = sphi 0, %s117
      %s134 = sphi 0, %s118
    $region4: #{_forward_impl.7} parent=1 // loop_header_branch
      %14 = sbr.rel (%p12) target = $region8
    $region5: #{_forward_impl.7} parent=1 // loop_body
      %s16 = ssub.s32 %s11, 1
      %s17 = ssub.s32 %s11, 2
      %s27 = sadd.s32 1, %s20
      %p28 = scmp.ge.s32.totalorder %s27, 1
      %s29 = scalar_select %p28, 0, %s27
      %s30 = sadd.s32 1, %s19
      %s31 = scalar_select %p28, %s30, %s19
      %p32 = scmp.ge.s32.totalorder %s31, 2
      %s33 = scalar_select %p32, 0, %s31
      %s34 = sadd.s32 1, %s18
      %s35 = scalar_select %p32, %s34, %s18
      %p36 = scmp.ge.s32.totalorder %s35, 1
      %s37 = scalar_select %p36, 0, %s35
      %s39 = sadd.s32 %s38, 1
      %p42 = scmp.eq.s32.totalorder %s11, 1
      %p43 = scmp.ne.s32.totalorder %s38, %s40
      %p44 = scmp.eq.s32.totalorder %s11, 0
      %p45 = por %p43, %p44
      %p46 = scmp.ne.s32.totalorder %s38, %s40
      %p47 = scmp.eq.s32.totalorder %s16, 1
      %p48 = por %p46, %p47
      %p49 = scmp.ne.s32.totalorder %s40, %s41
      %p50 = scmp.eq.s32.totalorder %s16, 0
      %p51 = por %p49, %p50
      %p52 = scmp.ne.s32.totalorder %s40, %s41
      %p53 = scmp.eq.s32.totalorder %s17, 1
      %p54 = por %p52, %p53
      %p56 = scmp.ne.s32.totalorder %s41, %s55
      %p57 = scmp.eq.s32.totalorder %s17, 0
      %p58 = por %p56, %p57
      %s60 = sadd.s32 %s59, 1
      %p63 = scmp.eq.s32.totalorder %s11, 1
      %p64 = scmp.ne.s32.totalorder %s59, %s61
      %p65 = scmp.eq.s32.totalorder %s11, 0
      %p66 = por %p64, %p65
      %p67 = scmp.ne.s32.totalorder %s59, %s61
      %p68 = scmp.eq.s32.totalorder %s16, 1
      %p69 = por %p67, %p68
      %p70 = scmp.ne.s32.totalorder %s61, %s62
      %p71 = scmp.eq.s32.totalorder %s16, 0
      %p72 = por %p70, %p71
      %p73 = scmp.ne.s32.totalorder %s61, %s62
      %p74 = scmp.eq.s32.totalorder %s17, 1
      %p75 = por %p73, %p74
      %p77 = scmp.ne.s32.totalorder %s62, %s76
      %p78 = scmp.eq.s32.totalorder %s17, 0
      %p79 = por %p77, %p78
      %s80 = ssub.s32 %s18, %s37
      %s81 = ssub.s32 %s20, %s29
      %s82 = sor.u32 %s80, %s81
      %p83 = scmp.eq.s32.totalorder %s82, 0
      %s85 = sadd.s32 %s84, 1
      %s86 = scalar_select %p83, %s84, %s85
      %p89 = pneg %p83
      %p90 = scmp.eq.s32.totalorder %s11, 1
      %p91 = por %p89, %p90
      %p92 = scmp.ne.s32.totalorder %s84, %s87
      %p93 = scmp.eq.s32.totalorder %s11, 0
      %p94 = por %p92, %p93
      %p95 = scmp.ne.s32.totalorder %s84, %s87
      %p96 = scmp.eq.s32.totalorder %s16, 1
      %p97 = por %p95, %p96
      %p98 = scmp.ne.s32.totalorder %s87, %s88
      %p99 = scmp.eq.s32.totalorder %s16, 0
      %p100 = por %p98, %p99
      %p101 = scmp.ne.s32.totalorder %s87, %s88
      %p102 = scmp.eq.s32.totalorder %s17, 1
      %p103 = por %p101, %p102
      %p105 = scmp.ne.s32.totalorder %s88, %s104
      %p106 = scmp.eq.s32.totalorder %s17, 0
      %p107 = por %p105, %p106
      %s108 = ssub.s32 %s18, %s37
      %s109 = ssub.s32 %s19, %s33
      %s110 = sor.u32 %s108, %s109
      %s111 = ssub.s32 %s20, %s29
      %s112 = sor.u32 %s110, %s111
      %p113 = scmp.eq.s32.totalorder %s112, 0
      %s115 = sadd.s32 %s114, 1
      %s116 = scalar_select %p113, %s114, %s115
      %p119 = pneg %p113
      %p120 = scmp.eq.s32.totalorder %s11, 1
      %p121 = por %p119, %p120
      %p122 = scmp.ne.s32.totalorder %s114, %s117
      %p123 = scmp.eq.s32.totalorder %s11, 0
      %p124 = por %p122, %p123
      %p125 = scmp.ne.s32.totalorder %s114, %s117
      %p126 = scmp.eq.s32.totalorder %s16, 1
      %p127 = por %p125, %p126
      %p128 = scmp.ne.s32.totalorder %s117, %s118
      %p129 = scmp.eq.s32.totalorder %s16, 0
      %p130 = por %p128, %p129
      %p131 = scmp.ne.s32.totalorder %s117, %s118
      %p132 = scmp.eq.s32.totalorder %s17, 1
      %p133 = por %p131, %p132
      %p135 = scmp.ne.s32.totalorder %s118, %s134
      %p136 = scmp.eq.s32.totalorder %s17, 0
      %p137 = por %p135, %p136
      %p138 = scmp.le.s32.totalorder 1, %s11
      %p139 = scmp.lt.s32.totalorder %s11, 3
      %p140 = pnand %p138, %p139
      %p141 = pneg %p140
      // Predicated region
      $region9: #{_forward_impl.7} parent=5 // pred_check
        _
      $region10: #{_forward_impl.7} parent=5 // pred_check_branch
        %143 = sbr.rel (%p140) target = $region12
      $region11: #{_forward_impl.7} parent=5 // pred_region
        %s144 = ssub.s32 %s11, 1
        // Predicated region
        $region13: #{_forward_impl.7} parent=11 // pred_check
          %p145 = pneg %p51
        $region14: #{_forward_impl.7} parent=11 // pred_check_branch
          %147 = sbr.rel (%p145) target = $region16
        $region15: #{_forward_impl.7} parent=11 // pred_region
          %149 = vsyncadd [#allocation3], 0
          %s151 = sshll.u32 %s0, 4
          %s152 = int_to_ptr.vmem [resolvable:$true] %s151
          %154 = dma.vmem_to_smem %s152, 32, [#allocation2], [#allocation3]
        $region16: #{_forward_impl.7} parent=11 // pred_fallthru
          _
        // Predicated region
        $region17: #{_forward_impl.7} parent=11 // pred_check
          %p155 = pneg %p72
        $region18: #{_forward_impl.7} parent=11 // pred_check_branch
          %157 = sbr.rel (%p155) target = $region20
        $region19: #{_forward_impl.7} parent=11 // pred_region
          %159 = vsyncadd [#allocation5], 0
          %s161 = sshll.u32 %s1, 4
          %s162 = int_to_ptr.vmem [resolvable:$true] %s161
          %164 = dma.vmem_to_smem %s162, 32, [#allocation4], [#allocation5]
        $region20: #{_forward_impl.7} parent=11 // pred_fallthru
          _
        // Predicated region
        $region21: #{_forward_impl.7} parent=11 // pred_check
          %p165 = pneg %p100
        $region22: #{_forward_impl.7} parent=11 // pred_check_branch
          %167 = sbr.rel (%p165) target = $region24
        $region23: #{_forward_impl.7} parent=11 // pred_region
          %p168 = scmp.lt.s32.totalorder %s21, 0
          %s169 = scalar_select %p168, %s21, 0
          %p170 = scmp.lt.s32.totalorder %s23, 0
          %s171 = scalar_select %p170, %s23, 0
          %s172 = sadd.s32 %s171, %s169
          %s173 = smul.addr %s172, 4
          %s174 = scalar_lea.vmem %s2, %s173
        $region24: #{_forward_impl.7} parent=11 // pred_fallthru
          _
      $region12: #{_forward_impl.7} parent=5 // pred_fallthru
        _
      %p175 = scmp.lt.s32.totalorder %s11, 2
      // Predicated region
      $region25: #{_forward_impl.7} parent=5 // pred_check
        %p176 = pneg %p175
      $region26: #{_forward_impl.7} parent=5 // pred_check_branch
        %178 = sbr.rel (%p176) target = $region28
      $region27: #{_forward_impl.7} parent=5 // pred_region
        _
      $region28: #{_forward_impl.7} parent=5 // pred_fallthru
        _
      %p179 = scmp.le.s32.totalorder 1, %s11
      %p180 = scmp.lt.s32.totalorder %s11, 3
      %p181 = pnand %p179, %p180
      %p182 = pneg %p181
      // Predicated region
      $region29: #{_forward_impl.7} parent=5 // pred_check
        _
      $region30: #{_forward_impl.7} parent=5 // pred_check_branch
        %184 = sbr.rel (%p181) target = $region32
      $region31: #{_forward_impl.7} parent=5 // pred_region
        %s185 = ssub.s32 %s11, 1
        // Predicated region
        $region33: #{_forward_impl.7} parent=31 // pred_check
          %p186 = pneg %p51
        $region34: #{_forward_impl.7} parent=31 // pred_check_branch
          %188 = sbr.rel (%p186) target = $region36
        $region35: #{_forward_impl.7} parent=31 // pred_region
          %190 = dma.done [#allocation3], 32
        $region36: #{_forward_impl.7} parent=31 // pred_fallthru
          _
        // Predicated region
        $region37: #{_forward_impl.7} parent=31 // pred_check
          %p191 = pneg %p72
        $region38: #{_forward_impl.7} parent=31 // pred_check_branch
          %193 = sbr.rel (%p191) target = $region40
        $region39: #{_forward_impl.7} parent=31 // pred_region
          %195 = dma.done [#allocation5], 32
        $region40: #{_forward_impl.7} parent=31 // pred_fallthru
          _
        %196 = sfence
        %p197 = pneg %p51
        %p198 = pneg %p48
        %p199 = pneg %p72
        %p200 = pneg %p69
        %p201 = scmp.lt.s32.totalorder %s21, 0
        %s202 = scalar_select %p201, %s21, 0
        %p203 = scmp.lt.s32.totalorder %s23, 0
        %s204 = scalar_select %p203, %s23, 0
        %s205 = sadd.s32 %s204, %s202
        %s206 = smul.addr %s205, 4
        %s207 = scalar_lea.vmem %s2, %s206
        %p208 = pneg %p100
        %p209 = pneg %p97
        %p210 = pneg %p130
        %p211 = pneg %p127
        %p212 = scmp.lt.s32.totalorder %s21, 0
        %s213 = scalar_select %p212, %s21, 0
        %p214 = scmp.lt.s32.totalorder %s22, 1
        %s215 = scalar_select %p214, %s22, 1
        %p216 = scmp.lt.s32.totalorder %s23, 0
        %s217 = scalar_select %p216, %s23, 0
        %s218 = sadd.s32 %s217, %s215
        %s219 = smul.addr %s213, 2
        %s220 = sadd.s32 %s218, %s219
        %s221 = smul.addr %s220, 2
        %s222 = scalar_lea.vmem %s3, %s221
        %p223 = scmp.lt.s32.totalorder %s21, 0
        %s224 = scalar_select %p223, %s21, 0
        %p225 = scmp.lt.s32.totalorder %s23, 0
        %s226 = scalar_select %p225, %s23, 0
        %s227 = sadd.s32 %s226, %s224
        %s228 = smul.addr %s227, 4
        %s229 = scalar_lea.vmem %s2, %s228
        %p230 = scmp.lt.s32.totalorder %s21, 0
        %s231 = scalar_select %p230, %s21, 0
        %p232 = scmp.lt.s32.totalorder %s22, 1
        %s233 = scalar_select %p232, %s22, 1
        %p234 = scmp.lt.s32.totalorder %s23, 0
        %s235 = scalar_select %p234, %s23, 0
        %s236 = sadd.s32 %s235, %s233
        %s237 = smul.addr %s231, 2
        %s238 = sadd.s32 %s236, %s237
        %s239 = smul.addr %s238, 2
        %s240 = scalar_lea.vmem %s3, %s239
        %s241 = smul.u32 %s21, 2
        %s242 = sadd.s32 %s241, %s22
        %v243 = vld [vmem:[%s229] sm:$0x1]
        %v244 = vld [vmem:[%s229 + $0x1] sm:$0x1]
        %v245 = vld [vmem:[%s229 + $0x2] sm:$0x1]
        %s246 = smul.u32 %s242, 128
        %s247 = sld [smem:[#allocation2 + %s246]]
        %v248 = vstv %s247
        %v249 = vmul.f32 %v248, %v243
        %s250 = sadd.s32 %s246, 1
        %s251 = sld [smem:[#allocation2 + %s250]]
        %v252 = vstv %s251
        %v253 = vmul.f32 %v252, %v244
        %v254 = vadd.f32 %v249, %v253
        %s255 = sadd.s32 %s246, 2
        %s256 = sld [smem:[#allocation2 + %s255]]
        %v257 = vstv %s256
        %v258 = vmul.f32 %v257, %v245
        %v259 = vadd.f32 %v254, %v258
        %s260 = sadd.s32 %s246, 3
        %s261 = sld [smem:[#allocation2 + %s260]]
        %v262 = vstv %s261
        %v263 = vadd.f32 %v259, %v262
        %s264 = sadd.s32 %s246, 4
        %s265 = sld [smem:[#allocation2 + %s264]]
        %v266 = vstv %s265
        %v267 = vmul.f32 %v266, %v243
        %s268 = sadd.s32 %s246, 5
        %s269 = sld [smem:[#allocation2 + %s268]]
        %v270 = vstv %s269
        %v271 = vmul.f32 %v270, %v244
        %v272 = vadd.f32 %v267, %v271
        %s273 = sadd.s32 %s246, 6
        %s274 = sld [smem:[#allocation2 + %s273]]
        %v275 = vstv %s274
        %v276 = vmul.f32 %v275, %v245
        %v277 = vadd.f32 %v272, %v276
        %s278 = sadd.s32 %s246, 7
        %s279 = sld [smem:[#allocation2 + %s278]]
        %v280 = vstv %s279
        %v281 = vadd.f32 %v277, %v280
        %s282 = sadd.s32 %s246, 8
        %s283 = sld [smem:[#allocation2 + %s282]]
        %v284 = vstv %s283
        %v285 = vmul.f32 %v284, %v243
        %s286 = sadd.s32 %s246, 9
        %s287 = sld [smem:[#allocation2 + %s286]]
        %v288 = vstv %s287
        %v289 = vmul.f32 %v288, %v244
        %v290 = vadd.f32 %v285, %v289
        %s291 = sadd.s32 %s246, 10
        %s292 = sld [smem:[#allocation2 + %s291]]
        %v293 = vstv %s292
        %v294 = vmul.f32 %v293, %v245
        %v295 = vadd.f32 %v290, %v294
        %s296 = sadd.s32 %s246, 11
        %s297 = sld [smem:[#allocation2 + %s296]]
        %v298 = vstv %s297
        %v299 = vadd.f32 %v295, %v298
        %v300 = vmax.f32 %v299, 1e-05
        %v301 = vrcp.pop %v300
        %v302 = vmul.f32 %v300, %v301
        %v303 = vsub.f32 1.0, %v302
        %v304 = vmul.f32 %v301, %v303
        %v305 = vadd.f32 %v301, %v304
        %vm306 = vweird.f32 %v300
        %vm307 = vweird.f32 %v301
        %vm308 = vmor %vm306, %vm307
        %v309 = vsel %vm308, %v301, %v305
        %v310 = vand.u32 2147483647, %v300
        %vm311 = vcmp.eq.f32.partialorder %v310, 8.507059e+37
        %v312 = vand.u32 %v300, 2147483648
        %v313 = vor.u32 1.1754944e-38, %v312
        %v314 = vsel %vm311, %v313, %v309
        %v315 = vmul.f32 %v263, %v314
        %v316 = vmul.f32 %v281, %v314
        %s317 = sld [smem:[#allocation4 + %s246]]
        %s318 = sld [smem:[#allocation4 + %s250]]
        %s319 = sld [smem:[#allocation4 + %s255]]
        %s320 = sld [smem:[#allocation4 + %s260]]
        %v321 = vstv %s317
        %v322 = vmul.f32 %v315, %v321
        %v323 = vstv %s318
        %v324 = vsub.f32 %v322, %v323
        %v325 = vmul.f32 %v316, %v321
        %v326 = vstv %s319
        %v327 = vsub.f32 %v325, %v326
        %p328 = scmp.gt.f32.partialorder %s320, 0.5
        %v329 = vsub.f32 32.0, %v324
        %s330 = scalar_select %p328, 1, 0
        %v331 = vstv %s330
        %vm332 = vcmp.eq.s32.totalorder %v331, 1
        %v333 = vsel %vm332, %v329, %v324
        %334 = vst [vmem:[%s240] sm:$0x1] %v333
        %335 = vst [vmem:[%s240 + $0x1] sm:$0x1] %v327
        %p336 = scmp.lt.s32.totalorder %s21, 0
        %s337 = scalar_select %p336, %s21, 0
        %p338 = scmp.lt.s32.totalorder %s22, 1
        %s339 = scalar_select %p338, %s22, 1
        %p340 = scmp.lt.s32.totalorder %s23, 0
        %s341 = scalar_select %p340, %s23, 0
        %s342 = sadd.s32 %s341, %s339
        %s343 = smul.addr %s337, 2
        %s344 = sadd.s32 %s342, %s343
        %s345 = smul.addr %s344, 2
        %s346 = scalar_lea.vmem %s3, %s345
        // Predicated region
        $region41: #{_forward_impl.7} parent=31 // pred_check
          %p347 = pneg %p127
        $region42: #{_forward_impl.7} parent=31 // pred_check_branch
          %349 = sbr.rel (%p347) target = $region44
        $region43: #{_forward_impl.7} parent=31 // pred_region
          _
        $region44: #{_forward_impl.7} parent=31 // pred_fallthru
          _
      $region32: #{_forward_impl.7} parent=5 // pred_fallthru
        _
      %p350 = scmp.le.s32.totalorder 2, %s11
      // Predicated region
      $region45: #{_forward_impl.7} parent=5 // pred_check
        %p351 = pneg %p350
      $region46: #{_forward_impl.7} parent=5 // pred_check_branch
        %353 = sbr.rel (%p351) target = $region48
      $region47: #{_forward_impl.7} parent=5 // pred_region
        %s354 = ssub.s32 %s11, 2
        // Predicated region
        $region49: #{_forward_impl.7} parent=47 // pred_check
          %p355 = pneg %p133
        $region50: #{_forward_impl.7} parent=47 // pred_check_branch
          %357 = sbr.rel (%p355) target = $region52
        $region51: #{_forward_impl.7} parent=47 // pred_region
          %p358 = scmp.lt.s32.totalorder %s24, 0
          %s359 = scalar_select %p358, %s24, 0
          %p360 = scmp.lt.s32.totalorder %s25, 1
          %s361 = scalar_select %p360, %s25, 1
          %p362 = scmp.lt.s32.totalorder %s26, 0
          %s363 = scalar_select %p362, %s26, 0
          %s364 = sadd.s32 %s363, %s361
          %s365 = smul.addr %s359, 2
          %s366 = sadd.s32 %s364, %s365
          %s367 = smul.addr %s366, 2
          %s368 = scalar_lea.vmem %s3, %s367
        $region52: #{_forward_impl.7} parent=47 // pred_fallthru
          _
      $region48: #{_forward_impl.7} parent=5 // pred_fallthru
        _
    $region6: #{_forward_impl.7} parent=1 // loop_footer
      %s15 = sadd.s32 1, %s11
    $region7: #{_forward_impl.7} parent=1 // loop_footer_branch
      %10 = sbr.rel target = $region3
    $region8: #{_forward_impl.7} parent=1 // loop_exit
      _
    %369 = vsyncpa [#allocation3], 1
    %s370 = scalar_lea.sflag [#allocation3], 1
    %371 = vsyncpa %s370, 1
    %372 = vsyncpa [#allocation5], 1

// kernel: _forward_impl.6
$region0: #{_forward_impl.6}
  #allocation0 [shape = 'u32[]', space=smem, size = 0x4, offset = 0x4, fixed_abs, tag = 'smem constant byte address 0x4 - core index']
  #allocation1 [shape = 'u32[72,128]{1,0:T(1,128)}', space=vmem, size = 0x9000, scoped, tag = 'internal scratch']
  %s0 = inlined_call_operand.vmem [shape: f32[128,48], index: 0, kind: input, shape index: {}]
  %s1 = inlined_call_operand.vmem [shape: bf16[48,192], index: 1, kind: input, shape index: {}]
  %s2 = inlined_call_operand.vmem [shape: f32[1,192], index: 2, kind: input, shape index: {}]
  %s3 = inlined_call_operand.vmem [shape: f32[128,192], index: 3, kind: output, shape index: {}]
  %s4 = sld [smem:[#allocation0]]
  $region22: #{_forward_impl.6} parent=0
    _
  %s6 = ssub.s32 1, %s4
  %s7 = scalar_select 0, %s6, %s4
  // Predicated region
  $region2: #{_forward_impl.6} parent=0 // pred_check
    _
  $region3: #{_forward_impl.6} parent=0 // pred_check_branch
    %9 = sbr.rel (0) target = $region5
  $region4: #{_forward_impl.6} parent=0 // pred_region
    _
  $region5: #{_forward_impl.6} parent=0 // pred_fallthru
    _
  // Predicated region
  $region6: #{_forward_impl.6} parent=0 // pred_check
    _
  $region7: #{_forward_impl.6} parent=0 // pred_check_branch
    %11 = sbr.rel (0) target = $region9
  $region8: #{_forward_impl.6} parent=0 // pred_region
    _
  $region9: #{_forward_impl.6} parent=0 // pred_fallthru
    _
  // Predicated region
  $region10: #{_forward_impl.6} parent=0 // pred_check
    _
  $region11: #{_forward_impl.6} parent=0 // pred_check_branch
    %13 = sbr.rel (0) target = $region13
  $region12: #{_forward_impl.6} parent=0 // pred_region
    _
  $region13: #{_forward_impl.6} parent=0 // pred_fallthru
    _
  %v15 = vld [vmem:[%s0] sm:$0xff]
  %v16 = vld [vmem:[%s0 + $0x8] sm:$0xff]
  %v17 = vld [vmem:[%s0 + $0x10] sm:$0xff]
  %v18 = vld [vmem:[%s0 + $0x18] sm:$0xff]
  %v19 = vld [vmem:[%s0 + $0x20] sm:$0xff]
  %v20 = vld [vmem:[%s0 + $0x28] sm:$0xff]
  %v21 = vld [vmem:[%s0 + $0x30] sm:$0xff]
  %v22 = vld [vmem:[%s0 + $0x38] sm:$0xff]
  %v23 = vld [vmem:[%s0 + $0x40] sm:$0xff]
  %v24 = vld [vmem:[%s0 + $0x48] sm:$0xff]
  %v25 = vld [vmem:[%s0 + $0x50] sm:$0xff]
  %v26 = vld [vmem:[%s0 + $0x58] sm:$0xff]
  %v27 = vld [vmem:[%s0 + $0x60] sm:$0xff]
  %v28 = vld [vmem:[%s0 + $0x68] sm:$0xff]
  %v29 = vld [vmem:[%s0 + $0x70] sm:$0xff]
  %v30 = vld [vmem:[%s0 + $0x78] sm:$0xff]
  %v31 = vld [vmem:[%s1] sm:$0xff]
  %v32 = vld [vmem:[%s1 + $0x8] sm:$0xff]
  %v33 = vld [vmem:[%s1 + $0x10] sm:$0xff]
  %v34 = vld [vmem:[%s1 + $0x18] sm:$0xff]
  %v35 = vld [vmem:[%s1 + $0x20] sm:$0xff]
  %v36 = vld [vmem:[%s1 + $0x28] sm:$0xff]
  %v37 = vpack.c.bf16 %v16, %v15
  %v38 = vpack.c.bf16 %v18, %v17
  %v39 = vpack.c.bf16 %v20, %v19
  %v40 = vpack.c.bf16 %v22, %v21
  %v41 = vpack.c.bf16 %v24, %v23
  %v42 = vpack.c.bf16 %v26, %v25
  %v43 = vpack.c.bf16 %v28, %v27
  %v44 = vpack.c.bf16 %v30, %v29
  %v45 = vld [vmem:[%s2] sm:$0x3]
  %v47 = vperm.slane %v45, 0
  %v48 = vperm.slane %v45, 1
  %v57 = vunpack.c.l.b16 %v31
  %v58 = vunpack.c.h.b16 %v31
  %v59 = vunpack.c.l.b16 %v32
  %v60 = vunpack.c.h.b16 %v32
  %v61 = vunpack.c.l.b16 %v33
  %v62 = vunpack.c.h.b16 %v33
  %v63 = vunpack.c.l.b16 %v34
  %v64 = vunpack.c.h.b16 %v34
  %v65 = vunpack.c.l.b16 %v35
  %v66 = vunpack.c.h.b16 %v35
  %v67 = vunpack.c.l.b16 %v36
  %v68 = vunpack.c.h.b16 %v36
  %v69 = vpack.c.b16 %v59, %v57
  %v70 = vpack.c.b16 %v60, %v58
  %v71 = vpack.c.b16 %v63, %v61
  %v72 = vpack.c.b16 %v64, %v62
  %v73 = vpack.c.b16 %v67, %v65
  %v74 = vpack.c.b16 %v68, %v66
  %vm81 = vcmask 392192
  %v83 = vsel %vm81, %v37, 0
  %v86 = vsel %vm81, %v38, 0
  %v89 = vsel %vm81, %v39, 0
  %v92 = vsel %vm81, %v40, 0
  %v95 = vsel %vm81, %v41, 0
  %v98 = vsel %vm81, %v42, 0
  %v101 = vsel %vm81, %v43, 0
  %v104 = vsel %vm81, %v44, 0
  %106 = vmatpush.bf16.msra.mxu0 0
  %107 = vmatpush.bf16.msra.mxu0 0
  %108 = vmatpush.bf16.msra.mxu0 0
  %109 = vmatpush.bf16.msra.mxu0 0
  %110 = vmatpush.bf16.msra.mxu0 0
  %111 = vmatpush.bf16.msra.mxu0 %v73
  %112 = vmatpush.bf16.msra.mxu0 %v71
  %113 = vmatpush.bf16.msra.mxu0 %v69
  %114 = vmatmul.bf16.gmra.mxu0 %v83
  %v115 = vpop.f32.mrf.mxu0
  %v116 = vadd.f32 %v47, %v115
  %v117 = vpop.f32.mrf.mxu0
  %v118 = vadd.f32 %v47, %v117
  %119 = vmatmul.bf16.gmra.mxu0 %v86
  %v120 = vpop.f32.mrf.mxu0
  %v121 = vadd.f32 %v47, %v120
  %v122 = vpop.f32.mrf.mxu0
  %v123 = vadd.f32 %v47, %v122
  %124 = vmatmul.bf16.gmra.mxu0 %v89
  %v125 = vpop.f32.mrf.mxu0
  %v126 = vadd.f32 %v47, %v125
  %v127 = vpop.f32.mrf.mxu0
  %v128 = vadd.f32 %v47, %v127
  %129 = vmatmul.bf16.gmra.mxu0 %v92
  %v130 = vpop.f32.mrf.mxu0
  %v131 = vadd.f32 %v47, %v130
  %v132 = vpop.f32.mrf.mxu0
  %v133 = vadd.f32 %v47, %v132
  %134 = vmatmul.bf16.gmra.mxu0 %v95
  %v135 = vpop.f32.mrf.mxu0
  %v136 = vadd.f32 %v47, %v135
  %v137 = vpop.f32.mrf.mxu0
  %v138 = vadd.f32 %v47, %v137
  %139 = vmatmul.bf16.gmra.mxu0 %v98
  %v140 = vpop.f32.mrf.mxu0
  %v141 = vadd.f32 %v47, %v140
  %v142 = vpop.f32.mrf.mxu0
  %v143 = vadd.f32 %v47, %v142
  %144 = vmatmul.bf16.gmra.mxu0 %v101
  %v145 = vpop.f32.mrf.mxu0
  %v146 = vadd.f32 %v47, %v145
  %v147 = vpop.f32.mrf.mxu0
  %v148 = vadd.f32 %v47, %v147
  %149 = vmatmul.bf16.gmra.mxu0 %v104
  %v150 = vpop.f32.mrf.mxu0
  %v151 = vadd.f32 %v47, %v150
  %v152 = vpop.f32.mrf.mxu0
  %v153 = vadd.f32 %v47, %v152
  %154 = vdwg.mxu0
  %155 = vmatpush.bf16.msra.mxu0 0
  %156 = vmatpush.bf16.msra.mxu0 0
  %157 = vmatpush.bf16.msra.mxu0 0
  %158 = vmatpush.bf16.msra.mxu0 0
  %159 = vmatpush.bf16.msra.mxu0 0
  %160 = vmatpush.bf16.msra.mxu0 %v74
  %161 = vmatpush.bf16.msra.mxu0 %v72
  %162 = vmatpush.bf16.msra.mxu0 %v70
  %163 = vmatmul.bf16.gmra.mxu0 %v83
  %v164 = vpop.f32.mrf.mxu0
  %v165 = vadd.f32 %v48, %v164
  %v166 = vpop.f32.mrf.mxu0
  %v167 = vadd.f32 %v48, %v166
  %168 = vmatmul.bf16.gmra.mxu0 %v86
  %v169 = vpop.f32.mrf.mxu0
  %v170 = vadd.f32 %v48, %v169
  %v171 = vpop.f32.mrf.mxu0
  %v172 = vadd.f32 %v48, %v171
  %173 = vmatmul.bf16.gmra.mxu0 %v89
  %v174 = vpop.f32.mrf.mxu0
  %v175 = vadd.f32 %v48, %v174
  %v176 = vpop.f32.mrf.mxu0
  %v177 = vadd.f32 %v48, %v176
  %178 = vmatmul.bf16.gmra.mxu0 %v92
  %v179 = vpop.f32.mrf.mxu0
  %v180 = vadd.f32 %v48, %v179
  %v181 = vpop.f32.mrf.mxu0
  %v182 = vadd.f32 %v48, %v181
  %183 = vmatmul.bf16.gmra.mxu0 %v95
  %v184 = vpop.f32.mrf.mxu0
  %v185 = vadd.f32 %v48, %v184
  %v186 = vpop.f32.mrf.mxu0
  %v187 = vadd.f32 %v48, %v186
  %188 = vmatmul.bf16.gmra.mxu0 %v98
  %v189 = vpop.f32.mrf.mxu0
  %v190 = vadd.f32 %v48, %v189
  %v191 = vpop.f32.mrf.mxu0
  %v192 = vadd.f32 %v48, %v191
  %193 = vmatmul.bf16.gmra.mxu0 %v101
  %v194 = vpop.f32.mrf.mxu0
  %v195 = vadd.f32 %v48, %v194
  %v196 = vpop.f32.mrf.mxu0
  %v197 = vadd.f32 %v48, %v196
  %198 = vmatmul.bf16.gmra.mxu0 %v104
  %v199 = vpop.f32.mrf.mxu0
  %v200 = vadd.f32 %v48, %v199
  %v201 = vpop.f32.mrf.mxu0
  %v202 = vadd.f32 %v48, %v201
  %203 = vdwg.mxu0
  %204 = vst [vmem:[%s3] sm:$0xff] %v116
  %vm205 = vcmask 523264
  %206 = vst.msk [vmem:[%s3 + $0x8] sm:$0xff] %vm205, %v165
  %207 = vst [vmem:[%s3 + $0x10] sm:$0xff] %v118
  %208 = vst.msk [vmem:[%s3 + $0x18] sm:$0xff] %vm205, %v167
  %209 = vst [vmem:[%s3 + $0x20] sm:$0xff] %v121
  %210 = vst.msk [vmem:[%s3 + $0x28] sm:$0xff] %vm205, %v170
  %211 = vst [vmem:[%s3 + $0x30] sm:$0xff] %v123
  %212 = vst.msk [vmem:[%s3 + $0x38] sm:$0xff] %vm205, %v172
  %213 = vst [vmem:[%s3 + $0x40] sm:$0xff] %v126
  %214 = vst.msk [vmem:[%s3 + $0x48] sm:$0xff] %vm205, %v175
  %215 = vst [vmem:[%s3 + $0x50] sm:$0xff] %v128
  %216 = vst.msk [vmem:[%s3 + $0x58] sm:$0xff] %vm205, %v177
  %217 = vst [vmem:[%s3 + $0x60] sm:$0xff] %v131
  %218 = vst.msk [vmem:[%s3 + $0x68] sm:$0xff] %vm205, %v180
  %219 = vst [vmem:[%s3 + $0x70] sm:$0xff] %v133
  %220 = vst.msk [vmem:[%s3 + $0x78] sm:$0xff] %vm205, %v182
  %221 = vst [vmem:[%s3 + $0x80] sm:$0xff] %v136
  %222 = vst.msk [vmem:[%s3 + $0x88] sm:$0xff] %vm205, %v185
  %223 = vst [vmem:[%s3 + $0x90] sm:$0xff] %v138
  %224 = vst.msk [vmem:[%s3 + $0x98] sm:$0xff] %vm205, %v187
  %225 = vst [vmem:[%s3 + $0xa0] sm:$0xff] %v141
  %226 = vst.msk [vmem:[%s3 + $0xa8] sm:$0xff] %vm205, %v190
  %227 = vst [vmem:[%s3 + $0xb0] sm:$0xff] %v143
  %228 = vst.msk [vmem:[%s3 + $0xb8] sm:$0xff] %vm205, %v192
  %229 = vst [vmem:[%s3 + $0xc0] sm:$0xff] %v146
  %230 = vst.msk [vmem:[%s3 + $0xc8] sm:$0xff] %vm205, %v195
  %231 = vst [vmem:[%s3 + $0xd0] sm:$0xff] %v148
  %232 = vst.msk [vmem:[%s3 + $0xd8] sm:$0xff] %vm205, %v197
  %233 = vst [vmem:[%s3 + $0xe0] sm:$0xff] %v151
  %234 = vst.msk [vmem:[%s3 + $0xe8] sm:$0xff] %vm205, %v200
  %235 = vst [vmem:[%s3 + $0xf0] sm:$0xff] %v153
  %236 = vst.msk [vmem:[%s3 + $0xf8] sm:$0xff] %vm205, %v202
  // Predicated region
  $region14: #{_forward_impl.6} parent=0 // pred_check
    _
  $region15: #{_forward_impl.6} parent=0 // pred_check_branch
    %238 = sbr.rel (0) target = $region17
  $region16: #{_forward_impl.6} parent=0 // pred_region
    _
  $region17: #{_forward_impl.6} parent=0 // pred_fallthru
    _
  // Predicated region
  $region18: #{_forward_impl.6} parent=0 // pred_check
    _
  $region19: #{_forward_impl.6} parent=0 // pred_check_branch
    %240 = sbr.rel (0) target = $region21
  $region20: #{_forward_impl.6} parent=0 // pred_region
    _
  $region21: #{_forward_impl.6} parent=0 // pred_fallthru
    _

// kernel: _forward_impl.9
$region0: #{_forward_impl.9}
  #allocation0 [shape = 'u32[]', space=smem, size = 0x4, offset = 0x4, fixed_abs, tag = 'smem constant byte address 0x4 - core index']
  #allocation1 [shape = 'u32[72,128]{1,0:T(1,128)}', space=vmem, size = 0x9000, scoped, tag = 'internal scratch']
  %s0 = inlined_call_operand.vmem [shape: f32[1,2,64,192], index: 0, kind: input, shape index: {}, may-alias: {0,4}]
  %s1 = inlined_call_operand.vmem [shape: s32[1,2,1,128], index: 1, kind: input, shape index: {}]
  %s2 = inlined_call_operand.vmem [shape: f32[1,2,1,128], index: 2, kind: input, shape index: {}]
  %s3 = inlined_call_operand.vmem [shape: f32[1,128,192], index: 3, kind: input, shape index: {}]
  %s4 = inlined_call_operand.vmem [shape: f32[1,2,64,192], index: 4, kind: output, shape index: {0}, may-alias: {0,4}]
  %s5 = inlined_call_operand.vmem [shape: f32[1,128,192], index: 5, kind: output, shape index: {1}]
  %6 = xla_tuple %s4, %s5
  %s7 = sld [smem:[#allocation0]]
  $region61: #{_forward_impl.9} parent=0
    _
  %s9 = ssub.s32 1, %s7
  %s10 = scalar_select 0, %s9, %s7
  loop: start=0, step=1, limit=4
  $region2: #{_forward_impl.9} parent=0 // loop_pre_header
    _
  $region3: #{_forward_impl.9} parent=0 // loop_header
    %s12 = sphi 0, %s16
    %p13 = scmp.ge.s32.totalorder %s12, 4
    %s19 = sphi 0, %s31
    %s20 = sphi 0, %s27
    %s21 = sphi 0, %s19
    %s22 = sphi 0, %s20
    %s23 = sphi 0, %s21
    %s24 = sphi 0, %s22
    %s36 = sphi 0, %s38
    %s39 = sphi 0, %s36
    %s40 = sphi 0, %s39
    %s56 = sphi 0, %s40
    %s64 = sphi 0, %s66
    %s67 = sphi 0, %s64
    %s68 = sphi 0, %s67
    %s84 = sphi 0, %s68
    %s92 = sphi 0, %s94
    %s95 = sphi 0, %s92
    %s96 = sphi 0, %s95
    %s112 = sphi 0, %s96
    %s118 = sphi 0, %s120
    %s121 = sphi 0, %s118
    %s122 = sphi 0, %s121
    %s138 = sphi 0, %s122
    %s146 = sphi 0, %s148
    %s149 = sphi 0, %s146
    %s150 = sphi 0, %s149
    %s166 = sphi 0, %s150
    %s172 = sphi 0, %s174
    %s175 = sphi 0, %s172
    %s176 = sphi 0, %s175
    %s192 = sphi 0, %s176
  $region4: #{_forward_impl.9} parent=0 // loop_header_branch
    %15 = sbr.rel (%p13) target = $region8
  $region5: #{_forward_impl.9} parent=0 // loop_body
    %s17 = ssub.s32 %s12, 1
    %s18 = ssub.s32 %s12, 2
    %s25 = sadd.s32 1, %s20
    %p26 = scmp.ge.s32.totalorder %s25, 2
    %s27 = scalar_select %p26, 0, %s25
    %s28 = sadd.s32 1, %s19
    %s29 = scalar_select %p26, %s28, %s19
    %p30 = scmp.ge.s32.totalorder %s29, 1
    %s31 = scalar_select %p30, 0, %s29
    %s32 = ssub.s32 %s19, %s31
    %s33 = ssub.s32 %s20, %s27
    %s34 = sor.u32 %s32, %s33
    %p35 = scmp.eq.s32.totalorder %s34, 0
    %s37 = sadd.s32 %s36, 1
    %s38 = scalar_select %p35, %s36, %s37
    %p41 = pneg %p35
    %p42 = scmp.eq.s32.totalorder %s12, 1
    %p43 = por %p41, %p42
    %p44 = scmp.ne.s32.totalorder %s36, %s39
    %p45 = scmp.eq.s32.totalorder %s12, 0
    %p46 = por %p44, %p45
    %p47 = scmp.ne.s32.totalorder %s36, %s39
    %p48 = scmp.eq.s32.totalorder %s17, 1
    %p49 = por %p47, %p48
    %p50 = scmp.ne.s32.totalorder %s39, %s40
    %p51 = scmp.eq.s32.totalorder %s17, 0
    %p52 = por %p50, %p51
    %p53 = scmp.ne.s32.totalorder %s39, %s40
    %p54 = scmp.eq.s32.totalorder %s18, 1
    %p55 = por %p53, %p54
    %p57 = scmp.ne.s32.totalorder %s40, %s56
    %p58 = scmp.eq.s32.totalorder %s18, 0
    %p59 = por %p57, %p58
    %s60 = ssub.s32 %s19, %s31
    %s61 = ssub.s32 %s20, %s27
    %s62 = sor.u32 %s60, %s61
    %p63 = scmp.eq.s32.totalorder %s62, 0
    %s65 = sadd.s32 %s64, 1
    %s66 = scalar_select %p63, %s64, %s65
    %p69 = pneg %p63
    %p70 = scmp.eq.s32.totalorder %s12, 1
    %p71 = por %p69, %p70
    %p72 = scmp.ne.s32.totalorder %s64, %s67
    %p73 = scmp.eq.s32.totalorder %s12, 0
    %p74 = por %p72, %p73
    %p75 = scmp.ne.s32.totalorder %s64, %s67
    %p76 = scmp.eq.s32.totalorder %s17, 1
    %p77 = por %p75, %p76
    %p78 = scmp.ne.s32.totalorder %s67, %s68
    %p79 = scmp.eq.s32.totalorder %s17, 0
    %p80 = por %p78, %p79
    %p81 = scmp.ne.s32.totalorder %s67, %s68
    %p82 = scmp.eq.s32.totalorder %s18, 1
    %p83 = por %p81, %p82
    %p85 = scmp.ne.s32.totalorder %s68, %s84
    %p86 = scmp.eq.s32.totalorder %s18, 0
    %p87 = por %p85, %p86
    %s88 = ssub.s32 %s19, %s31
    %s89 = ssub.s32 %s20, %s27
    %s90 = sor.u32 %s88, %s89
    %p91 = scmp.eq.s32.totalorder %s90, 0
    %s93 = sadd.s32 %s92, 1
    %s94 = scalar_select %p91, %s92, %s93
    %p97 = pneg %p91
    %p98 = scmp.eq.s32.totalorder %s12, 1
    %p99 = por %p97, %p98
    %p100 = scmp.ne.s32.totalorder %s92, %s95
    %p101 = scmp.eq.s32.totalorder %s12, 0
    %p102 = por %p100, %p101
    %p103 = scmp.ne.s32.totalorder %s92, %s95
    %p104 = scmp.eq.s32.totalorder %s17, 1
    %p105 = por %p103, %p104
    %p106 = scmp.ne.s32.totalorder %s95, %s96
    %p107 = scmp.eq.s32.totalorder %s17, 0
    %p108 = por %p106, %p107
    %p109 = scmp.ne.s32.totalorder %s95, %s96
    %p110 = scmp.eq.s32.totalorder %s18, 1
    %p111 = por %p109, %p110
    %p113 = scmp.ne.s32.totalorder %s96, %s112
    %p114 = scmp.eq.s32.totalorder %s18, 0
    %p115 = por %p113, %p114
    %s116 = ssub.s32 %s19, %s31
    %p117 = scmp.eq.s32.totalorder %s116, 0
    %s119 = sadd.s32 %s118, 1
    %s120 = scalar_select %p117, %s118, %s119
    %p123 = pneg %p117
    %p124 = scmp.eq.s32.totalorder %s12, 1
    %p125 = por %p123, %p124
    %p126 = scmp.ne.s32.totalorder %s118, %s121
    %p127 = scmp.eq.s32.totalorder %s12, 0
    %p128 = por %p126, %p127
    %p129 = scmp.ne.s32.totalorder %s118, %s121
    %p130 = scmp.eq.s32.totalorder %s17, 1
    %p131 = por %p129, %p130
    %p132 = scmp.ne.s32.totalorder %s121, %s122
    %p133 = scmp.eq.s32.totalorder %s17, 0
    %p134 = por %p132, %p133
    %p135 = scmp.ne.s32.totalorder %s121, %s122
    %p136 = scmp.eq.s32.totalorder %s18, 1
    %p137 = por %p135, %p136
    %p139 = scmp.ne.s32.totalorder %s122, %s138
    %p140 = scmp.eq.s32.totalorder %s18, 0
    %p141 = por %p139, %p140
    %s142 = ssub.s32 %s19, %s31
    %s143 = ssub.s32 %s20, %s27
    %s144 = sor.u32 %s142, %s143
    %p145 = scmp.eq.s32.totalorder %s144, 0
    %s147 = sadd.s32 %s146, 1
    %s148 = scalar_select %p145, %s146, %s147
    %p151 = pneg %p145
    %p152 = scmp.eq.s32.totalorder %s12, 1
    %p153 = por %p151, %p152
    %p154 = scmp.ne.s32.totalorder %s146, %s149
    %p155 = scmp.eq.s32.totalorder %s12, 0
    %p156 = por %p154, %p155
    %p157 = scmp.ne.s32.totalorder %s146, %s149
    %p158 = scmp.eq.s32.totalorder %s17, 1
    %p159 = por %p157, %p158
    %p160 = scmp.ne.s32.totalorder %s149, %s150
    %p161 = scmp.eq.s32.totalorder %s17, 0
    %p162 = por %p160, %p161
    %p163 = scmp.ne.s32.totalorder %s149, %s150
    %p164 = scmp.eq.s32.totalorder %s18, 1
    %p165 = por %p163, %p164
    %p167 = scmp.ne.s32.totalorder %s150, %s166
    %p168 = scmp.eq.s32.totalorder %s18, 0
    %p169 = por %p167, %p168
    %s170 = ssub.s32 %s19, %s31
    %p171 = scmp.eq.s32.totalorder %s170, 0
    %s173 = sadd.s32 %s172, 1
    %s174 = scalar_select %p171, %s172, %s173
    %p177 = pneg %p171
    %p178 = scmp.eq.s32.totalorder %s12, 1
    %p179 = por %p177, %p178
    %p180 = scmp.ne.s32.totalorder %s172, %s175
    %p181 = scmp.eq.s32.totalorder %s12, 0
    %p182 = por %p180, %p181
    %p183 = scmp.ne.s32.totalorder %s172, %s175
    %p184 = scmp.eq.s32.totalorder %s17, 1
    %p185 = por %p183, %p184
    %p186 = scmp.ne.s32.totalorder %s175, %s176
    %p187 = scmp.eq.s32.totalorder %s17, 0
    %p188 = por %p186, %p187
    %p189 = scmp.ne.s32.totalorder %s175, %s176
    %p190 = scmp.eq.s32.totalorder %s18, 1
    %p191 = por %p189, %p190
    %p193 = scmp.ne.s32.totalorder %s176, %s192
    %p194 = scmp.eq.s32.totalorder %s18, 0
    %p195 = por %p193, %p194
    %p196 = scmp.le.s32.totalorder 1, %s12
    %p197 = scmp.lt.s32.totalorder %s12, 3
    %p198 = pnand %p196, %p197
    %p199 = pneg %p198
    // Predicated region
    $region9: #{_forward_impl.9} parent=5 // pred_check
      _
    $region10: #{_forward_impl.9} parent=5 // pred_check_branch
      %201 = sbr.rel (%p198) target = $region12
    $region11: #{_forward_impl.9} parent=5 // pred_region
      %s202 = ssub.s32 %s12, 1
      // Predicated region
      $region13: #{_forward_impl.9} parent=11 // pred_check
        %p203 = pneg %p134
      $region14: #{_forward_impl.9} parent=11 // pred_check_branch
        %205 = sbr.rel (%p203) target = $region16
      $region15: #{_forward_impl.9} parent=11 // pred_region
        %p206 = scmp.lt.s32.totalorder %s21, 0
        %s207 = scalar_select %p206, %s21, 0
        %s208 = smul.addr %s207, 32
        %s209 = smul.addr %s208, 8
        %s210 = scalar_lea.vmem %s3, %s209
      $region16: #{_forward_impl.9} parent=11 // pred_fallthru
        _
    $region12: #{_forward_impl.9} parent=5 // pred_fallthru
      _
    %p211 = scmp.lt.s32.totalorder %s12, 2
    // Predicated region
    $region17: #{_forward_impl.9} parent=5 // pred_check
      %p212 = pneg %p211
    $region18: #{_forward_impl.9} parent=5 // pred_check_branch
      %214 = sbr.rel (%p212) target = $region20
    $region19: #{_forward_impl.9} parent=5 // pred_region
      // Predicated region
      $region21: #{_forward_impl.9} parent=19 // pred_check
        %p215 = pneg %p46
      $region22: #{_forward_impl.9} parent=19 // pred_check_branch
        %217 = sbr.rel (%p215) target = $region24
      $region23: #{_forward_impl.9} parent=19 // pred_region
        %p218 = scmp.lt.s32.totalorder %s19, 0
        %s219 = scalar_select %p218, %s19, 0
        %p220 = scmp.lt.s32.totalorder %s20, 1
        %s221 = scalar_select %p220, %s20, 1
        %s222 = smul.addr %s221, 16
        %s223 = smul.addr %s219, 32
        %s224 = sadd.s32 %s222, %s223
        %s225 = smul.addr %s224, 8
        %s226 = scalar_lea.vmem %s0, %s225
      $region24: #{_forward_impl.9} parent=19 // pred_fallthru
        _
      // Predicated region
      $region25: #{_forward_impl.9} parent=19 // pred_check
        %p227 = pneg %p74
      $region26: #{_forward_impl.9} parent=19 // pred_check_branch
        %229 = sbr.rel (%p227) target = $region28
      $region27: #{_forward_impl.9} parent=19 // pred_region
        %p230 = scmp.lt.s32.totalorder %s19, 0
        %s231 = scalar_select %p230, %s19, 0
        %p232 = scmp.lt.s32.totalorder %s20, 1
        %s233 = scalar_select %p232, %s20, 1
        %s234 = smul.addr %s231, 2
        %s235 = sadd.s32 %s233, %s234
        %s236 = scalar_lea.vmem %s1, %s235
      $region28: #{_forward_impl.9} parent=19 // pred_fallthru
        _
      // Predicated region
      $region29: #{_forward_impl.9} parent=19 // pred_check
        %p237 = pneg %p102
      $region30: #{_forward_impl.9} parent=19 // pred_check_branch
        %239 = sbr.rel (%p237) target = $region32
      $region31: #{_forward_impl.9} parent=19 // pred_region
        %p240 = scmp.lt.s32.totalorder %s19, 0
        %s241 = scalar_select %p240, %s19, 0
        %p242 = scmp.lt.s32.totalorder %s20, 1
        %s243 = scalar_select %p242, %s20, 1
        %s244 = smul.addr %s241, 2
        %s245 = sadd.s32 %s243, %s244
        %s246 = scalar_lea.vmem %s2, %s245
      $region32: #{_forward_impl.9} parent=19 // pred_fallthru
        _
    $region20: #{_forward_impl.9} parent=5 // pred_fallthru
      _
    %p247 = scmp.le.s32.totalorder 1, %s12
    %p248 = scmp.lt.s32.totalorder %s12, 3
    %p249 = pnand %p247, %p248
    %p250 = pneg %p249
    // Predicated region
    $region33: #{_forward_impl.9} parent=5 // pred_check
      _
    $region34: #{_forward_impl.9} parent=5 // pred_check_branch
      %252 = sbr.rel (%p249) target = $region36
    $region35: #{_forward_impl.9} parent=5 // pred_region
      %s253 = ssub.s32 %s12, 1
      %p254 = scmp.lt.s32.totalorder %s21, 0
      %s255 = scalar_select %p254, %s21, 0
      %p256 = scmp.lt.s32.totalorder %s22, 1
      %s257 = scalar_select %p256, %s22, 1
      %s258 = smul.addr %s257, 16
      %s259 = smul.addr %s255, 32
      %s260 = sadd.s32 %s258, %s259
      %s261 = smul.addr %s260, 8
      %s262 = scalar_lea.vmem %s0, %s261
      %p263 = pneg %p52
      %p264 = pneg %p49
      %p265 = scmp.lt.s32.totalorder %s21, 0
      %s266 = scalar_select %p265, %s21, 0
      %p267 = scmp.lt.s32.totalorder %s22, 1
      %s268 = scalar_select %p267, %s22, 1
      %s269 = smul.addr %s266, 2
      %s270 = sadd.s32 %s268, %s269
      %s271 = scalar_lea.vmem %s1, %s270
      %p272 = pneg %p80
      %p273 = pneg %p77
      %p274 = scmp.lt.s32.totalorder %s21, 0
      %s275 = scalar_select %p274, %s21, 0
      %p276 = scmp.lt.s32.totalorder %s22, 1
      %s277 = scalar_select %p276, %s22, 1
      %s278 = smul.addr %s275, 2
      %s279 = sadd.s32 %s277, %s278
      %s280 = scalar_lea.vmem %s2, %s279
      %p281 = pneg %p108
      %p282 = pneg %p105
      %p283 = scmp.lt.s32.totalorder %s21, 0
      %s284 = scalar_select %p283, %s21, 0
      %s285 = smul.addr %s284, 32
      %s286 = smul.addr %s285, 8
      %s287 = scalar_lea.vmem %s3, %s286
      %p288 = pneg %p134
      %p289 = pneg %p131
      %p290 = pneg %p162
      %p291 = pneg %p159
      %p292 = scmp.lt.s32.totalorder %s21, 0
      %s293 = scalar_select %p292, %s21, 0
      %p294 = scmp.lt.s32.totalorder %s22, 1
      %s295 = scalar_select %p294, %s22, 1
      %s296 = smul.addr %s295, 16
      %s297 = smul.addr %s293, 32
      %s298 = sadd.s32 %s296, %s297
      %s299 = smul.addr %s298, 8
      %s300 = scalar_lea.vmem %s4, %s299
      %p301 = pneg %p188
      %p302 = pneg %p185
      %p303 = scmp.lt.s32.totalorder %s21, 0
      %s304 = scalar_select %p303, %s21, 0
      %s305 = smul.addr %s304, 32
      %s306 = smul.addr %s305, 8
      %s307 = scalar_lea.vmem %s5, %s306
      %p308 = scmp.lt.s32.totalorder %s21, 0
      %s309 = scalar_select %p308, %s21, 0
      %p310 = scmp.lt.s32.totalorder %s22, 1
      %s311 = scalar_select %p310, %s22, 1
      %s312 = smul.addr %s311, 16
      %s313 = smul.addr %s309, 32
      %s314 = sadd.s32 %s312, %s313
      %s315 = smul.addr %s314, 8
      %s316 = scalar_lea.vmem %s0, %s315
      %p317 = scmp.lt.s32.totalorder %s21, 0
      %s318 = scalar_select %p317, %s21, 0
      %p319 = scmp.lt.s32.totalorder %s22, 1
      %s320 = scalar_select %p319, %s22, 1
      %s321 = smul.addr %s318, 2
      %s322 = sadd.s32 %s320, %s321
      %s323 = scalar_lea.vmem %s1, %s322
      %p324 = scmp.lt.s32.totalorder %s21, 0
      %s325 = scalar_select %p324, %s21, 0
      %p326 = scmp.lt.s32.totalorder %s22, 1
      %s327 = scalar_select %p326, %s22, 1
      %s328 = smul.addr %s325, 2
      %s329 = sadd.s32 %s327, %s328
      %s330 = scalar_lea.vmem %s2, %s329
      %p331 = scmp.lt.s32.totalorder %s21, 0
      %s332 = scalar_select %p331, %s21, 0
      %s333 = smul.addr %s332, 32
      %s334 = smul.addr %s333, 8
      %s335 = scalar_lea.vmem %s3, %s334
      %p336 = scmp.lt.s32.totalorder %s21, 0
      %s337 = scalar_select %p336, %s21, 0
      %p338 = scmp.lt.s32.totalorder %s22, 1
      %s339 = scalar_select %p338, %s22, 1
      %s340 = smul.addr %s339, 16
      %s341 = smul.addr %s337, 32
      %s342 = sadd.s32 %s340, %s341
      %s343 = smul.addr %s342, 8
      %s344 = scalar_lea.vmem %s4, %s343
      %p345 = scmp.lt.s32.totalorder %s21, 0
      %s346 = scalar_select %p345, %s21, 0
      %s347 = smul.addr %s346, 32
      %s348 = smul.addr %s347, 8
      %s349 = scalar_lea.vmem %s5, %s348
      %p350 = scmp.eq.s32.totalorder %s22, 0
      // Predicated region
      $region37: #{_forward_impl.9} parent=35 // pred_check
        %p351 = pneg %p350
      $region38: #{_forward_impl.9} parent=35 // pred_check_branch
        %353 = sbr.rel (%p351) target = $region40
      $region39: #{_forward_impl.9} parent=35 // pred_region
        %354 = vst [vmem:[%s349] sm:$0xff] 0.0
        %vm355 = vcmask 523264
        %356 = vst.msk [vmem:[%s349 + $0x8] sm:$0xff] %vm355, 0.0
        %357 = vst [vmem:[%s349 + $0x10] sm:$0xff] 0.0
        %358 = vst.msk [vmem:[%s349 + $0x18] sm:$0xff] %vm355, 0.0
        %359 = vst [vmem:[%s349 + $0x20] sm:$0xff] 0.0
        %360 = vst.msk [vmem:[%s349 + $0x28] sm:$0xff] %vm355, 0.0
        %361 = vst [vmem:[%s349 + $0x30] sm:$0xff] 0.0
        %362 = vst.msk [vmem:[%s349 + $0x38] sm:$0xff] %vm355, 0.0
        %363 = vst [vmem:[%s349 + $0x40] sm:$0xff] 0.0
        %364 = vst.msk [vmem:[%s349 + $0x48] sm:$0xff] %vm355, 0.0
        %365 = vst [vmem:[%s349 + $0x50] sm:$0xff] 0.0
        %366 = vst.msk [vmem:[%s349 + $0x58] sm:$0xff] %vm355, 0.0
        %367 = vst [vmem:[%s349 + $0x60] sm:$0xff] 0.0
        %368 = vst.msk [vmem:[%s349 + $0x68] sm:$0xff] %vm355, 0.0
        %369 = vst [vmem:[%s349 + $0x70] sm:$0xff] 0.0
        %370 = vst.msk [vmem:[%s349 + $0x78] sm:$0xff] %vm355, 0.0
        %371 = vst [vmem:[%s349 + $0x80] sm:$0xff] 0.0
        %372 = vst.msk [vmem:[%s349 + $0x88] sm:$0xff] %vm355, 0.0
        %373 = vst [vmem:[%s349 + $0x90] sm:$0xff] 0.0
        %374 = vst.msk [vmem:[%s349 + $0x98] sm:$0xff] %vm355, 0.0
        %375 = vst [vmem:[%s349 + $0xa0] sm:$0xff] 0.0
        %376 = vst.msk [vmem:[%s349 + $0xa8] sm:$0xff] %vm355, 0.0
        %377 = vst [vmem:[%s349 + $0xb0] sm:$0xff] 0.0
        %378 = vst.msk [vmem:[%s349 + $0xb8] sm:$0xff] %vm355, 0.0
        %379 = vst [vmem:[%s349 + $0xc0] sm:$0xff] 0.0
        %380 = vst.msk [vmem:[%s349 + $0xc8] sm:$0xff] %vm355, 0.0
        %381 = vst [vmem:[%s349 + $0xd0] sm:$0xff] 0.0
        %382 = vst.msk [vmem:[%s349 + $0xd8] sm:$0xff] %vm355, 0.0
        %383 = vst [vmem:[%s349 + $0xe0] sm:$0xff] 0.0
        %384 = vst.msk [vmem:[%s349 + $0xe8] sm:$0xff] %vm355, 0.0
        %385 = vst [vmem:[%s349 + $0xf0] sm:$0xff] 0.0
        %386 = vst.msk [vmem:[%s349 + $0xf8] sm:$0xff] %vm355, 0.0
      $region40: #{_forward_impl.9} parent=35 // pred_fallthru
        _
      %v387 = vld [vmem:[%s323] sm:$0x1]
      %v388 = vld [vmem:[%s330] sm:$0x1]
      %v389 = vlaneseq
      %v390 = vshrl.u32 %v389, 7
      %v391 = vadd.s32 %v390, 8
      %v392 = vadd.s32 %v390, 16
      %v393 = vadd.s32 %v390, 24
      %v394 = vadd.s32 %v390, 32
      %v395 = vadd.s32 %v390, 40
      %v396 = vadd.s32 %v390, 48
      %v397 = vadd.s32 %v390, 56
      %v398 = vperm.slane %v387, 0
      %vm399 = vcmp.eq.s32.totalorder %v390, %v398
      %vm400 = vcmp.eq.s32.totalorder %v391, %v398
      %vm401 = vcmp.eq.s32.totalorder %v392, %v398
      %vm402 = vcmp.eq.s32.totalorder %v393, %v398
      %vm403 = vcmp.eq.s32.totalorder %v394, %v398
      %vm404 = vcmp.eq.s32.totalorder %v395, %v398
      %vm405 = vcmp.eq.s32.totalorder %v396, %v398
      %vm406 = vcmp.eq.s32.totalorder %v397, %v398
      %v408 = vperm.slane %v388, 0
      %v410 = vsel %vm399, %v408, 0.0
      %v411 = vsel %vm400, %v408, 0.0
      %v412 = vsel %vm401, %v408, 0.0
      %v413 = vsel %vm402, %v408, 0.0
      %v414 = vsel %vm403, %v408, 0.0
      %v415 = vsel %vm404, %v408, 0.0
      %v416 = vsel %vm405, %v408, 0.0
      %v417 = vsel %vm406, %v408, 0.0
      %v418 = vld [vmem:[%s316] sm:$0xff]
      %v419 = vld [vmem:[%s316 + $0x8] sm:$0xff]
      %v420 = vld [vmem:[%s316 + $0x10] sm:$0xff]
      %v421 = vld [vmem:[%s316 + $0x18] sm:$0xff]
      %v422 = vld [vmem:[%s316 + $0x20] sm:$0xff]
      %v423 = vld [vmem:[%s316 + $0x28] sm:$0xff]
      %v424 = vld [vmem:[%s316 + $0x30] sm:$0xff]
      %v425 = vld [vmem:[%s316 + $0x38] sm:$0xff]
      %v426 = vld [vmem:[%s316 + $0x40] sm:$0xff]
      %v427 = vld [vmem:[%s316 + $0x48] sm:$0xff]
      %v428 = vld [vmem:[%s316 + $0x50] sm:$0xff]
      %v429 = vld [vmem:[%s316 + $0x58] sm:$0xff]
      %v430 = vld [vmem:[%s316 + $0x60] sm:$0xff]
      %v431 = vld [vmem:[%s316 + $0x68] sm:$0xff]
      %v432 = vld [vmem:[%s316 + $0x70] sm:$0xff]
      %v433 = vld [vmem:[%s316 + $0x78] sm:$0xff]
      %v434 = vld [vmem:[%s335] sm:$0xff]
      %v435 = vld [vmem:[%s335 + $0x8] sm:$0xff]
      %v436 = vld [vmem:[%s335 + $0x10] sm:$0xff]
      %v437 = vld [vmem:[%s335 + $0x18] sm:$0xff]
      %v438 = vld [vmem:[%s335 + $0x20] sm:$0xff]
      %v439 = vld [vmem:[%s335 + $0x28] sm:$0xff]
      %v440 = vld [vmem:[%s335 + $0x30] sm:$0xff]
      %v441 = vld [vmem:[%s335 + $0x38] sm:$0xff]
      %v442 = vld [vmem:[%s335 + $0x40] sm:$0xff]
      %v443 = vld [vmem:[%s335 + $0x48] sm:$0xff]
      %v444 = vld [vmem:[%s335 + $0x50] sm:$0xff]
      %v445 = vld [vmem:[%s335 + $0x58] sm:$0xff]
      %v446 = vld [vmem:[%s335 + $0x60] sm:$0xff]
      %v447 = vld [vmem:[%s335 + $0x68] sm:$0xff]
      %v448 = vld [vmem:[%s335 + $0x70] sm:$0xff]
      %v449 = vld [vmem:[%s335 + $0x78] sm:$0xff]
      %v450 = vld [vmem:[%s335 + $0x80] sm:$0xff]
      %v451 = vld [vmem:[%s335 + $0x88] sm:$0xff]
      %v452 = vld [vmem:[%s335 + $0x90] sm:$0xff]
      %v453 = vld [vmem:[%s335 + $0x98] sm:$0xff]
      %v454 = vld [vmem:[%s335 + $0xa0] sm:$0xff]
      %v455 = vld [vmem:[%s335 + $0xa8] sm:$0xff]
      %v456 = vld [vmem:[%s335 + $0xb0] sm:$0xff]
      %v457 = vld [vmem:[%s335 + $0xb8] sm:$0xff]
      %v458 = vld [vmem:[%s335 + $0xc0] sm:$0xff]
      %v459 = vld [vmem:[%s335 + $0xc8] sm:$0xff]
      %v460 = vld [vmem:[%s335 + $0xd0] sm:$0xff]
      %v461 = vld [vmem:[%s335 + $0xd8] sm:$0xff]
      %v462 = vld [vmem:[%s335 + $0xe0] sm:$0xff]
      %v463 = vld [vmem:[%s335 + $0xe8] sm:$0xff]
      %v464 = vld [vmem:[%s335 + $0xf0] sm:$0xff]
      %v465 = vld [vmem:[%s335 + $0xf8] sm:$0xff]
      %466 = vxpose.xlu0.b32.start [1/16] %v410, 128
      %467 = vxpose.xlu0.b32.cont [2/16] %v411, 128
      %468 = vxpose.xlu0.b32.cont [3/16] %v412, 128
      %469 = vxpose.xlu0.b32.cont [4/16] %v413, 128
      %470 = vxpose.xlu0.b32.cont [5/16] %v414, 128
      %471 = vxpose.xlu0.b32.cont [6/16] %v415, 128
      %472 = vxpose.xlu0.b32.cont [7/16] %v416, 128
      %473 = vxpose.xlu0.b32.cont [8/16] %v417, 128
      %474 = vxpose.xlu0.b32.cont [9/16] 0.0, 128
      %475 = vxpose.xlu0.b32.cont [10/16] 0.0, 128
      %476 = vxpose.xlu0.b32.cont [11/16] 0.0, 128
      %477 = vxpose.xlu0.b32.cont [12/16] 0.0, 128
      %478 = vxpose.xlu0.b32.cont [13/16] 0.0, 128
      %479 = vxpose.xlu0.b32.cont [14/16] 0.0, 128
      %480 = vxpose.xlu0.b32.cont [15/16] 0.0, 128
      %481 = vxpose.xlu0.b32.end [16/16] 0.0, 128
      %v482 = vpop.trf.xlu0
      %v483 = vpop.trf.xlu0
      %v484 = vpop.trf.xlu0
      %v485 = vpop.trf.xlu0
      %v486 = vpop.trf.xlu0
      %v487 = vpop.trf.xlu0
      %v488 = vpop.trf.xlu0
      %v489 = vpop.trf.xlu0
      %v490 = vpop.trf.xlu0
      %v491 = vpop.trf.xlu0
      %v492 = vpop.trf.xlu0
      %v493 = vpop.trf.xlu0
      %v494 = vpop.trf.xlu0
      %v495 = vpop.trf.xlu0
      %v496 = vpop.trf.xlu0
      %v497 = vpop.trf.xlu0
      %vm498 = vcmask 523264
      %v500 = vsel %vm498, %v482, 0
      %v503 = vsel %vm498, %v483, 0
      %v506 = vsel %vm498, %v484, 0
      %v509 = vsel %vm498, %v485, 0
      %v512 = vsel %vm498, %v486, 0
      %v515 = vsel %vm498, %v487, 0
      %v518 = vsel %vm498, %v488, 0
      %v521 = vsel %vm498, %v489, 0
      %v524 = vsel %vm498, %v490, 0
      %v527 = vsel %vm498, %v491, 0
      %v530 = vsel %vm498, %v492, 0
      %v533 = vsel %vm498, %v493, 0
      %v536 = vsel %vm498, %v494, 0
      %v539 = vsel %vm498, %v495, 0
      %v542 = vsel %vm498, %v496, 0
      %v545 = vsel %vm498, %v497, 0
      %547 = vmatpush.msra.mxu0 0.0
      %548 = vmatpush.msra.mxu0 0.0
      %549 = vmatpush.msra.mxu0 0.0
      %550 = vmatpush.msra.mxu0 0.0
      %551 = vmatpush.msra.mxu0 0.0
      %552 = vmatpush.msra.mxu0 0.0
      %553 = vmatpush.msra.mxu0 0.0
      %554 = vmatpush.msra.mxu0 0.0
      %555 = vmatpush.msra.mxu0 %v432
      %556 = vmatpush.msra.mxu0 %v430
      %557 = vmatpush.msra.mxu0 %v428
      %558 = vmatpush.msra.mxu0 %v426
      %559 = vmatpush.msra.mxu0 %v424
      %560 = vmatpush.msra.mxu0 %v422
      %561 = vmatpush.msra.mxu0 %v420
      %562 = vmatpush.msra.mxu0 %v418
      %563 = vmatmul.f32.gmra.mxu0 %v500
      %v564 = vpop.f32.mrf.mxu0
      %v565 = vadd.f32 0.0, %v564
      %566 = vmatmul.f32.gmra.mxu0 %v503
      %v567 = vpop.f32.mrf.mxu0
      %v568 = vadd.f32 0.0, %v567
      %569 = vmatmul.f32.gmra.mxu0 %v506
      %v570 = vpop.f32.mrf.mxu0
      %v571 = vadd.f32 0.0, %v570
      %572 = vmatmul.f32.gmra.mxu0 %v509
      %v573 = vpop.f32.mrf.mxu0
      %v574 = vadd.f32 0.0, %v573
      %575 = vmatmul.f32.gmra.mxu0 %v512
      %v576 = vpop.f32.mrf.mxu0
      %v577 = vadd.f32 0.0, %v576
      %578 = vmatmul.f32.gmra.mxu0 %v515
      %v579 = vpop.f32.mrf.mxu0
      %v580 = vadd.f32 0.0, %v579
      %581 = vmatmul.f32.gmra.mxu0 %v518
      %v582 = vpop.f32.mrf.mxu0
      %v583 = vadd.f32 0.0, %v582
      %584 = vmatmul.f32.gmra.mxu0 %v521
      %v585 = vpop.f32.mrf.mxu0
      %v586 = vadd.f32 0.0, %v585
      %587 = vmatmul.f32.gmra.mxu0 %v524
      %v588 = vpop.f32.mrf.mxu0
      %v589 = vadd.f32 0.0, %v588
      %590 = vmatmul.f32.gmra.mxu0 %v527
      %v591 = vpop.f32.mrf.mxu0
      %v592 = vadd.f32 0.0, %v591
      %593 = vmatmul.f32.gmra.mxu0 %v530
      %v594 = vpop.f32.mrf.mxu0
      %v595 = vadd.f32 0.0, %v594
      %596 = vmatmul.f32.gmra.mxu0 %v533
      %v597 = vpop.f32.mrf.mxu0
      %v598 = vadd.f32 0.0, %v597
      %599 = vmatmul.f32.gmra.mxu0 %v536
      %v600 = vpop.f32.mrf.mxu0
      %v601 = vadd.f32 0.0, %v600
      %602 = vmatmul.f32.gmra.mxu0 %v539
      %v603 = vpop.f32.mrf.mxu0
      %v604 = vadd.f32 0.0, %v603
      %605 = vmatmul.f32.gmra.mxu0 %v542
      %v606 = vpop.f32.mrf.mxu0
      %v607 = vadd.f32 0.0, %v606
      %608 = vmatmul.f32.gmra.mxu0 %v545
      %v609 = vpop.f32.mrf.mxu0
      %v610 = vadd.f32 0.0, %v609
      %611 = vdwg.mxu0
      %612 = vmatpush.msra.mxu0 0.0
      %613 = vmatpush.msra.mxu0 0.0
      %614 = vmatpush.msra.mxu0 0.0
      %615 = vmatpush.msra.mxu0 0.0
      %616 = vmatpush.msra.mxu0 0.0
      %617 = vmatpush.msra.mxu0 0.0
      %618 = vmatpush.msra.mxu0 0.0
      %619 = vmatpush.msra.mxu0 0.0
      %620 = vmatpush.msra.mxu0 %v433
      %621 = vmatpush.msra.mxu0 %v431
      %622 = vmatpush.msra.mxu0 %v429
      %623 = vmatpush.msra.mxu0 %v427
      %624 = vmatpush.msra.mxu0 %v425
      %625 = vmatpush.msra.mxu0 %v423
      %626 = vmatpush.msra.mxu0 %v421
      %627 = vmatpush.msra.mxu0 %v419
      %628 = vmatmul.f32.gmra.mxu0 %v500
      %v629 = vpop.f32.mrf.mxu0
      %v630 = vadd.f32 0.0, %v629
      %631 = vmatmul.f32.gmra.mxu0 %v503
      %v632 = vpop.f32.mrf.mxu0
      %v633 = vadd.f32 0.0, %v632
      %634 = vmatmul.f32.gmra.mxu0 %v506
      %v635 = vpop.f32.mrf.mxu0
      %v636 = vadd.f32 0.0, %v635
      %637 = vmatmul.f32.gmra.mxu0 %v509
      %v638 = vpop.f32.mrf.mxu0
      %v639 = vadd.f32 0.0, %v638
      %640 = vmatmul.f32.gmra.mxu0 %v512
      %v641 = vpop.f32.mrf.mxu0
      %v642 = vadd.f32 0.0, %v641
      %643 = vmatmul.f32.gmra.mxu0 %v515
      %v644 = vpop.f32.mrf.mxu0
      %v645 = vadd.f32 0.0, %v644
      %646 = vmatmul.f32.gmra.mxu0 %v518
      %v647 = vpop.f32.mrf.mxu0
      %v648 = vadd.f32 0.0, %v647
      %649 = vmatmul.f32.gmra.mxu0 %v521
      %v650 = vpop.f32.mrf.mxu0
      %v651 = vadd.f32 0.0, %v650
      %652 = vmatmul.f32.gmra.mxu0 %v524
      %v653 = vpop.f32.mrf.mxu0
      %v654 = vadd.f32 0.0, %v653
      %655 = vmatmul.f32.gmra.mxu0 %v527
      %v656 = vpop.f32.mrf.mxu0
      %v657 = vadd.f32 0.0, %v656
      %658 = vmatmul.f32.gmra.mxu0 %v530
      %v659 = vpop.f32.mrf.mxu0
      %v660 = vadd.f32 0.0, %v659
      %661 = vmatmul.f32.gmra.mxu0 %v533
      %v662 = vpop.f32.mrf.mxu0
      %v663 = vadd.f32 0.0, %v662
      %664 = vmatmul.f32.gmra.mxu0 %v536
      %v665 = vpop.f32.mrf.mxu0
      %v666 = vadd.f32 0.0, %v665
      %667 = vmatmul.f32.gmra.mxu0 %v539
      %v668 = vpop.f32.mrf.mxu0
      %v669 = vadd.f32 0.0, %v668
      %670 = vmatmul.f32.gmra.mxu0 %v542
      %v671 = vpop.f32.mrf.mxu0
      %v672 = vadd.f32 0.0, %v671
      %673 = vmatmul.f32.gmra.mxu0 %v545
      %v674 = vpop.f32.mrf.mxu0
      %v675 = vadd.f32 0.0, %v674
      %676 = vdwg.mxu0
      %v677 = vld [vmem:[%s349] sm:$0xff]
      %v678 = vld [vmem:[%s349 + $0x8] sm:$0xff]
      %v679 = vld [vmem:[%s349 + $0x10] sm:$0xff]
      %v680 = vld [vmem:[%s349 + $0x18] sm:$0xff]
      %v681 = vld [vmem:[%s349 + $0x20] sm:$0xff]
      %v682 = vld [vmem:[%s349 + $0x28] sm:$0xff]
      %v683 = vld [vmem:[%s349 + $0x30] sm:$0xff]
      %v684 = vld [vmem:[%s349 + $0x38] sm:$0xff]
      %v685 = vld [vmem:[%s349 + $0x40] sm:$0xff]
      %v686 = vld [vmem:[%s349 + $0x48] sm:$0xff]
      %v687 = vld [vmem:[%s349 + $0x50] sm:$0xff]
      %v688 = vld [vmem:[%s349 + $0x58] sm:$0xff]
      %v689 = vld [vmem:[%s349 + $0x60] sm:$0xff]
      %v690 = vld [vmem:[%s349 + $0x68] sm:$0xff]
      %v691 = vld [vmem:[%s349 + $0x70] sm:$0xff]
      %v692 = vld [vmem:[%s349 + $0x78] sm:$0xff]
      %v693 = vld [vmem:[%s349 + $0x80] sm:$0xff]
      %v694 = vld [vmem:[%s349 + $0x88] sm:$0xff]
      %v695 = vld [vmem:[%s349 + $0x90] sm:$0xff]
      %v696 = vld [vmem:[%s349 + $0x98] sm:$0xff]
      %v697 = vld [vmem:[%s349 + $0xa0] sm:$0xff]
      %v698 = vld [vmem:[%s349 + $0xa8] sm:$0xff]
      %v699 = vld [vmem:[%s349 + $0xb0] sm:$0xff]
      %v700 = vld [vmem:[%s349 + $0xb8] sm:$0xff]
      %v701 = vld [vmem:[%s349 + $0xc0] sm:$0xff]
      %v702 = vld [vmem:[%s349 + $0xc8] sm:$0xff]
      %v703 = vld [vmem:[%s349 + $0xd0] sm:$0xff]
      %v704 = vld [vmem:[%s349 + $0xd8] sm:$0xff]
      %v705 = vld [vmem:[%s349 + $0xe0] sm:$0xff]
      %v706 = vld [vmem:[%s349 + $0xe8] sm:$0xff]
      %v707 = vld [vmem:[%s349 + $0xf0] sm:$0xff]
      %v708 = vld [vmem:[%s349 + $0xf8] sm:$0xff]
      %v709 = vadd.f32 %v677, %v565
      %v710 = vadd.f32 %v678, %v630
      %v711 = vadd.f32 %v679, %v568
      %v712 = vadd.f32 %v680, %v633
      %v713 = vadd.f32 %v681, %v571
      %v714 = vadd.f32 %v682, %v636
      %v715 = vadd.f32 %v683, %v574
      %v716 = vadd.f32 %v684, %v639
      %v717 = vadd.f32 %v685, %v577
      %v718 = vadd.f32 %v686, %v642
      %v719 = vadd.f32 %v687, %v580
      %v720 = vadd.f32 %v688, %v645
      %v721 = vadd.f32 %v689, %v583
      %v722 = vadd.f32 %v690, %v648
      %v723 = vadd.f32 %v691, %v586
      %v724 = vadd.f32 %v692, %v651
      %v725 = vadd.f32 %v693, %v589
      %v726 = vadd.f32 %v694, %v654
      %v727 = vadd.f32 %v695, %v592
      %v728 = vadd.f32 %v696, %v657
      %v729 = vadd.f32 %v697, %v595
      %v730 = vadd.f32 %v698, %v660
      %v731 = vadd.f32 %v699, %v598
      %v732 = vadd.f32 %v700, %v663
      %v733 = vadd.f32 %v701, %v601
      %v734 = vadd.f32 %v702, %v666
      %v735 = vadd.f32 %v703, %v604
      %v736 = vadd.f32 %v704, %v669
      %v737 = vadd.f32 %v705, %v607
      %v738 = vadd.f32 %v706, %v672
      %v739 = vadd.f32 %v707, %v610
      %v740 = vadd.f32 %v708, %v675
      %741 = vst [vmem:[%s349] sm:$0xff] %v709
      %742 = vst.msk [vmem:[%s349 + $0x8] sm:$0xff] %vm498, %v710
      %743 = vst [vmem:[%s349 + $0x10] sm:$0xff] %v711
      %744 = vst.msk [vmem:[%s349 + $0x18] sm:$0xff] %vm498, %v712
      %745 = vst [vmem:[%s349 + $0x20] sm:$0xff] %v713
      %746 = vst.msk [vmem:[%s349 + $0x28] sm:$0xff] %vm498, %v714
      %747 = vst [vmem:[%s349 + $0x30] sm:$0xff] %v715
      %748 = vst.msk [vmem:[%s349 + $0x38] sm:$0xff] %vm498, %v716
      %749 = vst [vmem:[%s349 + $0x40] sm:$0xff] %v717
      %750 = vst.msk [vmem:[%s349 + $0x48] sm:$0xff] %vm498, %v718
      %751 = vst [vmem:[%s349 + $0x50] sm:$0xff] %v719
      %752 = vst.msk [vmem:[%s349 + $0x58] sm:$0xff] %vm498, %v720
      %753 = vst [vmem:[%s349 + $0x60] sm:$0xff] %v721
      %754 = vst.msk [vmem:[%s349 + $0x68] sm:$0xff] %vm498, %v722
      %755 = vst [vmem:[%s349 + $0x70] sm:$0xff] %v723
      %756 = vst.msk [vmem:[%s349 + $0x78] sm:$0xff] %vm498, %v724
      %757 = vst [vmem:[%s349 + $0x80] sm:$0xff] %v725
      %758 = vst.msk [vmem:[%s349 + $0x88] sm:$0xff] %vm498, %v726
      %759 = vst [vmem:[%s349 + $0x90] sm:$0xff] %v727
      %760 = vst.msk [vmem:[%s349 + $0x98] sm:$0xff] %vm498, %v728
      %761 = vst [vmem:[%s349 + $0xa0] sm:$0xff] %v729
      %762 = vst.msk [vmem:[%s349 + $0xa8] sm:$0xff] %vm498, %v730
      %763 = vst [vmem:[%s349 + $0xb0] sm:$0xff] %v731
      %764 = vst.msk [vmem:[%s349 + $0xb8] sm:$0xff] %vm498, %v732
      %765 = vst [vmem:[%s349 + $0xc0] sm:$0xff] %v733
      %766 = vst.msk [vmem:[%s349 + $0xc8] sm:$0xff] %vm498, %v734
      %767 = vst [vmem:[%s349 + $0xd0] sm:$0xff] %v735
      %768 = vst.msk [vmem:[%s349 + $0xd8] sm:$0xff] %vm498, %v736
      %769 = vst [vmem:[%s349 + $0xe0] sm:$0xff] %v737
      %770 = vst.msk [vmem:[%s349 + $0xe8] sm:$0xff] %vm498, %v738
      %771 = vst [vmem:[%s349 + $0xf0] sm:$0xff] %v739
      %772 = vst.msk [vmem:[%s349 + $0xf8] sm:$0xff] %vm498, %v740
      %773 = vmatpush.msra.mxu0 %v464
      %774 = vmatpush.msra.mxu0 %v462
      %775 = vmatpush.msra.mxu0 %v460
      %776 = vmatpush.msra.mxu0 %v458
      %777 = vmatpush.msra.mxu0 %v456
      %778 = vmatpush.msra.mxu0 %v454
      %779 = vmatpush.msra.mxu0 %v452
      %780 = vmatpush.msra.mxu0 %v450
      %781 = vmatpush.msra.mxu0 %v448
      %782 = vmatpush.msra.mxu0 %v446
      %783 = vmatpush.msra.mxu0 %v444
      %784 = vmatpush.msra.mxu0 %v442
      %785 = vmatpush.msra.mxu0 %v440
      %786 = vmatpush.msra.mxu0 %v438
      %787 = vmatpush.msra.mxu0 %v436
      %788 = vmatpush.msra.mxu0 %v434
      %789 = vmatmul.f32.gmra.mxu0 %v410
      %v790 = vpop.f32.mrf.mxu0
      %v791 = vadd.f32 0.0, %v790
      %792 = vmatmul.f32.gmra.mxu0 %v411
      %v793 = vpop.f32.mrf.mxu0
      %v794 = vadd.f32 0.0, %v793
      %795 = vmatmul.f32.gmra.mxu0 %v412
      %v796 = vpop.f32.mrf.mxu0
      %v797 = vadd.f32 0.0, %v796
      %798 = vmatmul.f32.gmra.mxu0 %v413
      %v799 = vpop.f32.mrf.mxu0
      %v800 = vadd.f32 0.0, %v799
      %801 = vmatmul.f32.gmra.mxu0 %v414
      %v802 = vpop.f32.mrf.mxu0
      %v803 = vadd.f32 0.0, %v802
      %804 = vmatmul.f32.gmra.mxu0 %v415
      %v805 = vpop.f32.mrf.mxu0
      %v806 = vadd.f32 0.0, %v805
      %807 = vmatmul.f32.gmra.mxu0 %v416
      %v808 = vpop.f32.mrf.mxu0
      %v809 = vadd.f32 0.0, %v808
      %810 = vmatmul.f32.gmra.mxu0 %v417
      %v811 = vpop.f32.mrf.mxu0
      %v812 = vadd.f32 0.0, %v811
      %813 = vdwg.mxu0
      %814 = vmatpush.msra.mxu0 %v465
      %815 = vmatpush.msra.mxu0 %v463
      %816 = vmatpush.msra.mxu0 %v461
      %817 = vmatpush.msra.mxu0 %v459
      %818 = vmatpush.msra.mxu0 %v457
      %819 = vmatpush.msra.mxu0 %v455
      %820 = vmatpush.msra.mxu0 %v453
      %821 = vmatpush.msra.mxu0 %v451
      %822 = vmatpush.msra.mxu0 %v449
      %823 = vmatpush.msra.mxu0 %v447
      %824 = vmatpush.msra.mxu0 %v445
      %825 = vmatpush.msra.mxu0 %v443
      %826 = vmatpush.msra.mxu0 %v441
      %827 = vmatpush.msra.mxu0 %v439
      %828 = vmatpush.msra.mxu0 %v437
      %829 = vmatpush.msra.mxu0 %v435
      %830 = vmatmul.f32.gmra.mxu0 %v410
      %v831 = vpop.f32.mrf.mxu0
      %v832 = vadd.f32 0.0, %v831
      %833 = vmatmul.f32.gmra.mxu0 %v411
      %v834 = vpop.f32.mrf.mxu0
      %v835 = vadd.f32 0.0, %v834
      %836 = vmatmul.f32.gmra.mxu0 %v412
      %v837 = vpop.f32.mrf.mxu0
      %v838 = vadd.f32 0.0, %v837
      %839 = vmatmul.f32.gmra.mxu0 %v413
      %v840 = vpop.f32.mrf.mxu0
      %v841 = vadd.f32 0.0, %v840
      %842 = vmatmul.f32.gmra.mxu0 %v414
      %v843 = vpop.f32.mrf.mxu0
      %v844 = vadd.f32 0.0, %v843
      %845 = vmatmul.f32.gmra.mxu0 %v415
      %v846 = vpop.f32.mrf.mxu0
      %v847 = vadd.f32 0.0, %v846
      %848 = vmatmul.f32.gmra.mxu0 %v416
      %v849 = vpop.f32.mrf.mxu0
      %v850 = vadd.f32 0.0, %v849
      %851 = vmatmul.f32.gmra.mxu0 %v417
      %v852 = vpop.f32.mrf.mxu0
      %v853 = vadd.f32 0.0, %v852
      %854 = vdwg.mxu0
      %v855 = vadd.f32 %v418, %v791
      %v856 = vadd.f32 %v419, %v832
      %v857 = vadd.f32 %v420, %v794
      %v858 = vadd.f32 %v421, %v835
      %v859 = vadd.f32 %v422, %v797
      %v860 = vadd.f32 %v423, %v838
      %v861 = vadd.f32 %v424, %v800
      %v862 = vadd.f32 %v425, %v841
      %v863 = vadd.f32 %v426, %v803
      %v864 = vadd.f32 %v427, %v844
      %v865 = vadd.f32 %v428, %v806
      %v866 = vadd.f32 %v429, %v847
      %v867 = vadd.f32 %v430, %v809
      %v868 = vadd.f32 %v431, %v850
      %v869 = vadd.f32 %v432, %v812
      %v870 = vadd.f32 %v433, %v853
      %871 = vst [vmem:[%s344] sm:$0xff] %v855
      %872 = vst.msk [vmem:[%s344 + $0x8] sm:$0xff] %vm498, %v856
      %873 = vst [vmem:[%s344 + $0x10] sm:$0xff] %v857
      %874 = vst.msk [vmem:[%s344 + $0x18] sm:$0xff] %vm498, %v858
      %875 = vst [vmem:[%s344 + $0x20] sm:$0xff] %v859
      %876 = vst.msk [vmem:[%s344 + $0x28] sm:$0xff] %vm498, %v860
      %877 = vst [vmem:[%s344 + $0x30] sm:$0xff] %v861
      %878 = vst.msk [vmem:[%s344 + $0x38] sm:$0xff] %vm498, %v862
      %879 = vst [vmem:[%s344 + $0x40] sm:$0xff] %v863
      %880 = vst.msk [vmem:[%s344 + $0x48] sm:$0xff] %vm498, %v864
      %881 = vst [vmem:[%s344 + $0x50] sm:$0xff] %v865
      %882 = vst.msk [vmem:[%s344 + $0x58] sm:$0xff] %vm498, %v866
      %883 = vst [vmem:[%s344 + $0x60] sm:$0xff] %v867
      %884 = vst.msk [vmem:[%s344 + $0x68] sm:$0xff] %vm498, %v868
      %885 = vst [vmem:[%s344 + $0x70] sm:$0xff] %v869
      %886 = vst.msk [vmem:[%s344 + $0x78] sm:$0xff] %vm498, %v870
      %p887 = scmp.lt.s32.totalorder %s21, 0
      %s888 = scalar_select %p887, %s21, 0
      %p889 = scmp.lt.s32.totalorder %s22, 1
      %s890 = scalar_select %p889, %s22, 1
      %s891 = smul.addr %s890, 16
      %s892 = smul.addr %s888, 32
      %s893 = sadd.s32 %s891, %s892
      %s894 = smul.addr %s893, 8
      %s895 = scalar_lea.vmem %s4, %s894
      %p896 = scmp.lt.s32.totalorder %s21, 0
      %s897 = scalar_select %p896, %s21, 0
      %s898 = smul.addr %s897, 32
      %s899 = smul.addr %s898, 8
      %s900 = scalar_lea.vmem %s5, %s899
      // Predicated region
      $region41: #{_forward_impl.9} parent=35 // pred_check
        %p901 = pneg %p159
      $region42: #{_forward_impl.9} parent=35 // pred_check_branch
        %903 = sbr.rel (%p901) target = $region44
      $region43: #{_forward_impl.9} parent=35 // pred_region
        _
      $region44: #{_forward_impl.9} parent=35 // pred_fallthru
        _
      // Predicated region
      $region45: #{_forward_impl.9} parent=35 // pred_check
        %p904 = pneg %p185
      $region46: #{_forward_impl.9} parent=35 // pred_check_branch
        %906 = sbr.rel (%p904) target = $region48
      $region47: #{_forward_impl.9} parent=35 // pred_region
        _
      $region48: #{_forward_impl.9} parent=35 // pred_fallthru
        _
      // Predicated region
      $region49: #{_forward_impl.9} parent=35 // pred_check
        %p907 = pneg %p185
      $region50: #{_forward_impl.9} parent=35 // pred_check_branch
        %909 = sbr.rel (%p907) target = $region52
      $region51: #{_forward_impl.9} parent=35 // pred_region
        %p910 = scmp.lt.s32.totalorder %s21, 0
        %s911 = scalar_select %p910, %s21, 0
        %s912 = smul.addr %s911, 32
        %s913 = smul.addr %s912, 8
        %s914 = scalar_lea.vmem %s5, %s913
      $region52: #{_forward_impl.9} parent=35 // pred_fallthru
        _
    $region36: #{_forward_impl.9} parent=5 // pred_fallthru
      _
    %p915 = scmp.le.s32.totalorder 2, %s12
    // Predicated region
    $region53: #{_forward_impl.9} parent=5 // pred_check
      %p916 = pneg %p915
    $region54: #{_forward_impl.9} parent=5 // pred_check_branch
      %918 = sbr.rel (%p916) target = $region56
    $region55: #{_forward_impl.9} parent=5 // pred_region
      %s919 = ssub.s32 %s12, 2
      // Predicated region
      $region57: #{_forward_impl.9} parent=55 // pred_check
        %p920 = pneg %p165
      $region58: #{_forward_impl.9} parent=55 // pred_check_branch
        %922 = sbr.rel (%p920) target = $region60
      $region59: #{_forward_impl.9} parent=55 // pred_region
        %p923 = scmp.lt.s32.totalorder %s23, 0
        %s924 = scalar_select %p923, %s23, 0
        %p925 = scmp.lt.s32.totalorder %s24, 1
        %s926 = scalar_select %p925, %s24, 1
        %s927 = smul.addr %s926, 16
        %s928 = smul.addr %s924, 32
        %s929 = sadd.s32 %s927, %s928
        %s930 = smul.addr %s929, 8
        %s931 = scalar_lea.vmem %s4, %s930
      $region60: #{_forward_impl.9} parent=55 // pred_fallthru
        _
    $region56: #{_forward_impl.9} parent=5 // pred_fallthru
      _
  $region6: #{_forward_impl.9} parent=0 // loop_footer
    %s16 = sadd.s32 1, %s12
  $region7: #{_forward_impl.9} parent=0 // loop_footer_branch
    %11 = sbr.rel target = $region3
  $region8: #{_forward_impl.9} parent=0 // loop_exit
    _

// kernel: _forward_impl.11
$region0: #{_forward_impl.11}
  #allocation0 [shape = 'u32[]', space=smem, size = 0x4, offset = 0x4, fixed_abs, tag = 'smem constant byte address 0x4 - core index']
  #allocation1 [shape = 'u32[72,128]{1,0:T(1,128)}', space=vmem, size = 0x9000, scoped, tag = 'internal scratch']
  %s0 = inlined_call_operand.vmem [shape: f32[128,192], index: 0, kind: input, shape index: {}]
  %s1 = inlined_call_operand.vmem [shape: bf16[192,192], index: 1, kind: input, shape index: {}]
  %s2 = inlined_call_operand.vmem [shape: f32[1,192], index: 2, kind: input, shape index: {}]
  %s3 = inlined_call_operand.hbm [shape: f32[128,192], index: 3, kind: output, shape index: {}]
  %s4 = sld [smem:[#allocation0]]
  $region22: #{_forward_impl.11} parent=0
    _
  %s6 = ssub.s32 1, %s4
  %s7 = scalar_select 0, %s6, %s4
  $region1: #{_forward_impl.11} parent=0
    #allocation2 [shape = 'u8[131072]{0}', space=vmem, size = 0x20000, scoped, tag = 'output window, operand 0, single buffered']
    #allocation3 [shape = 's32[1]{0}', space=sflag, size = 0x4, scoped, tag = 'scoped memory for _forward_impl.11']
    %8 = vsyncpa [#allocation3], 0
    // Predicated region
    $region2: #{_forward_impl.11} parent=1 // pred_check
      _
    $region3: #{_forward_impl.11} parent=1 // pred_check_branch
      %10 = sbr.rel (0) target = $region5
    $region4: #{_forward_impl.11} parent=1 // pred_region
      _
    $region5: #{_forward_impl.11} parent=1 // pred_fallthru
      _
    // Predicated region
    $region6: #{_forward_impl.11} parent=1 // pred_check
      _
    $region7: #{_forward_impl.11} parent=1 // pred_check_branch
      %12 = sbr.rel (0) target = $region9
    $region8: #{_forward_impl.11} parent=1 // pred_region
      _
    $region9: #{_forward_impl.11} parent=1 // pred_fallthru
      _
    // Predicated region
    $region10: #{_forward_impl.11} parent=1 // pred_check
      _
    $region11: #{_forward_impl.11} parent=1 // pred_check_branch
      %14 = sbr.rel (0) target = $region13
    $region12: #{_forward_impl.11} parent=1 // pred_region
      _
    $region13: #{_forward_impl.11} parent=1 // pred_fallthru
      _
    %v16 = vld [vmem:[%s0] sm:$0xff]
    %v17 = vld [vmem:[%s0 + $0x8] sm:$0xff]
    %v18 = vld [vmem:[%s0 + $0x10] sm:$0xff]
    %v19 = vld [vmem:[%s0 + $0x18] sm:$0xff]
    %v20 = vld [vmem:[%s0 + $0x20] sm:$0xff]
    %v21 = vld [vmem:[%s0 + $0x28] sm:$0xff]
    %v22 = vld [vmem:[%s0 + $0x30] sm:$0xff]
    %v23 = vld [vmem:[%s0 + $0x38] sm:$0xff]
    %v24 = vld [vmem:[%s0 + $0x40] sm:$0xff]
    %v25 = vld [vmem:[%s0 + $0x48] sm:$0xff]
    %v26 = vld [vmem:[%s0 + $0x50] sm:$0xff]
    %v27 = vld [vmem:[%s0 + $0x58] sm:$0xff]
    %v28 = vld [vmem:[%s0 + $0x60] sm:$0xff]
    %v29 = vld [vmem:[%s0 + $0x68] sm:$0xff]
    %v30 = vld [vmem:[%s0 + $0x70] sm:$0xff]
    %v31 = vld [vmem:[%s0 + $0x78] sm:$0xff]
    %v32 = vld [vmem:[%s0 + $0x80] sm:$0xff]
    %v33 = vld [vmem:[%s0 + $0x88] sm:$0xff]
    %v34 = vld [vmem:[%s0 + $0x90] sm:$0xff]
    %v35 = vld [vmem:[%s0 + $0x98] sm:$0xff]
    %v36 = vld [vmem:[%s0 + $0xa0] sm:$0xff]
    %v37 = vld [vmem:[%s0 + $0xa8] sm:$0xff]
    %v38 = vld [vmem:[%s0 + $0xb0] sm:$0xff]
    %v39 = vld [vmem:[%s0 + $0xb8] sm:$0xff]
    %v40 = vld [vmem:[%s0 + $0xc0] sm:$0xff]
    %v41 = vld [vmem:[%s0 + $0xc8] sm:$0xff]
    %v42 = vld [vmem:[%s0 + $0xd0] sm:$0xff]
    %v43 = vld [vmem:[%s0 + $0xd8] sm:$0xff]
    %v44 = vld [vmem:[%s0 + $0xe0] sm:$0xff]
    %v45 = vld [vmem:[%s0 + $0xe8] sm:$0xff]
    %v46 = vld [vmem:[%s0 + $0xf0] sm:$0xff]
    %v47 = vld [vmem:[%s0 + $0xf8] sm:$0xff]
    %v48 = vld [vmem:[%s1] sm:$0xff]
    %v49 = vld [vmem:[%s1 + $0x8] sm:$0xff]
    %v50 = vld [vmem:[%s1 + $0x10] sm:$0xff]
    %v51 = vld [vmem:[%s1 + $0x18] sm:$0xff]
    %v52 = vld [vmem:[%s1 + $0x20] sm:$0xff]
    %v53 = vld [vmem:[%s1 + $0x28] sm:$0xff]
    %v54 = vld [vmem:[%s1 + $0x30] sm:$0xff]
    %v55 = vld [vmem:[%s1 + $0x38] sm:$0xff]
    %v56 = vld [vmem:[%s1 + $0x40] sm:$0xff]
    %v57 = vld [vmem:[%s1 + $0x48] sm:$0xff]
    %v58 = vld [vmem:[%s1 + $0x50] sm:$0xff]
    %v59 = vld [vmem:[%s1 + $0x58] sm:$0xff]
    %v60 = vld [vmem:[%s1 + $0x60] sm:$0xff]
    %v61 = vld [vmem:[%s1 + $0x68] sm:$0xff]
    %v62 = vld [vmem:[%s1 + $0x70] sm:$0xff]
    %v63 = vld [vmem:[%s1 + $0x78] sm:$0xff]
    %v64 = vld [vmem:[%s1 + $0x80] sm:$0xff]
    %v65 = vld [vmem:[%s1 + $0x88] sm:$0xff]
    %v66 = vld [vmem:[%s1 + $0x90] sm:$0xff]
    %v67 = vld [vmem:[%s1 + $0x98] sm:$0xff]
    %v68 = vld [vmem:[%s1 + $0xa0] sm:$0xff]
    %v69 = vld [vmem:[%s1 + $0xa8] sm:$0xff]
    %v70 = vld [vmem:[%s1 + $0xb0] sm:$0xff]
    %v71 = vld [vmem:[%s1 + $0xb8] sm:$0xff]
    %v72 = vpack.c.bf16 %v18, %v16
    %v73 = vpack.c.bf16 %v19, %v17
    %v74 = vpack.c.bf16 %v22, %v20
    %v75 = vpack.c.bf16 %v23, %v21
    %v76 = vpack.c.bf16 %v26, %v24
    %v77 = vpack.c.bf16 %v27, %v25
    %v78 = vpack.c.bf16 %v30, %v28
    %v79 = vpack.c.bf16 %v31, %v29
    %v80 = vpack.c.bf16 %v34, %v32
    %v81 = vpack.c.bf16 %v35, %v33
    %v82 = vpack.c.bf16 %v38, %v36
    %v83 = vpack.c.bf16 %v39, %v37
    %v84 = vpack.c.bf16 %v42, %v40
    %v85 = vpack.c.bf16 %v43, %v41
    %v86 = vpack.c.bf16 %v46, %v44
    %v87 = vpack.c.bf16 %v47, %v45
    %v88 = vld [vmem:[%s2] sm:$0x3]
    %v90 = vperm.slane %v88, 0
    %v91 = vperm.slane %v88, 1
    %v118 = vunpack.c.l.b16 %v48
    %v119 = vunpack.c.h.b16 %v48
    %v120 = vunpack.c.l.b16 %v49
    %v121 = vunpack.c.h.b16 %v49
    %v122 = vunpack.c.l.b16 %v50
    %v123 = vunpack.c.h.b16 %v50
    %v124 = vunpack.c.l.b16 %v51
    %v125 = vunpack.c.h.b16 %v51
    %v126 = vunpack.c.l.b16 %v52
    %v127 = vunpack.c.h.b16 %v52
    %v128 = vunpack.c.l.b16 %v53
    %v129 = vunpack.c.h.b16 %v53
    %v130 = vunpack.c.l.b16 %v54
    %v131 = vunpack.c.h.b16 %v54
    %v132 = vunpack.c.l.b16 %v55
    %v133 = vunpack.c.h.b16 %v55
    %v134 = vunpack.c.l.b16 %v56
    %v135 = vunpack.c.h.b16 %v56
    %v136 = vunpack.c.l.b16 %v57
    %v137 = vunpack.c.h.b16 %v57
    %v138 = vunpack.c.l.b16 %v58
    %v139 = vunpack.c.h.b16 %v58
    %v140 = vunpack.c.l.b16 %v59
    %v141 = vunpack.c.h.b16 %v59
    %v142 = vunpack.c.l.b16 %v60
    %v143 = vunpack.c.h.b16 %v60
    %v144 = vunpack.c.l.b16 %v61
    %v145 = vunpack.c.h.b16 %v61
    %v146 = vunpack.c.l.b16 %v62
    %v147 = vunpack.c.h.b16 %v62
    %v148 = vunpack.c.l.b16 %v63
    %v149 = vunpack.c.h.b16 %v63
    %v150 = vunpack.c.l.b16 %v64
    %v151 = vunpack.c.h.b16 %v64
    %v152 = vunpack.c.l.b16 %v65
    %v153 = vunpack.c.h.b16 %v65
    %v154 = vunpack.c.l.b16 %v66
    %v155 = vunpack.c.h.b16 %v66
    %v156 = vunpack.c.l.b16 %v67
    %v157 = vunpack.c.h.b16 %v67
    %v158 = vunpack.c.l.b16 %v68
    %v159 = vunpack.c.h.b16 %v68
    %v160 = vunpack.c.l.b16 %v69
    %v161 = vunpack.c.h.b16 %v69
    %v162 = vunpack.c.l.b16 %v70
    %v163 = vunpack.c.h.b16 %v70
    %v164 = vunpack.c.l.b16 %v71
    %v165 = vunpack.c.h.b16 %v71
    %v166 = vpack.c.b16 %v120, %v118
    %v167 = vpack.c.b16 %v121, %v119
    %v168 = vpack.c.b16 %v124, %v122
    %v169 = vpack.c.b16 %v125, %v123
    %v170 = vpack.c.b16 %v128, %v126
    %v171 = vpack.c.b16 %v129, %v127
    %v172 = vpack.c.b16 %v132, %v130
    %v173 = vpack.c.b16 %v133, %v131
    %v174 = vpack.c.b16 %v136, %v134
    %v175 = vpack.c.b16 %v137, %v135
    %v176 = vpack.c.b16 %v140, %v138
    %v177 = vpack.c.b16 %v141, %v139
    %v178 = vpack.c.b16 %v144, %v142
    %v179 = vpack.c.b16 %v145, %v143
    %v180 = vpack.c.b16 %v148, %v146
    %v181 = vpack.c.b16 %v149, %v147
    %v182 = vpack.c.b16 %v152, %v150
    %v183 = vpack.c.b16 %v153, %v151
    %v184 = vpack.c.b16 %v156, %v154
    %v185 = vpack.c.b16 %v157, %v155
    %v186 = vpack.c.b16 %v160, %v158
    %v187 = vpack.c.b16 %v161, %v159
    %v188 = vpack.c.b16 %v164, %v162
    %v189 = vpack.c.b16 %v165, %v163
    %vm214 = vcmask 523264
    %v216 = vsel %vm214, %v73, 0
    %v219 = vsel %vm214, %v75, 0
    %v222 = vsel %vm214, %v77, 0
    %v225 = vsel %vm214, %v79, 0
    %v228 = vsel %vm214, %v81, 0
    %v231 = vsel %vm214, %v83, 0
    %v234 = vsel %vm214, %v85, 0
    %v237 = vsel %vm214, %v87, 0
    %239 = vmatpush.bf16.msra.mxu0 %v180
    %240 = vmatpush.bf16.msra.mxu0 %v178
    %241 = vmatpush.bf16.msra.mxu0 %v176
    %242 = vmatpush.bf16.msra.mxu0 %v174
    %243 = vmatpush.bf16.msra.mxu0 %v172
    %244 = vmatpush.bf16.msra.mxu0 %v170
    %245 = vmatpush.bf16.msra.mxu0 %v168
    %246 = vmatpush.bf16.msra.mxu0 %v166
    %247 = vmatmul.bf16.gmra.mxu0 %v72
    %v248 = vpop.f32.mrf.mxu0
    %v249 = vadd.f32 %v90, %v248
    %v250 = vpop.f32.mrf.mxu0
    %v251 = vadd.f32 %v90, %v250
    %252 = vmatmul.bf16.gmra.mxu0 %v74
    %v253 = vpop.f32.mrf.mxu0
    %v254 = vadd.f32 %v90, %v253
    %v255 = vpop.f32.mrf.mxu0
    %v256 = vadd.f32 %v90, %v255
    %257 = vmatmul.bf16.gmra.mxu0 %v76
    %v258 = vpop.f32.mrf.mxu0
    %v259 = vadd.f32 %v90, %v258
    %v260 = vpop.f32.mrf.mxu0
    %v261 = vadd.f32 %v90, %v260
    %262 = vmatmul.bf16.gmra.mxu0 %v78
    %v263 = vpop.f32.mrf.mxu0
    %v264 = vadd.f32 %v90, %v263
    %v265 = vpop.f32.mrf.mxu0
    %v266 = vadd.f32 %v90, %v265
    %267 = vmatmul.bf16.gmra.mxu0 %v80
    %v268 = vpop.f32.mrf.mxu0
    %v269 = vadd.f32 %v90, %v268
    %v270 = vpop.f32.mrf.mxu0
    %v271 = vadd.f32 %v90, %v270
    %272 = vmatmul.bf16.gmra.mxu0 %v82
    %v273 = vpop.f32.mrf.mxu0
    %v274 = vadd.f32 %v90, %v273
    %v275 = vpop.f32.mrf.mxu0
    %v276 = vadd.f32 %v90, %v275
    %277 = vmatmul.bf16.gmra.mxu0 %v84
    %v278 = vpop.f32.mrf.mxu0
    %v279 = vadd.f32 %v90, %v278
    %v280 = vpop.f32.mrf.mxu0
    %v281 = vadd.f32 %v90, %v280
    %282 = vmatmul.bf16.gmra.mxu0 %v86
    %v283 = vpop.f32.mrf.mxu0
    %v284 = vadd.f32 %v90, %v283
    %v285 = vpop.f32.mrf.mxu0
    %v286 = vadd.f32 %v90, %v285
    %287 = vdwg.mxu0
    %288 = vmatpush.bf16.msra.mxu0 0
    %289 = vmatpush.bf16.msra.mxu0 0
    %290 = vmatpush.bf16.msra.mxu0 0
    %291 = vmatpush.bf16.msra.mxu0 0
    %292 = vmatpush.bf16.msra.mxu0 %v188
    %293 = vmatpush.bf16.msra.mxu0 %v186
    %294 = vmatpush.bf16.msra.mxu0 %v184
    %295 = vmatpush.bf16.msra.mxu0 %v182
    %296 = vmatmul.bf16.gmra.mxu0 %v216
    %v297 = vpop.f32.mrf.mxu0
    %v298 = vadd.f32 %v249, %v297
    %v299 = vpop.f32.mrf.mxu0
    %v300 = vadd.f32 %v251, %v299
    %301 = vmatmul.bf16.gmra.mxu0 %v219
    %v302 = vpop.f32.mrf.mxu0
    %v303 = vadd.f32 %v254, %v302
    %v304 = vpop.f32.mrf.mxu0
    %v305 = vadd.f32 %v256, %v304
    %306 = vmatmul.bf16.gmra.mxu0 %v222
    %v307 = vpop.f32.mrf.mxu0
    %v308 = vadd.f32 %v259, %v307
    %v309 = vpop.f32.mrf.mxu0
    %v310 = vadd.f32 %v261, %v309
    %311 = vmatmul.bf16.gmra.mxu0 %v225
    %v312 = vpop.f32.mrf.mxu0
    %v313 = vadd.f32 %v264, %v312
    %v314 = vpop.f32.mrf.mxu0
    %v315 = vadd.f32 %v266, %v314
    %316 = vmatmul.bf16.gmra.mxu0 %v228
    %v317 = vpop.f32.mrf.mxu0
    %v318 = vadd.f32 %v269, %v317
    %v319 = vpop.f32.mrf.mxu0
    %v320 = vadd.f32 %v271, %v319
    %321 = vmatmul.bf16.gmra.mxu0 %v231
    %v322 = vpop.f32.mrf.mxu0
    %v323 = vadd.f32 %v274, %v322
    %v324 = vpop.f32.mrf.mxu0
    %v325 = vadd.f32 %v276, %v324
    %326 = vmatmul.bf16.gmra.mxu0 %v234
    %v327 = vpop.f32.mrf.mxu0
    %v328 = vadd.f32 %v279, %v327
    %v329 = vpop.f32.mrf.mxu0
    %v330 = vadd.f32 %v281, %v329
    %331 = vmatmul.bf16.gmra.mxu0 %v237
    %v332 = vpop.f32.mrf.mxu0
    %v333 = vadd.f32 %v284, %v332
    %v334 = vpop.f32.mrf.mxu0
    %v335 = vadd.f32 %v286, %v334
    %336 = vdwg.mxu0
    %337 = vmatpush.bf16.msra.mxu0 %v181
    %338 = vmatpush.bf16.msra.mxu0 %v179
    %339 = vmatpush.bf16.msra.mxu0 %v177
    %340 = vmatpush.bf16.msra.mxu0 %v175
    %341 = vmatpush.bf16.msra.mxu0 %v173
    %342 = vmatpush.bf16.msra.mxu0 %v171
    %343 = vmatpush.bf16.msra.mxu0 %v169
    %344 = vmatpush.bf16.msra.mxu0 %v167
    %345 = vmatmul.bf16.gmra.mxu0 %v72
    %v346 = vpop.f32.mrf.mxu0
    %v347 = vadd.f32 %v91, %v346
    %v348 = vpop.f32.mrf.mxu0
    %v349 = vadd.f32 %v91, %v348
    %350 = vmatmul.bf16.gmra.mxu0 %v74
    %v351 = vpop.f32.mrf.mxu0
    %v352 = vadd.f32 %v91, %v351
    %v353 = vpop.f32.mrf.mxu0
    %v354 = vadd.f32 %v91, %v353
    %355 = vmatmul.bf16.gmra.mxu0 %v76
    %v356 = vpop.f32.mrf.mxu0
    %v357 = vadd.f32 %v91, %v356
    %v358 = vpop.f32.mrf.mxu0
    %v359 = vadd.f32 %v91, %v358
    %360 = vmatmul.bf16.gmra.mxu0 %v78
    %v361 = vpop.f32.mrf.mxu0
    %v362 = vadd.f32 %v91, %v361
    %v363 = vpop.f32.mrf.mxu0
    %v364 = vadd.f32 %v91, %v363
    %365 = vmatmul.bf16.gmra.mxu0 %v80
    %v366 = vpop.f32.mrf.mxu0
    %v367 = vadd.f32 %v91, %v366
    %v368 = vpop.f32.mrf.mxu0
    %v369 = vadd.f32 %v91, %v368
    %370 = vmatmul.bf16.gmra.mxu0 %v82
    %v371 = vpop.f32.mrf.mxu0
    %v372 = vadd.f32 %v91, %v371
    %v373 = vpop.f32.mrf.mxu0
    %v374 = vadd.f32 %v91, %v373
    %375 = vmatmul.bf16.gmra.mxu0 %v84
    %v376 = vpop.f32.mrf.mxu0
    %v377 = vadd.f32 %v91, %v376
    %v378 = vpop.f32.mrf.mxu0
    %v379 = vadd.f32 %v91, %v378
    %380 = vmatmul.bf16.gmra.mxu0 %v86
    %v381 = vpop.f32.mrf.mxu0
    %v382 = vadd.f32 %v91, %v381
    %v383 = vpop.f32.mrf.mxu0
    %v384 = vadd.f32 %v91, %v383
    %385 = vdwg.mxu0
    %386 = vmatpush.bf16.msra.mxu0 0
    %387 = vmatpush.bf16.msra.mxu0 0
    %388 = vmatpush.bf16.msra.mxu0 0
    %389 = vmatpush.bf16.msra.mxu0 0
    %390 = vmatpush.bf16.msra.mxu0 %v189
    %391 = vmatpush.bf16.msra.mxu0 %v187
    %392 = vmatpush.bf16.msra.mxu0 %v185
    %393 = vmatpush.bf16.msra.mxu0 %v183
    %394 = vmatmul.bf16.gmra.mxu0 %v216
    %v395 = vpop.f32.mrf.mxu0
    %v396 = vadd.f32 %v347, %v395
    %v397 = vpop.f32.mrf.mxu0
    %v398 = vadd.f32 %v349, %v397
    %399 = vmatmul.bf16.gmra.mxu0 %v219
    %v400 = vpop.f32.mrf.mxu0
    %v401 = vadd.f32 %v352, %v400
    %v402 = vpop.f32.mrf.mxu0
    %v403 = vadd.f32 %v354, %v402
    %404 = vmatmul.bf16.gmra.mxu0 %v222
    %v405 = vpop.f32.mrf.mxu0
    %v406 = vadd.f32 %v357, %v405
    %v407 = vpop.f32.mrf.mxu0
    %v408 = vadd.f32 %v359, %v407
    %409 = vmatmul.bf16.gmra.mxu0 %v225
    %v410 = vpop.f32.mrf.mxu0
    %v411 = vadd.f32 %v362, %v410
    %v412 = vpop.f32.mrf.mxu0
    %v413 = vadd.f32 %v364, %v412
    %414 = vmatmul.bf16.gmra.mxu0 %v228
    %v415 = vpop.f32.mrf.mxu0
    %v416 = vadd.f32 %v367, %v415
    %v417 = vpop.f32.mrf.mxu0
    %v418 = vadd.f32 %v369, %v417
    %419 = vmatmul.bf16.gmra.mxu0 %v231
    %v420 = vpop.f32.mrf.mxu0
    %v421 = vadd.f32 %v372, %v420
    %v422 = vpop.f32.mrf.mxu0
    %v423 = vadd.f32 %v374, %v422
    %424 = vmatmul.bf16.gmra.mxu0 %v234
    %v425 = vpop.f32.mrf.mxu0
    %v426 = vadd.f32 %v377, %v425
    %v427 = vpop.f32.mrf.mxu0
    %v428 = vadd.f32 %v379, %v427
    %429 = vmatmul.bf16.gmra.mxu0 %v237
    %v430 = vpop.f32.mrf.mxu0
    %v431 = vadd.f32 %v382, %v430
    %v432 = vpop.f32.mrf.mxu0
    %v433 = vadd.f32 %v384, %v432
    %434 = vdwg.mxu0
    %435 = vst [vmem:[#allocation2] sm:$0xff] %v298
    %436 = vst.msk [vmem:[#allocation2 + $0x8] sm:$0xff] %vm214, %v396
    %437 = vst [vmem:[#allocation2 + $0x10] sm:$0xff] %v300
    %438 = vst.msk [vmem:[#allocation2 + $0x18] sm:$0xff] %vm214, %v398
    %439 = vst [vmem:[#allocation2 + $0x20] sm:$0xff] %v303
    %440 = vst.msk [vmem:[#allocation2 + $0x28] sm:$0xff] %vm214, %v401
    %441 = vst [vmem:[#allocation2 + $0x30] sm:$0xff] %v305
    %442 = vst.msk [vmem:[#allocation2 + $0x38] sm:$0xff] %vm214, %v403
    %443 = vst [vmem:[#allocation2 + $0x40] sm:$0xff] %v308
    %444 = vst.msk [vmem:[#allocation2 + $0x48] sm:$0xff] %vm214, %v406
    %445 = vst [vmem:[#allocation2 + $0x50] sm:$0xff] %v310
    %446 = vst.msk [vmem:[#allocation2 + $0x58] sm:$0xff] %vm214, %v408
    %447 = vst [vmem:[#allocation2 + $0x60] sm:$0xff] %v313
    %448 = vst.msk [vmem:[#allocation2 + $0x68] sm:$0xff] %vm214, %v411
    %449 = vst [vmem:[#allocation2 + $0x70] sm:$0xff] %v315
    %450 = vst.msk [vmem:[#allocation2 + $0x78] sm:$0xff] %vm214, %v413
    %451 = vst [vmem:[#allocation2 + $0x80] sm:$0xff] %v318
    %452 = vst.msk [vmem:[#allocation2 + $0x88] sm:$0xff] %vm214, %v416
    %453 = vst [vmem:[#allocation2 + $0x90] sm:$0xff] %v320
    %454 = vst.msk [vmem:[#allocation2 + $0x98] sm:$0xff] %vm214, %v418
    %455 = vst [vmem:[#allocation2 + $0xa0] sm:$0xff] %v323
    %456 = vst.msk [vmem:[#allocation2 + $0xa8] sm:$0xff] %vm214, %v421
    %457 = vst [vmem:[#allocation2 + $0xb0] sm:$0xff] %v325
    %458 = vst.msk [vmem:[#allocation2 + $0xb8] sm:$0xff] %vm214, %v423
    %459 = vst [vmem:[#allocation2 + $0xc0] sm:$0xff] %v328
    %460 = vst.msk [vmem:[#allocation2 + $0xc8] sm:$0xff] %vm214, %v426
    %461 = vst [vmem:[#allocation2 + $0xd0] sm:$0xff] %v330
    %462 = vst.msk [vmem:[#allocation2 + $0xd8] sm:$0xff] %vm214, %v428
    %463 = vst [vmem:[#allocation2 + $0xe0] sm:$0xff] %v333
    %464 = vst.msk [vmem:[#allocation2 + $0xe8] sm:$0xff] %vm214, %v431
    %465 = vst [vmem:[#allocation2 + $0xf0] sm:$0xff] %v335
    %466 = vst.msk [vmem:[#allocation2 + $0xf8] sm:$0xff] %vm214, %v433
    // Predicated region
    $region14: #{_forward_impl.11} parent=1 // pred_check
      _
    $region15: #{_forward_impl.11} parent=1 // pred_check_branch
      %468 = sbr.rel (0) target = $region17
    $region16: #{_forward_impl.11} parent=1 // pred_region
      %470 = vsyncadd [#allocation3], 0
      %s471 = sshll.u32 [#allocation2], 4
      %s472 = int_to_ptr.vmem [resolvable:$true] %s471
      %s473 = sshll.u32 %s3, 4
      %s474 = int_to_ptr.hbm [resolvable:$true] %s473
      %479 = dma.vmem_to_hbm [thread:$0]  %s472, 4096, %s474, [#allocation3], 256, 256, 16
    $region17: #{_forward_impl.11} parent=1 // pred_fallthru
      _
    // Predicated region
    $region18: #{_forward_impl.11} parent=1 // pred_check
      _
    $region19: #{_forward_impl.11} parent=1 // pred_check_branch
      %481 = sbr.rel (0) target = $region21
    $region20: #{_forward_impl.11} parent=1 // pred_region
      %483 = dma.done [#allocation3], 4096
    $region21: #{_forward_impl.11} parent=1 // pred_fallthru
      _
    %484 = vsyncpa [#allocation3], 1

// kernel: _forward_impl.10
$region0: #{_forward_impl.10}
  #allocation0 [shape = 'u32[]', space=smem, size = 0x4, offset = 0x4, fixed_abs, tag = 'smem constant byte address 0x4 - core index']
  #allocation1 [shape = 'u32[72,128]{1,0:T(1,128)}', space=vmem, size = 0x9000, scoped, tag = 'internal scratch']
  %s0 = inlined_call_operand.vmem [shape: f32[128,193], index: 0, kind: input, shape index: {}]
  %s1 = inlined_call_operand.vmem [shape: bf16[193,192], index: 1, kind: input, shape index: {}]
  %s2 = inlined_call_operand.vmem [shape: f32[1,192], index: 2, kind: input, shape index: {}]
  %s3 = inlined_call_operand.hbm [shape: f32[128,192], index: 3, kind: output, shape index: {}]
  %s4 = sld [smem:[#allocation0]]
  $region22: #{_forward_impl.10} parent=0
    _
  %s6 = ssub.s32 1, %s4
  %s7 = scalar_select 0, %s6, %s4
  $region1: #{_forward_impl.10} parent=0
    #allocation2 [shape = 'u8[131072]{0}', space=vmem, size = 0x20000, scoped, tag = 'output window, operand 0, single buffered']
    #allocation3 [shape = 's32[1]{0}', space=sflag, size = 0x4, scoped, tag = 'scoped memory for _forward_impl.10']
    %8 = vsyncpa [#allocation3], 0
    // Predicated region
    $region2: #{_forward_impl.10} parent=1 // pred_check
      _
    $region3: #{_forward_impl.10} parent=1 // pred_check_branch
      %10 = sbr.rel (0) target = $region5
    $region4: #{_forward_impl.10} parent=1 // pred_region
      _
    $region5: #{_forward_impl.10} parent=1 // pred_fallthru
      _
    // Predicated region
    $region6: #{_forward_impl.10} parent=1 // pred_check
      _
    $region7: #{_forward_impl.10} parent=1 // pred_check_branch
      %12 = sbr.rel (0) target = $region9
    $region8: #{_forward_impl.10} parent=1 // pred_region
      _
    $region9: #{_forward_impl.10} parent=1 // pred_fallthru
      _
    // Predicated region
    $region10: #{_forward_impl.10} parent=1 // pred_check
      _
    $region11: #{_forward_impl.10} parent=1 // pred_check_branch
      %14 = sbr.rel (0) target = $region13
    $region12: #{_forward_impl.10} parent=1 // pred_region
      _
    $region13: #{_forward_impl.10} parent=1 // pred_fallthru
      _
    %v16 = vld [vmem:[%s0] sm:$0xff]
    %v17 = vld [vmem:[%s0 + $0x8] sm:$0xff]
    %v18 = vld [vmem:[%s0 + $0x10] sm:$0xff]
    %v19 = vld [vmem:[%s0 + $0x18] sm:$0xff]
    %v20 = vld [vmem:[%s0 + $0x20] sm:$0xff]
    %v21 = vld [vmem:[%s0 + $0x28] sm:$0xff]
    %v22 = vld [vmem:[%s0 + $0x30] sm:$0xff]
    %v23 = vld [vmem:[%s0 + $0x38] sm:$0xff]
    %v24 = vld [vmem:[%s0 + $0x40] sm:$0xff]
    %v25 = vld [vmem:[%s0 + $0x48] sm:$0xff]
    %v26 = vld [vmem:[%s0 + $0x50] sm:$0xff]
    %v27 = vld [vmem:[%s0 + $0x58] sm:$0xff]
    %v28 = vld [vmem:[%s0 + $0x60] sm:$0xff]
    %v29 = vld [vmem:[%s0 + $0x68] sm:$0xff]
    %v30 = vld [vmem:[%s0 + $0x70] sm:$0xff]
    %v31 = vld [vmem:[%s0 + $0x78] sm:$0xff]
    %v32 = vld [vmem:[%s0 + $0x80] sm:$0xff]
    %v33 = vld [vmem:[%s0 + $0x88] sm:$0xff]
    %v34 = vld [vmem:[%s0 + $0x90] sm:$0xff]
    %v35 = vld [vmem:[%s0 + $0x98] sm:$0xff]
    %v36 = vld [vmem:[%s0 + $0xa0] sm:$0xff]
    %v37 = vld [vmem:[%s0 + $0xa8] sm:$0xff]
    %v38 = vld [vmem:[%s0 + $0xb0] sm:$0xff]
    %v39 = vld [vmem:[%s0 + $0xb8] sm:$0xff]
    %v40 = vld [vmem:[%s0 + $0xc0] sm:$0xff]
    %v41 = vld [vmem:[%s0 + $0xc8] sm:$0xff]
    %v42 = vld [vmem:[%s0 + $0xd0] sm:$0xff]
    %v43 = vld [vmem:[%s0 + $0xd8] sm:$0xff]
    %v44 = vld [vmem:[%s0 + $0xe0] sm:$0xff]
    %v45 = vld [vmem:[%s0 + $0xe8] sm:$0xff]
    %v46 = vld [vmem:[%s0 + $0xf0] sm:$0xff]
    %v47 = vld [vmem:[%s0 + $0xf8] sm:$0xff]
    %v48 = vld [vmem:[%s1] sm:$0xff]
    %v49 = vld [vmem:[%s1 + $0x8] sm:$0xff]
    %v50 = vld [vmem:[%s1 + $0x10] sm:$0xff]
    %v51 = vld [vmem:[%s1 + $0x18] sm:$0xff]
    %v52 = vld [vmem:[%s1 + $0x20] sm:$0xff]
    %v53 = vld [vmem:[%s1 + $0x28] sm:$0xff]
    %v54 = vld [vmem:[%s1 + $0x30] sm:$0xff]
    %v55 = vld [vmem:[%s1 + $0x38] sm:$0xff]
    %v56 = vld [vmem:[%s1 + $0x40] sm:$0xff]
    %v57 = vld [vmem:[%s1 + $0x48] sm:$0xff]
    %v58 = vld [vmem:[%s1 + $0x50] sm:$0xff]
    %v59 = vld [vmem:[%s1 + $0x58] sm:$0xff]
    %v60 = vld [vmem:[%s1 + $0x60] sm:$0xff]
    %v61 = vld [vmem:[%s1 + $0x68] sm:$0xff]
    %v62 = vld [vmem:[%s1 + $0x70] sm:$0xff]
    %v63 = vld [vmem:[%s1 + $0x78] sm:$0xff]
    %v64 = vld [vmem:[%s1 + $0x80] sm:$0xff]
    %v65 = vld [vmem:[%s1 + $0x88] sm:$0xff]
    %v66 = vld [vmem:[%s1 + $0x90] sm:$0xff]
    %v67 = vld [vmem:[%s1 + $0x98] sm:$0xff]
    %v68 = vld [vmem:[%s1 + $0xa0] sm:$0xff]
    %v69 = vld [vmem:[%s1 + $0xa8] sm:$0xff]
    %v70 = vld [vmem:[%s1 + $0xb0] sm:$0xff]
    %v71 = vld [vmem:[%s1 + $0xb8] sm:$0xff]
    %v72 = vld [vmem:[%s1 + $0xc0] sm:$0x11]
    %v73 = vpack.c.bf16 %v18, %v16
    %v74 = vpack.c.bf16 %v19, %v17
    %v75 = vpack.c.bf16 %v22, %v20
    %v76 = vpack.c.bf16 %v23, %v21
    %v77 = vpack.c.bf16 %v26, %v24
    %v78 = vpack.c.bf16 %v27, %v25
    %v79 = vpack.c.bf16 %v30, %v28
    %v80 = vpack.c.bf16 %v31, %v29
    %v81 = vpack.c.bf16 %v34, %v32
    %v82 = vpack.c.bf16 %v35, %v33
    %v83 = vpack.c.bf16 %v38, %v36
    %v84 = vpack.c.bf16 %v39, %v37
    %v85 = vpack.c.bf16 %v42, %v40
    %v86 = vpack.c.bf16 %v43, %v41
    %v87 = vpack.c.bf16 %v46, %v44
    %v88 = vpack.c.bf16 %v47, %v45
    %v89 = vld [vmem:[%s2] sm:$0x3]
    %v91 = vperm.slane %v89, 0
    %v92 = vperm.slane %v89, 1
    %v120 = vunpack.c.l.b16 %v48
    %v121 = vunpack.c.h.b16 %v48
    %v122 = vunpack.c.l.b16 %v49
    %v123 = vunpack.c.h.b16 %v49
    %v124 = vunpack.c.l.b16 %v50
    %v125 = vunpack.c.h.b16 %v50
    %v126 = vunpack.c.l.b16 %v51
    %v127 = vunpack.c.h.b16 %v51
    %v128 = vunpack.c.l.b16 %v52
    %v129 = vunpack.c.h.b16 %v52
    %v130 = vunpack.c.l.b16 %v53
    %v131 = vunpack.c.h.b16 %v53
    %v132 = vunpack.c.l.b16 %v54
    %v133 = vunpack.c.h.b16 %v54
    %v134 = vunpack.c.l.b16 %v55
    %v135 = vunpack.c.h.b16 %v55
    %v136 = vunpack.c.l.b16 %v56
    %v137 = vunpack.c.h.b16 %v56
    %v138 = vunpack.c.l.b16 %v57
    %v139 = vunpack.c.h.b16 %v57
    %v140 = vunpack.c.l.b16 %v58
    %v141 = vunpack.c.h.b16 %v58
    %v142 = vunpack.c.l.b16 %v59
    %v143 = vunpack.c.h.b16 %v59
    %v144 = vunpack.c.l.b16 %v60
    %v145 = vunpack.c.h.b16 %v60
    %v146 = vunpack.c.l.b16 %v61
    %v147 = vunpack.c.h.b16 %v61
    %v148 = vunpack.c.l.b16 %v62
    %v149 = vunpack.c.h.b16 %v62
    %v150 = vunpack.c.l.b16 %v63
    %v151 = vunpack.c.h.b16 %v63
    %v152 = vunpack.c.l.b16 %v64
    %v153 = vunpack.c.h.b16 %v64
    %v154 = vunpack.c.l.b16 %v65
    %v155 = vunpack.c.h.b16 %v65
    %v156 = vunpack.c.l.b16 %v66
    %v157 = vunpack.c.h.b16 %v66
    %v158 = vunpack.c.l.b16 %v67
    %v159 = vunpack.c.h.b16 %v67
    %v160 = vunpack.c.l.b16 %v68
    %v161 = vunpack.c.h.b16 %v68
    %v162 = vunpack.c.l.b16 %v69
    %v163 = vunpack.c.h.b16 %v69
    %v164 = vunpack.c.l.b16 %v70
    %v165 = vunpack.c.h.b16 %v70
    %v166 = vunpack.c.l.b16 %v71
    %v167 = vunpack.c.h.b16 %v71
    %v168 = vunpack.c.l.b16 %v72
    %v169 = vunpack.c.h.b16 %v72
    %v170 = vpack.c.b16 %v122, %v120
    %v171 = vpack.c.b16 %v123, %v121
    %v172 = vpack.c.b16 %v126, %v124
    %v173 = vpack.c.b16 %v127, %v125
    %v174 = vpack.c.b16 %v130, %v128
    %v175 = vpack.c.b16 %v131, %v129
    %v176 = vpack.c.b16 %v134, %v132
    %v177 = vpack.c.b16 %v135, %v133
    %v178 = vpack.c.b16 %v138, %v136
    %v179 = vpack.c.b16 %v139, %v137
    %v180 = vpack.c.b16 %v142, %v140
    %v181 = vpack.c.b16 %v143, %v141
    %v182 = vpack.c.b16 %v146, %v144
    %v183 = vpack.c.b16 %v147, %v145
    %v184 = vpack.c.b16 %v150, %v148
    %v185 = vpack.c.b16 %v151, %v149
    %v186 = vpack.c.b16 %v154, %v152
    %v187 = vpack.c.b16 %v155, %v153
    %v188 = vpack.c.b16 %v158, %v156
    %v189 = vpack.c.b16 %v159, %v157
    %v190 = vpack.c.b16 %v162, %v160
    %v191 = vpack.c.b16 %v163, %v161
    %v192 = vpack.c.b16 %v166, %v164
    %v193 = vpack.c.b16 %v167, %v165
    %v194 = vpack.c.b16 %v168, %v168
    %v195 = vpack.c.b16 %v169, %v169
    %vm220 = vcmask 531456
    %v222 = vsel %vm220, %v74, 0
    %v225 = vsel %vm220, %v76, 0
    %v228 = vsel %vm220, %v78, 0
    %v231 = vsel %vm220, %v80, 0
    %v234 = vsel %vm220, %v82, 0
    %v237 = vsel %vm220, %v84, 0
    %v240 = vsel %vm220, %v86, 0
    %v243 = vsel %vm220, %v88, 0
    %vm245 = vcmask 1040384
    %v246 = vsel 0, 4294967295, 65535
    %v247 = vsel %vm245, %v246, 0
    %v249 = vand.u32 %v194, %v247
    %v252 = vand.u32 %v195, %v247
    %254 = vmatpush.bf16.msra.mxu0 %v184
    %255 = vmatpush.bf16.msra.mxu0 %v182
    %256 = vmatpush.bf16.msra.mxu0 %v180
    %257 = vmatpush.bf16.msra.mxu0 %v178
    %258 = vmatpush.bf16.msra.mxu0 %v176
    %259 = vmatpush.bf16.msra.mxu0 %v174
    %260 = vmatpush.bf16.msra.mxu0 %v172
    %261 = vmatpush.bf16.msra.mxu0 %v170
    %262 = vmatmul.bf16.gmra.mxu0 %v73
    %v263 = vpop.f32.mrf.mxu0
    %v264 = vadd.f32 %v91, %v263
    %v265 = vpop.f32.mrf.mxu0
    %v266 = vadd.f32 %v91, %v265
    %267 = vmatmul.bf16.gmra.mxu0 %v75
    %v268 = vpop.f32.mrf.mxu0
    %v269 = vadd.f32 %v91, %v268
    %v270 = vpop.f32.mrf.mxu0
    %v271 = vadd.f32 %v91, %v270
    %272 = vmatmul.bf16.gmra.mxu0 %v77
    %v273 = vpop.f32.mrf.mxu0
    %v274 = vadd.f32 %v91, %v273
    %v275 = vpop.f32.mrf.mxu0
    %v276 = vadd.f32 %v91, %v275
    %277 = vmatmul.bf16.gmra.mxu0 %v79
    %v278 = vpop.f32.mrf.mxu0
    %v279 = vadd.f32 %v91, %v278
    %v280 = vpop.f32.mrf.mxu0
    %v281 = vadd.f32 %v91, %v280
    %282 = vmatmul.bf16.gmra.mxu0 %v81
    %v283 = vpop.f32.mrf.mxu0
    %v284 = vadd.f32 %v91, %v283
    %v285 = vpop.f32.mrf.mxu0
    %v286 = vadd.f32 %v91, %v285
    %287 = vmatmul.bf16.gmra.mxu0 %v83
    %v288 = vpop.f32.mrf.mxu0
    %v289 = vadd.f32 %v91, %v288
    %v290 = vpop.f32.mrf.mxu0
    %v291 = vadd.f32 %v91, %v290
    %292 = vmatmul.bf16.gmra.mxu0 %v85
    %v293 = vpop.f32.mrf.mxu0
    %v294 = vadd.f32 %v91, %v293
    %v295 = vpop.f32.mrf.mxu0
    %v296 = vadd.f32 %v91, %v295
    %297 = vmatmul.bf16.gmra.mxu0 %v87
    %v298 = vpop.f32.mrf.mxu0
    %v299 = vadd.f32 %v91, %v298
    %v300 = vpop.f32.mrf.mxu0
    %v301 = vadd.f32 %v91, %v300
    %302 = vdwg.mxu0
    %303 = vmatpush.bf16.msra.mxu0 0
    %304 = vmatpush.bf16.msra.mxu0 0
    %305 = vmatpush.bf16.msra.mxu0 0
    %306 = vmatpush.bf16.msra.mxu0 %v249
    %307 = vmatpush.bf16.msra.mxu0 %v192
    %308 = vmatpush.bf16.msra.mxu0 %v190
    %309 = vmatpush.bf16.msra.mxu0 %v188
    %310 = vmatpush.bf16.msra.mxu0 %v186
    %311 = vmatmul.bf16.gmra.mxu0 %v222
    %v312 = vpop.f32.mrf.mxu0
    %v313 = vadd.f32 %v264, %v312
    %v314 = vpop.f32.mrf.mxu0
    %v315 = vadd.f32 %v266, %v314
    %316 = vmatmul.bf16.gmra.mxu0 %v225
    %v317 = vpop.f32.mrf.mxu0
    %v318 = vadd.f32 %v269, %v317
    %v319 = vpop.f32.mrf.mxu0
    %v320 = vadd.f32 %v271, %v319
    %321 = vmatmul.bf16.gmra.mxu0 %v228
    %v322 = vpop.f32.mrf.mxu0
    %v323 = vadd.f32 %v274, %v322
    %v324 = vpop.f32.mrf.mxu0
    %v325 = vadd.f32 %v276, %v324
    %326 = vmatmul.bf16.gmra.mxu0 %v231
    %v327 = vpop.f32.mrf.mxu0
    %v328 = vadd.f32 %v279, %v327
    %v329 = vpop.f32.mrf.mxu0
    %v330 = vadd.f32 %v281, %v329
    %331 = vmatmul.bf16.gmra.mxu0 %v234
    %v332 = vpop.f32.mrf.mxu0
    %v333 = vadd.f32 %v284, %v332
    %v334 = vpop.f32.mrf.mxu0
    %v335 = vadd.f32 %v286, %v334
    %336 = vmatmul.bf16.gmra.mxu0 %v237
    %v337 = vpop.f32.mrf.mxu0
    %v338 = vadd.f32 %v289, %v337
    %v339 = vpop.f32.mrf.mxu0
    %v340 = vadd.f32 %v291, %v339
    %341 = vmatmul.bf16.gmra.mxu0 %v240
    %v342 = vpop.f32.mrf.mxu0
    %v343 = vadd.f32 %v294, %v342
    %v344 = vpop.f32.mrf.mxu0
    %v345 = vadd.f32 %v296, %v344
    %346 = vmatmul.bf16.gmra.mxu0 %v243
    %v347 = vpop.f32.mrf.mxu0
    %v348 = vadd.f32 %v299, %v347
    %v349 = vpop.f32.mrf.mxu0
    %v350 = vadd.f32 %v301, %v349
    %351 = vdwg.mxu0
    %352 = vmatpush.bf16.msra.mxu0 %v185
    %353 = vmatpush.bf16.msra.mxu0 %v183
    %354 = vmatpush.bf16.msra.mxu0 %v181
    %355 = vmatpush.bf16.msra.mxu0 %v179
    %356 = vmatpush.bf16.msra.mxu0 %v177
    %357 = vmatpush.bf16.msra.mxu0 %v175
    %358 = vmatpush.bf16.msra.mxu0 %v173
    %359 = vmatpush.bf16.msra.mxu0 %v171
    %360 = vmatmul.bf16.gmra.mxu0 %v73
    %v361 = vpop.f32.mrf.mxu0
    %v362 = vadd.f32 %v92, %v361
    %v363 = vpop.f32.mrf.mxu0
    %v364 = vadd.f32 %v92, %v363
    %365 = vmatmul.bf16.gmra.mxu0 %v75
    %v366 = vpop.f32.mrf.mxu0
    %v367 = vadd.f32 %v92, %v366
    %v368 = vpop.f32.mrf.mxu0
    %v369 = vadd.f32 %v92, %v368
    %370 = vmatmul.bf16.gmra.mxu0 %v77
    %v371 = vpop.f32.mrf.mxu0
    %v372 = vadd.f32 %v92, %v371
    %v373 = vpop.f32.mrf.mxu0
    %v374 = vadd.f32 %v92, %v373
    %375 = vmatmul.bf16.gmra.mxu0 %v79
    %v376 = vpop.f32.mrf.mxu0
    %v377 = vadd.f32 %v92, %v376
    %v378 = vpop.f32.mrf.mxu0
    %v379 = vadd.f32 %v92, %v378
    %380 = vmatmul.bf16.gmra.mxu0 %v81
    %v381 = vpop.f32.mrf.mxu0
    %v382 = vadd.f32 %v92, %v381
    %v383 = vpop.f32.mrf.mxu0
    %v384 = vadd.f32 %v92, %v383
    %385 = vmatmul.bf16.gmra.mxu0 %v83
    %v386 = vpop.f32.mrf.mxu0
    %v387 = vadd.f32 %v92, %v386
    %v388 = vpop.f32.mrf.mxu0
    %v389 = vadd.f32 %v92, %v388
    %390 = vmatmul.bf16.gmra.mxu0 %v85
    %v391 = vpop.f32.mrf.mxu0
    %v392 = vadd.f32 %v92, %v391
    %v393 = vpop.f32.mrf.mxu0
    %v394 = vadd.f32 %v92, %v393
    %395 = vmatmul.bf16.gmra.mxu0 %v87
    %v396 = vpop.f32.mrf.mxu0
    %v397 = vadd.f32 %v92, %v396
    %v398 = vpop.f32.mrf.mxu0
    %v399 = vadd.f32 %v92, %v398
    %400 = vdwg.mxu0
    %401 = vmatpush.bf16.msra.mxu0 0
    %402 = vmatpush.bf16.msra.mxu0 0
    %403 = vmatpush.bf16.msra.mxu0 0
    %404 = vmatpush.bf16.msra.mxu0 %v252
    %405 = vmatpush.bf16.msra.mxu0 %v193
    %406 = vmatpush.bf16.msra.mxu0 %v191
    %407 = vmatpush.bf16.msra.mxu0 %v189
    %408 = vmatpush.bf16.msra.mxu0 %v187
    %409 = vmatmul.bf16.gmra.mxu0 %v222
    %v410 = vpop.f32.mrf.mxu0
    %v411 = vadd.f32 %v362, %v410
    %v412 = vpop.f32.mrf.mxu0
    %v413 = vadd.f32 %v364, %v412
    %414 = vmatmul.bf16.gmra.mxu0 %v225
    %v415 = vpop.f32.mrf.mxu0
    %v416 = vadd.f32 %v367, %v415
    %v417 = vpop.f32.mrf.mxu0
    %v418 = vadd.f32 %v369, %v417
    %419 = vmatmul.bf16.gmra.mxu0 %v228
    %v420 = vpop.f32.mrf.mxu0
    %v421 = vadd.f32 %v372, %v420
    %v422 = vpop.f32.mrf.mxu0
    %v423 = vadd.f32 %v374, %v422
    %424 = vmatmul.bf16.gmra.mxu0 %v231
    %v425 = vpop.f32.mrf.mxu0
    %v426 = vadd.f32 %v377, %v425
    %v427 = vpop.f32.mrf.mxu0
    %v428 = vadd.f32 %v379, %v427
    %429 = vmatmul.bf16.gmra.mxu0 %v234
    %v430 = vpop.f32.mrf.mxu0
    %v431 = vadd.f32 %v382, %v430
    %v432 = vpop.f32.mrf.mxu0
    %v433 = vadd.f32 %v384, %v432
    %434 = vmatmul.bf16.gmra.mxu0 %v237
    %v435 = vpop.f32.mrf.mxu0
    %v436 = vadd.f32 %v387, %v435
    %v437 = vpop.f32.mrf.mxu0
    %v438 = vadd.f32 %v389, %v437
    %439 = vmatmul.bf16.gmra.mxu0 %v240
    %v440 = vpop.f32.mrf.mxu0
    %v441 = vadd.f32 %v392, %v440
    %v442 = vpop.f32.mrf.mxu0
    %v443 = vadd.f32 %v394, %v442
    %444 = vmatmul.bf16.gmra.mxu0 %v243
    %v445 = vpop.f32.mrf.mxu0
    %v446 = vadd.f32 %v397, %v445
    %v447 = vpop.f32.mrf.mxu0
    %v448 = vadd.f32 %v399, %v447
    %449 = vdwg.mxu0
    %v450 = vmax.f32 %v313, 0.0
    %v451 = vmax.f32 %v411, 0.0
    %v452 = vmax.f32 %v315, 0.0
    %v453 = vmax.f32 %v413, 0.0
    %v454 = vmax.f32 %v318, 0.0
    %v455 = vmax.f32 %v416, 0.0
    %v456 = vmax.f32 %v320, 0.0
    %v457 = vmax.f32 %v418, 0.0
    %v458 = vmax.f32 %v323, 0.0
    %v459 = vmax.f32 %v421, 0.0
    %v460 = vmax.f32 %v325, 0.0
    %v461 = vmax.f32 %v423, 0.0
    %v462 = vmax.f32 %v328, 0.0
    %v463 = vmax.f32 %v426, 0.0
    %v464 = vmax.f32 %v330, 0.0
    %v465 = vmax.f32 %v428, 0.0
    %v466 = vmax.f32 %v333, 0.0
    %v467 = vmax.f32 %v431, 0.0
    %v468 = vmax.f32 %v335, 0.0
    %v469 = vmax.f32 %v433, 0.0
    %v470 = vmax.f32 %v338, 0.0
    %v471 = vmax.f32 %v436, 0.0
    %v472 = vmax.f32 %v340, 0.0
    %v473 = vmax.f32 %v438, 0.0
    %v474 = vmax.f32 %v343, 0.0
    %v475 = vmax.f32 %v441, 0.0
    %v476 = vmax.f32 %v345, 0.0
    %v477 = vmax.f32 %v443, 0.0
    %v478 = vmax.f32 %v348, 0.0
    %v479 = vmax.f32 %v446, 0.0
    %v480 = vmax.f32 %v350, 0.0
    %v481 = vmax.f32 %v448, 0.0
    %482 = vst [vmem:[#allocation2] sm:$0xff] %v450
    %vm483 = vcmask 523264
    %484 = vst.msk [vmem:[#allocation2 + $0x8] sm:$0xff] %vm483, %v451
    %485 = vst [vmem:[#allocation2 + $0x10] sm:$0xff] %v452
    %486 = vst.msk [vmem:[#allocation2 + $0x18] sm:$0xff] %vm483, %v453
    %487 = vst [vmem:[#allocation2 + $0x20] sm:$0xff] %v454
    %488 = vst.msk [vmem:[#allocation2 + $0x28] sm:$0xff] %vm483, %v455
    %489 = vst [vmem:[#allocation2 + $0x30] sm:$0xff] %v456
    %490 = vst.msk [vmem:[#allocation2 + $0x38] sm:$0xff] %vm483, %v457
    %491 = vst [vmem:[#allocation2 + $0x40] sm:$0xff] %v458
    %492 = vst.msk [vmem:[#allocation2 + $0x48] sm:$0xff] %vm483, %v459
    %493 = vst [vmem:[#allocation2 + $0x50] sm:$0xff] %v460
    %494 = vst.msk [vmem:[#allocation2 + $0x58] sm:$0xff] %vm483, %v461
    %495 = vst [vmem:[#allocation2 + $0x60] sm:$0xff] %v462
    %496 = vst.msk [vmem:[#allocation2 + $0x68] sm:$0xff] %vm483, %v463
    %497 = vst [vmem:[#allocation2 + $0x70] sm:$0xff] %v464
    %498 = vst.msk [vmem:[#allocation2 + $0x78] sm:$0xff] %vm483, %v465
    %499 = vst [vmem:[#allocation2 + $0x80] sm:$0xff] %v466
    %500 = vst.msk [vmem:[#allocation2 + $0x88] sm:$0xff] %vm483, %v467
    %501 = vst [vmem:[#allocation2 + $0x90] sm:$0xff] %v468
    %502 = vst.msk [vmem:[#allocation2 + $0x98] sm:$0xff] %vm483, %v469
    %503 = vst [vmem:[#allocation2 + $0xa0] sm:$0xff] %v470
    %504 = vst.msk [vmem:[#allocation2 + $0xa8] sm:$0xff] %vm483, %v471
    %505 = vst [vmem:[#allocation2 + $0xb0] sm:$0xff] %v472
    %506 = vst.msk [vmem:[#allocation2 + $0xb8] sm:$0xff] %vm483, %v473
    %507 = vst [vmem:[#allocation2 + $0xc0] sm:$0xff] %v474
    %508 = vst.msk [vmem:[#allocation2 + $0xc8] sm:$0xff] %vm483, %v475
    %509 = vst [vmem:[#allocation2 + $0xd0] sm:$0xff] %v476
    %510 = vst.msk [vmem:[#allocation2 + $0xd8] sm:$0xff] %vm483, %v477
    %511 = vst [vmem:[#allocation2 + $0xe0] sm:$0xff] %v478
    %512 = vst.msk [vmem:[#allocation2 + $0xe8] sm:$0xff] %vm483, %v479
    %513 = vst [vmem:[#allocation2 + $0xf0] sm:$0xff] %v480
    %514 = vst.msk [vmem:[#allocation2 + $0xf8] sm:$0xff] %vm483, %v481
    // Predicated region
    $region14: #{_forward_impl.10} parent=1 // pred_check
      _
    $region15: #{_forward_impl.10} parent=1 // pred_check_branch
      %516 = sbr.rel (0) target = $region17
    $region16: #{_forward_impl.10} parent=1 // pred_region
      %518 = vsyncadd [#allocation3], 0
      %s519 = sshll.u32 [#allocation2], 4
      %s520 = int_to_ptr.vmem [resolvable:$true] %s519
      %s521 = sshll.u32 %s3, 4
      %s522 = int_to_ptr.hbm [resolvable:$true] %s521
      %527 = dma.vmem_to_hbm [thread:$0]  %s520, 4096, %s522, [#allocation3], 256, 256, 16
    $region17: #{_forward_impl.10} parent=1 // pred_fallthru
      _
    // Predicated region
    $region18: #{_forward_impl.10} parent=1 // pred_check
      _
    $region19: #{_forward_impl.10} parent=1 // pred_check_branch
      %529 = sbr.rel (0) target = $region21
    $region20: #{_forward_impl.10} parent=1 // pred_region
      %531 = dma.done [#allocation3], 4096
    $region21: #{_forward_impl.10} parent=1 // pred_fallthru
      _
    %532 = vsyncpa [#allocation3], 1

// kernel: _forward_impl.8
$region0: #{_forward_impl.8}
  #allocation0 [shape = 'u32[]', space=smem, size = 0x4, offset = 0x4, fixed_abs, tag = 'smem constant byte address 0x4 - core index']
  #allocation1 [shape = 'u32[72,128]{1,0:T(1,128)}', space=vmem, size = 0x9000, scoped, tag = 'internal scratch']
  %s0 = inlined_call_operand.vmem [shape: f32[128,3], index: 0, kind: input, shape index: {}]
  %s1 = inlined_call_operand.vmem [shape: f32[3,768], index: 1, kind: input, shape index: {}]
  %s2 = inlined_call_operand.vmem [shape: f32[1,768], index: 2, kind: input, shape index: {}]
  %s3 = inlined_call_operand.vmem [shape: bf16[768,192], index: 3, kind: input, shape index: {}]
  %s4 = inlined_call_operand.vmem [shape: f32[1,192], index: 4, kind: input, shape index: {}]
  %s5 = inlined_call_operand.vmem [shape: f32[128,192], index: 5, kind: output, shape index: {}]
  %s6 = sld [smem:[#allocation0]]
  $region30: #{_forward_impl.8} parent=0
    _
  %s8 = ssub.s32 1, %s6
  %s9 = scalar_select 0, %s8, %s6
  // Predicated region
  $region2: #{_forward_impl.8} parent=0 // pred_check
    _
  $region3: #{_forward_impl.8} parent=0 // pred_check_branch
    %11 = sbr.rel (0) target = $region5
  $region4: #{_forward_impl.8} parent=0 // pred_region
    _
  $region5: #{_forward_impl.8} parent=0 // pred_fallthru
    _
  // Predicated region
  $region6: #{_forward_impl.8} parent=0 // pred_check
    _
  $region7: #{_forward_impl.8} parent=0 // pred_check_branch
    %13 = sbr.rel (0) target = $region9
  $region8: #{_forward_impl.8} parent=0 // pred_region
    _
  $region9: #{_forward_impl.8} parent=0 // pred_fallthru
    _
  // Predicated region
  $region10: #{_forward_impl.8} parent=0 // pred_check
    _
  $region11: #{_forward_impl.8} parent=0 // pred_check_branch
    %15 = sbr.rel (0) target = $region13
  $region12: #{_forward_impl.8} parent=0 // pred_region
    _
  $region13: #{_forward_impl.8} parent=0 // pred_fallthru
    _
  // Predicated region
  $region14: #{_forward_impl.8} parent=0 // pred_check
    _
  $region15: #{_forward_impl.8} parent=0 // pred_check_branch
    %17 = sbr.rel (0) target = $region17
  $region16: #{_forward_impl.8} parent=0 // pred_region
    _
  $region17: #{_forward_impl.8} parent=0 // pred_fallthru
    _
  // Predicated region
  $region18: #{_forward_impl.8} parent=0 // pred_check
    _
  $region19: #{_forward_impl.8} parent=0 // pred_check_branch
    %19 = sbr.rel (0) target = $region21
  $region20: #{_forward_impl.8} parent=0 // pred_region
    _
  $region21: #{_forward_impl.8} parent=0 // pred_fallthru
    _
  %v20 = vld [vmem:[%s0] sm:$0xff]
  %v21 = vld [vmem:[%s0 + $0x8] sm:$0xff]
  %v22 = vld [vmem:[%s0 + $0x10] sm:$0xff]
  %v23 = vld [vmem:[%s0 + $0x18] sm:$0xff]
  %v24 = vld [vmem:[%s0 + $0x20] sm:$0xff]
  %v25 = vld [vmem:[%s0 + $0x28] sm:$0xff]
  %v26 = vld [vmem:[%s0 + $0x30] sm:$0xff]
  %v27 = vld [vmem:[%s0 + $0x38] sm:$0xff]
  %v28 = vld [vmem:[%s0 + $0x40] sm:$0xff]
  %v29 = vld [vmem:[%s0 + $0x48] sm:$0xff]
  %v30 = vld [vmem:[%s0 + $0x50] sm:$0xff]
  %v31 = vld [vmem:[%s0 + $0x58] sm:$0xff]
  %v32 = vld [vmem:[%s0 + $0x60] sm:$0xff]
  %v33 = vld [vmem:[%s0 + $0x68] sm:$0xff]
  %v34 = vld [vmem:[%s0 + $0x70] sm:$0xff]
  %v35 = vld [vmem:[%s0 + $0x78] sm:$0xff]
  %v36 = vld [vmem:[%s1] ss:$4 sm:$0x3f]
  %38 = vset.pattern.permute.xlu0 0
  %39 = vperm.xlu0 %38, %v20
  %v40 = vpop.permute.xlu0 %39
  %43 = vset.pattern.permute.xlu0 0
  %44 = vperm.xlu0 %43, %v21
  %v45 = vpop.permute.xlu0 %44
  %48 = vset.pattern.permute.xlu0 0
  %49 = vperm.xlu0 %48, %v22
  %v50 = vpop.permute.xlu0 %49
  %53 = vset.pattern.permute.xlu0 0
  %54 = vperm.xlu0 %53, %v23
  %v55 = vpop.permute.xlu0 %54
  %58 = vset.pattern.permute.xlu0 0
  %59 = vperm.xlu0 %58, %v24
  %v60 = vpop.permute.xlu0 %59
  %63 = vset.pattern.permute.xlu0 0
  %64 = vperm.xlu0 %63, %v25
  %v65 = vpop.permute.xlu0 %64
  %68 = vset.pattern.permute.xlu0 0
  %69 = vperm.xlu0 %68, %v26
  %v70 = vpop.permute.xlu0 %69
  %73 = vset.pattern.permute.xlu0 0
  %74 = vperm.xlu0 %73, %v27
  %v75 = vpop.permute.xlu0 %74
  %78 = vset.pattern.permute.xlu0 0
  %79 = vperm.xlu0 %78, %v28
  %v80 = vpop.permute.xlu0 %79
  %83 = vset.pattern.permute.xlu0 0
  %84 = vperm.xlu0 %83, %v29
  %v85 = vpop.permute.xlu0 %84
  %88 = vset.pattern.permute.xlu0 0
  %89 = vperm.xlu0 %88, %v30
  %v90 = vpop.permute.xlu0 %89
  %93 = vset.pattern.permute.xlu0 0
  %94 = vperm.xlu0 %93, %v31
  %v95 = vpop.permute.xlu0 %94
  %98 = vset.pattern.permute.xlu0 0
  %99 = vperm.xlu0 %98, %v32
  %v100 = vpop.permute.xlu0 %99
  %103 = vset.pattern.permute.xlu0 0
  %104 = vperm.xlu0 %103, %v33
  %v105 = vpop.permute.xlu0 %104
  %108 = vset.pattern.permute.xlu0 0
  %109 = vperm.xlu0 %108, %v34
  %v110 = vpop.permute.xlu0 %109
  %113 = vset.pattern.permute.xlu0 0
  %114 = vperm.xlu0 %113, %v35
  %v115 = vpop.permute.xlu0 %114
  %v118 = vperm.slane %v36, 0
  %v119 = vperm.slane %v36, 1
  %v120 = vperm.slane %v36, 2
  %v121 = vperm.slane %v36, 3
  %v122 = vperm.slane %v36, 4
  %v123 = vperm.slane %v36, 5
  %v130 = vmul.f32 %v40, %v118
  %v131 = vmul.f32 %v40, %v119
  %v132 = vmul.f32 %v40, %v120
  %v133 = vmul.f32 %v40, %v121
  %v134 = vmul.f32 %v40, %v122
  %v135 = vmul.f32 %v40, %v123
  %v136 = vmul.f32 %v45, %v118
  %v137 = vmul.f32 %v45, %v119
  %v138 = vmul.f32 %v45, %v120
  %v139 = vmul.f32 %v45, %v121
  %v140 = vmul.f32 %v45, %v122
  %v141 = vmul.f32 %v45, %v123
  %v142 = vmul.f32 %v50, %v118
  %v143 = vmul.f32 %v50, %v119
  %v144 = vmul.f32 %v50, %v120
  %v145 = vmul.f32 %v50, %v121
  %v146 = vmul.f32 %v50, %v122
  %v147 = vmul.f32 %v50, %v123
  %v148 = vmul.f32 %v55, %v118
  %v149 = vmul.f32 %v55, %v119
  %v150 = vmul.f32 %v55, %v120
  %v151 = vmul.f32 %v55, %v121
  %v152 = vmul.f32 %v55, %v122
  %v153 = vmul.f32 %v55, %v123
  %v154 = vmul.f32 %v60, %v118
  %v155 = vmul.f32 %v60, %v119
  %v156 = vmul.f32 %v60, %v120
  %v157 = vmul.f32 %v60, %v121
  %v158 = vmul.f32 %v60, %v122
  %v159 = vmul.f32 %v60, %v123
  %v160 = vmul.f32 %v65, %v118
  %v161 = vmul.f32 %v65, %v119
  %v162 = vmul.f32 %v65, %v120
  %v163 = vmul.f32 %v65, %v121
  %v164 = vmul.f32 %v65, %v122
  %v165 = vmul.f32 %v65, %v123
  %v166 = vmul.f32 %v70, %v118
  %v167 = vmul.f32 %v70, %v119
  %v168 = vmul.f32 %v70, %v120
  %v169 = vmul.f32 %v70, %v121
  %v170 = vmul.f32 %v70, %v122
  %v171 = vmul.f32 %v70, %v123
  %v172 = vmul.f32 %v75, %v118
  %v173 = vmul.f32 %v75, %v119
  %v174 = vmul.f32 %v75, %v120
  %v175 = vmul.f32 %v75, %v121
  %v176 = vmul.f32 %v75, %v122
  %v177 = vmul.f32 %v75, %v123
  %v178 = vmul.f32 %v80, %v118
  %v179 = vmul.f32 %v80, %v119
  %v180 = vmul.f32 %v80, %v120
  %v181 = vmul.f32 %v80, %v121
  %v182 = vmul.f32 %v80, %v122
  %v183 = vmul.f32 %v80, %v123
  %v184 = vmul.f32 %v85, %v118
  %v185 = vmul.f32 %v85, %v119
  %v186 = vmul.f32 %v85, %v120
  %v187 = vmul.f32 %v85, %v121
  %v188 = vmul.f32 %v85, %v122
  %v189 = vmul.f32 %v85, %v123
  %v190 = vmul.f32 %v90, %v118
  %v191 = vmul.f32 %v90, %v119
  %v192 = vmul.f32 %v90, %v120
  %v193 = vmul.f32 %v90, %v121
  %v194 = vmul.f32 %v90, %v122
  %v195 = vmul.f32 %v90, %v123
  %v196 = vmul.f32 %v95, %v118
  %v197 = vmul.f32 %v95, %v119
  %v198 = vmul.f32 %v95, %v120
  %v199 = vmul.f32 %v95, %v121
  %v200 = vmul.f32 %v95, %v122
  %v201 = vmul.f32 %v95, %v123
  %v202 = vmul.f32 %v100, %v118
  %v203 = vmul.f32 %v100, %v119
  %v204 = vmul.f32 %v100, %v120
  %v205 = vmul.f32 %v100, %v121
  %v206 = vmul.f32 %v100, %v122
  %v207 = vmul.f32 %v100, %v123
  %v208 = vmul.f32 %v105, %v118
  %v209 = vmul.f32 %v105, %v119
  %v210 = vmul.f32 %v105, %v120
  %v211 = vmul.f32 %v105, %v121
  %v212 = vmul.f32 %v105, %v122
  %v213 = vmul.f32 %v105, %v123
  %v214 = vmul.f32 %v110, %v118
  %v215 = vmul.f32 %v110, %v119
  %v216 = vmul.f32 %v110, %v120
  %v217 = vmul.f32 %v110, %v121
  %v218 = vmul.f32 %v110, %v122
  %v219 = vmul.f32 %v110, %v123
  %v220 = vmul.f32 %v115, %v118
  %v221 = vmul.f32 %v115, %v119
  %v222 = vmul.f32 %v115, %v120
  %v223 = vmul.f32 %v115, %v121
  %v224 = vmul.f32 %v115, %v122
  %v225 = vmul.f32 %v115, %v123
  %s226 = scalar_lea.vmem %s1, 1
  %v227 = vld [vmem:[%s226] ss:$4 sm:$0x3f]
  %228 = vset.pattern.permute.xlu0 1
  %229 = vperm.xlu0 %228, %v20
  %v230 = vpop.permute.xlu0 %229
  %232 = vset.pattern.permute.xlu0 1
  %233 = vperm.xlu0 %232, %v21
  %v234 = vpop.permute.xlu0 %233
  %236 = vset.pattern.permute.xlu0 1
  %237 = vperm.xlu0 %236, %v22
  %v238 = vpop.permute.xlu0 %237
  %240 = vset.pattern.permute.xlu0 1
  %241 = vperm.xlu0 %240, %v23
  %v242 = vpop.permute.xlu0 %241
  %244 = vset.pattern.permute.xlu0 1
  %245 = vperm.xlu0 %244, %v24
  %v246 = vpop.permute.xlu0 %245
  %248 = vset.pattern.permute.xlu0 1
  %249 = vperm.xlu0 %248, %v25
  %v250 = vpop.permute.xlu0 %249
  %252 = vset.pattern.permute.xlu0 1
  %253 = vperm.xlu0 %252, %v26
  %v254 = vpop.permute.xlu0 %253
  %256 = vset.pattern.permute.xlu0 1
  %257 = vperm.xlu0 %256, %v27
  %v258 = vpop.permute.xlu0 %257
  %260 = vset.pattern.permute.xlu0 1
  %261 = vperm.xlu0 %260, %v28
  %v262 = vpop.permute.xlu0 %261
  %264 = vset.pattern.permute.xlu0 1
  %265 = vperm.xlu0 %264, %v29
  %v266 = vpop.permute.xlu0 %265
  %268 = vset.pattern.permute.xlu0 1
  %269 = vperm.xlu0 %268, %v30
  %v270 = vpop.permute.xlu0 %269
  %272 = vset.pattern.permute.xlu0 1
  %273 = vperm.xlu0 %272, %v31
  %v274 = vpop.permute.xlu0 %273
  %276 = vset.pattern.permute.xlu0 1
  %277 = vperm.xlu0 %276, %v32
  %v278 = vpop.permute.xlu0 %277
  %280 = vset.pattern.permute.xlu0 1
  %281 = vperm.xlu0 %280, %v33
  %v282 = vpop.permute.xlu0 %281
  %284 = vset.pattern.permute.xlu0 1
  %285 = vperm.xlu0 %284, %v34
  %v286 = vpop.permute.xlu0 %285
  %288 = vset.pattern.permute.xlu0 1
  %289 = vperm.xlu0 %288, %v35
  %v290 = vpop.permute.xlu0 %289
  %v293 = vperm.slane %v227, 0
  %v294 = vperm.slane %v227, 1
  %v295 = vperm.slane %v227, 2
  %v296 = vperm.slane %v227, 3
  %v297 = vperm.slane %v227, 4
  %v298 = vperm.slane %v227, 5
  %v305 = vmul.f32 %v230, %v293
  %v306 = vmul.f32 %v230, %v294
  %v307 = vmul.f32 %v230, %v295
  %v308 = vmul.f32 %v230, %v296
  %v309 = vmul.f32 %v230, %v297
  %v310 = vmul.f32 %v230, %v298
  %v311 = vmul.f32 %v234, %v293
  %v312 = vmul.f32 %v234, %v294
  %v313 = vmul.f32 %v234, %v295
  %v314 = vmul.f32 %v234, %v296
  %v315 = vmul.f32 %v234, %v297
  %v316 = vmul.f32 %v234, %v298
  %v317 = vmul.f32 %v238, %v293
  %v318 = vmul.f32 %v238, %v294
  %v319 = vmul.f32 %v238, %v295
  %v320 = vmul.f32 %v238, %v296
  %v321 = vmul.f32 %v238, %v297
  %v322 = vmul.f32 %v238, %v298
  %v323 = vmul.f32 %v242, %v293
  %v324 = vmul.f32 %v242, %v294
  %v325 = vmul.f32 %v242, %v295
  %v326 = vmul.f32 %v242, %v296
  %v327 = vmul.f32 %v242, %v297
  %v328 = vmul.f32 %v242, %v298
  %v329 = vmul.f32 %v246, %v293
  %v330 = vmul.f32 %v246, %v294
  %v331 = vmul.f32 %v246, %v295
  %v332 = vmul.f32 %v246, %v296
  %v333 = vmul.f32 %v246, %v297
  %v334 = vmul.f32 %v246, %v298
  %v335 = vmul.f32 %v250, %v293
  %v336 = vmul.f32 %v250, %v294
  %v337 = vmul.f32 %v250, %v295
  %v338 = vmul.f32 %v250, %v296
  %v339 = vmul.f32 %v250, %v297
  %v340 = vmul.f32 %v250, %v298
  %v341 = vmul.f32 %v254, %v293
  %v342 = vmul.f32 %v254, %v294
  %v343 = vmul.f32 %v254, %v295
  %v344 = vmul.f32 %v254, %v296
  %v345 = vmul.f32 %v254, %v297
  %v346 = vmul.f32 %v254, %v298
  %v347 = vmul.f32 %v258, %v293
  %v348 = vmul.f32 %v258, %v294
  %v349 = vmul.f32 %v258, %v295
  %v350 = vmul.f32 %v258, %v296
  %v351 = vmul.f32 %v258, %v297
  %v352 = vmul.f32 %v258, %v298
  %v353 = vmul.f32 %v262, %v293
  %v354 = vmul.f32 %v262, %v294
  %v355 = vmul.f32 %v262, %v295
  %v356 = vmul.f32 %v262, %v296
  %v357 = vmul.f32 %v262, %v297
  %v358 = vmul.f32 %v262, %v298
  %v359 = vmul.f32 %v266, %v293
  %v360 = vmul.f32 %v266, %v294
  %v361 = vmul.f32 %v266, %v295
  %v362 = vmul.f32 %v266, %v296
  %v363 = vmul.f32 %v266, %v297
  %v364 = vmul.f32 %v266, %v298
  %v365 = vmul.f32 %v270, %v293
  %v366 = vmul.f32 %v270, %v294
  %v367 = vmul.f32 %v270, %v295
  %v368 = vmul.f32 %v270, %v296
  %v369 = vmul.f32 %v270, %v297
  %v370 = vmul.f32 %v270, %v298
  %v371 = vmul.f32 %v274, %v293
  %v372 = vmul.f32 %v274, %v294
  %v373 = vmul.f32 %v274, %v295
  %v374 = vmul.f32 %v274, %v296
  %v375 = vmul.f32 %v274, %v297
  %v376 = vmul.f32 %v274, %v298
  %v377 = vmul.f32 %v278, %v293
  %v378 = vmul.f32 %v278, %v294
  %v379 = vmul.f32 %v278, %v295
  %v380 = vmul.f32 %v278, %v296
  %v381 = vmul.f32 %v278, %v297
  %v382 = vmul.f32 %v278, %v298
  %v383 = vmul.f32 %v282, %v293
  %v384 = vmul.f32 %v282, %v294
  %v385 = vmul.f32 %v282, %v295
  %v386 = vmul.f32 %v282, %v296
  %v387 = vmul.f32 %v282, %v297
  %v388 = vmul.f32 %v282, %v298
  %v389 = vmul.f32 %v286, %v293
  %v390 = vmul.f32 %v286, %v294
  %v391 = vmul.f32 %v286, %v295
  %v392 = vmul.f32 %v286, %v296
  %v393 = vmul.f32 %v286, %v297
  %v394 = vmul.f32 %v286, %v298
  %v395 = vmul.f32 %v290, %v293
  %v396 = vmul.f32 %v290, %v294
  %v397 = vmul.f32 %v290, %v295
  %v398 = vmul.f32 %v290, %v296
  %v399 = vmul.f32 %v290, %v297
  %v400 = vmul.f32 %v290, %v298
  %v401 = vadd.f32 %v130, %v305
  %v402 = vadd.f32 %v131, %v306
  %v403 = vadd.f32 %v132, %v307
  %v404 = vadd.f32 %v133, %v308
  %v405 = vadd.f32 %v134, %v309
  %v406 = vadd.f32 %v135, %v310
  %v407 = vadd.f32 %v136, %v311
  %v408 = vadd.f32 %v137, %v312
  %v409 = vadd.f32 %v138, %v313
  %v410 = vadd.f32 %v139, %v314
  %v411 = vadd.f32 %v140, %v315
  %v412 = vadd.f32 %v141, %v316
  %v413 = vadd.f32 %v142, %v317
  %v414 = vadd.f32 %v143, %v318
  %v415 = vadd.f32 %v144, %v319
  %v416 = vadd.f32 %v145, %v320
  %v417 = vadd.f32 %v146, %v321
  %v418 = vadd.f32 %v147, %v322
  %v419 = vadd.f32 %v148, %v323
  %v420 = vadd.f32 %v149, %v324
  %v421 = vadd.f32 %v150, %v325
  %v422 = vadd.f32 %v151, %v326
  %v423 = vadd.f32 %v152, %v327
  %v424 = vadd.f32 %v153, %v328
  %v425 = vadd.f32 %v154, %v329
  %v426 = vadd.f32 %v155, %v330
  %v427 = vadd.f32 %v156, %v331
  %v428 = vadd.f32 %v157, %v332
  %v429 = vadd.f32 %v158, %v333
  %v430 = vadd.f32 %v159, %v334
  %v431 = vadd.f32 %v160, %v335
  %v432 = vadd.f32 %v161, %v336
  %v433 = vadd.f32 %v162, %v337
  %v434 = vadd.f32 %v163, %v338
  %v435 = vadd.f32 %v164, %v339
  %v436 = vadd.f32 %v165, %v340
  %v437 = vadd.f32 %v166, %v341
  %v438 = vadd.f32 %v167, %v342
  %v439 = vadd.f32 %v168, %v343
  %v440 = vadd.f32 %v169, %v344
  %v441 = vadd.f32 %v170, %v345
  %v442 = vadd.f32 %v171, %v346
  %v443 = vadd.f32 %v172, %v347
  %v444 = vadd.f32 %v173, %v348
  %v445 = vadd.f32 %v174, %v349
  %v446 = vadd.f32 %v175, %v350
  %v447 = vadd.f32 %v176, %v351
  %v448 = vadd.f32 %v177, %v352
  %v449 = vadd.f32 %v178, %v353
  %v450 = vadd.f32 %v179, %v354
  %v451 = vadd.f32 %v180, %v355
  %v452 = vadd.f32 %v181, %v356
  %v453 = vadd.f32 %v182, %v357
  %v454 = vadd.f32 %v183, %v358
  %v455 = vadd.f32 %v184, %v359
  %v456 = vadd.f32 %v185, %v360
  %v457 = vadd.f32 %v186, %v361
  %v458 = vadd.f32 %v187, %v362
  %v459 = vadd.f32 %v188, %v363
  %v460 = vadd.f32 %v189, %v364
  %v461 = vadd.f32 %v190, %v365
  %v462 = vadd.f32 %v191, %v366
  %v463 = vadd.f32 %v192, %v367
  %v464 = vadd.f32 %v193, %v368
  %v465 = vadd.f32 %v194, %v369
  %v466 = vadd.f32 %v195, %v370
  %v467 = vadd.f32 %v196, %v371
  %v468 = vadd.f32 %v197, %v372
  %v469 = vadd.f32 %v198, %v373
  %v470 = vadd.f32 %v199, %v374
  %v471 = vadd.f32 %v200, %v375
  %v472 = vadd.f32 %v201, %v376
  %v473 = vadd.f32 %v202, %v377
  %v474 = vadd.f32 %v203, %v378
  %v475 = vadd.f32 %v204, %v379
  %v476 = vadd.f32 %v205, %v380
  %v477 = vadd.f32 %v206, %v381
  %v478 = vadd.f32 %v207, %v382
  %v479 = vadd.f32 %v208, %v383
  %v480 = vadd.f32 %v209, %v384
  %v481 = vadd.f32 %v210, %v385
  %v482 = vadd.f32 %v211, %v386
  %v483 = vadd.f32 %v212, %v387
  %v484 = vadd.f32 %v213, %v388
  %v485 = vadd.f32 %v214, %v389
  %v486 = vadd.f32 %v215, %v390
  %v487 = vadd.f32 %v216, %v391
  %v488 = vadd.f32 %v217, %v392
  %v489 = vadd.f32 %v218, %v393
  %v490 = vadd.f32 %v219, %v394
  %v491 = vadd.f32 %v220, %v395
  %v492 = vadd.f32 %v221, %v396
  %v493 = vadd.f32 %v222, %v397
  %v494 = vadd.f32 %v223, %v398
  %v495 = vadd.f32 %v224, %v399
  %v496 = vadd.f32 %v225, %v400
  %s497 = scalar_lea.vmem %s1, 2
  %v498 = vld [vmem:[%s497] ss:$4 sm:$0x3f]
  %499 = vset.pattern.permute.xlu0 2
  %500 = vperm.xlu0 %499, %v20
  %v501 = vpop.permute.xlu0 %500
  %503 = vset.pattern.permute.xlu0 2
  %504 = vperm.xlu0 %503, %v21
  %v505 = vpop.permute.xlu0 %504
  %507 = vset.pattern.permute.xlu0 2
  %508 = vperm.xlu0 %507, %v22
  %v509 = vpop.permute.xlu0 %508
  %511 = vset.pattern.permute.xlu0 2
  %512 = vperm.xlu0 %511, %v23
  %v513 = vpop.permute.xlu0 %512
  %515 = vset.pattern.permute.xlu0 2
  %516 = vperm.xlu0 %515, %v24
  %v517 = vpop.permute.xlu0 %516
  %519 = vset.pattern.permute.xlu0 2
  %520 = vperm.xlu0 %519, %v25
  %v521 = vpop.permute.xlu0 %520
  %523 = vset.pattern.permute.xlu0 2
  %524 = vperm.xlu0 %523, %v26
  %v525 = vpop.permute.xlu0 %524
  %527 = vset.pattern.permute.xlu0 2
  %528 = vperm.xlu0 %527, %v27
  %v529 = vpop.permute.xlu0 %528
  %531 = vset.pattern.permute.xlu0 2
  %532 = vperm.xlu0 %531, %v28
  %v533 = vpop.permute.xlu0 %532
  %535 = vset.pattern.permute.xlu0 2
  %536 = vperm.xlu0 %535, %v29
  %v537 = vpop.permute.xlu0 %536
  %539 = vset.pattern.permute.xlu0 2
  %540 = vperm.xlu0 %539, %v30
  %v541 = vpop.permute.xlu0 %540
  %543 = vset.pattern.permute.xlu0 2
  %544 = vperm.xlu0 %543, %v31
  %v545 = vpop.permute.xlu0 %544
  %547 = vset.pattern.permute.xlu0 2
  %548 = vperm.xlu0 %547, %v32
  %v549 = vpop.permute.xlu0 %548
  %551 = vset.pattern.permute.xlu0 2
  %552 = vperm.xlu0 %551, %v33
  %v553 = vpop.permute.xlu0 %552
  %555 = vset.pattern.permute.xlu0 2
  %556 = vperm.xlu0 %555, %v34
  %v557 = vpop.permute.xlu0 %556
  %559 = vset.pattern.permute.xlu0 2
  %560 = vperm.xlu0 %559, %v35
  %v561 = vpop.permute.xlu0 %560
  %v564 = vperm.slane %v498, 0
  %v565 = vperm.slane %v498, 1
  %v566 = vperm.slane %v498, 2
  %v567 = vperm.slane %v498, 3
  %v568 = vperm.slane %v498, 4
  %v569 = vperm.slane %v498, 5
  %v576 = vmul.f32 %v501, %v564
  %v577 = vmul.f32 %v501, %v565
  %v578 = vmul.f32 %v501, %v566
  %v579 = vmul.f32 %v501, %v567
  %v580 = vmul.f32 %v501, %v568
  %v581 = vmul.f32 %v501, %v569
  %v582 = vmul.f32 %v505, %v564
  %v583 = vmul.f32 %v505, %v565
  %v584 = vmul.f32 %v505, %v566
  %v585 = vmul.f32 %v505, %v567
  %v586 = vmul.f32 %v505, %v568
  %v587 = vmul.f32 %v505, %v569
  %v588 = vmul.f32 %v509, %v564
  %v589 = vmul.f32 %v509, %v565
  %v590 = vmul.f32 %v509, %v566
  %v591 = vmul.f32 %v509, %v567
  %v592 = vmul.f32 %v509, %v568
  %v593 = vmul.f32 %v509, %v569
  %v594 = vmul.f32 %v513, %v564
  %v595 = vmul.f32 %v513, %v565
  %v596 = vmul.f32 %v513, %v566
  %v597 = vmul.f32 %v513, %v567
  %v598 = vmul.f32 %v513, %v568
  %v599 = vmul.f32 %v513, %v569
  %v600 = vmul.f32 %v517, %v564
  %v601 = vmul.f32 %v517, %v565
  %v602 = vmul.f32 %v517, %v566
  %v603 = vmul.f32 %v517, %v567
  %v604 = vmul.f32 %v517, %v568
  %v605 = vmul.f32 %v517, %v569
  %v606 = vmul.f32 %v521, %v564
  %v607 = vmul.f32 %v521, %v565
  %v608 = vmul.f32 %v521, %v566
  %v609 = vmul.f32 %v521, %v567
  %v610 = vmul.f32 %v521, %v568
  %v611 = vmul.f32 %v521, %v569
  %v612 = vmul.f32 %v525, %v564
  %v613 = vmul.f32 %v525, %v565
  %v614 = vmul.f32 %v525, %v566
  %v615 = vmul.f32 %v525, %v567
  %v616 = vmul.f32 %v525, %v568
  %v617 = vmul.f32 %v525, %v569
  %v618 = vmul.f32 %v529, %v564
  %v619 = vmul.f32 %v529, %v565
  %v620 = vmul.f32 %v529, %v566
  %v621 = vmul.f32 %v529, %v567
  %v622 = vmul.f32 %v529, %v568
  %v623 = vmul.f32 %v529, %v569
  %v624 = vmul.f32 %v533, %v564
  %v625 = vmul.f32 %v533, %v565
  %v626 = vmul.f32 %v533, %v566
  %v627 = vmul.f32 %v533, %v567
  %v628 = vmul.f32 %v533, %v568
  %v629 = vmul.f32 %v533, %v569
  %v630 = vmul.f32 %v537, %v564
  %v631 = vmul.f32 %v537, %v565
  %v632 = vmul.f32 %v537, %v566
  %v633 = vmul.f32 %v537, %v567
  %v634 = vmul.f32 %v537, %v568
  %v635 = vmul.f32 %v537, %v569
  %v636 = vmul.f32 %v541, %v564
  %v637 = vmul.f32 %v541, %v565
  %v638 = vmul.f32 %v541, %v566
  %v639 = vmul.f32 %v541, %v567
  %v640 = vmul.f32 %v541, %v568
  %v641 = vmul.f32 %v541, %v569
  %v642 = vmul.f32 %v545, %v564
  %v643 = vmul.f32 %v545, %v565
  %v644 = vmul.f32 %v545, %v566
  %v645 = vmul.f32 %v545, %v567
  %v646 = vmul.f32 %v545, %v568
  %v647 = vmul.f32 %v545, %v569
  %v648 = vmul.f32 %v549, %v564
  %v649 = vmul.f32 %v549, %v565
  %v650 = vmul.f32 %v549, %v566
  %v651 = vmul.f32 %v549, %v567
  %v652 = vmul.f32 %v549, %v568
  %v653 = vmul.f32 %v549, %v569
  %v654 = vmul.f32 %v553, %v564
  %v655 = vmul.f32 %v553, %v565
  %v656 = vmul.f32 %v553, %v566
  %v657 = vmul.f32 %v553, %v567
  %v658 = vmul.f32 %v553, %v568
  %v659 = vmul.f32 %v553, %v569
  %v660 = vmul.f32 %v557, %v564
  %v661 = vmul.f32 %v557, %v565
  %v662 = vmul.f32 %v557, %v566
  %v663 = vmul.f32 %v557, %v567
  %v664 = vmul.f32 %v557, %v568
  %v665 = vmul.f32 %v557, %v569
  %v666 = vmul.f32 %v561, %v564
  %v667 = vmul.f32 %v561, %v565
  %v668 = vmul.f32 %v561, %v566
  %v669 = vmul.f32 %v561, %v567
  %v670 = vmul.f32 %v561, %v568
  %v671 = vmul.f32 %v561, %v569
  %v672 = vadd.f32 %v401, %v576
  %v673 = vadd.f32 %v402, %v577
  %v674 = vadd.f32 %v403, %v578
  %v675 = vadd.f32 %v404, %v579
  %v676 = vadd.f32 %v405, %v580
  %v677 = vadd.f32 %v406, %v581
  %v678 = vadd.f32 %v407, %v582
  %v679 = vadd.f32 %v408, %v583
  %v680 = vadd.f32 %v409, %v584
  %v681 = vadd.f32 %v410, %v585
  %v682 = vadd.f32 %v411, %v586
  %v683 = vadd.f32 %v412, %v587
  %v684 = vadd.f32 %v413, %v588
  %v685 = vadd.f32 %v414, %v589
  %v686 = vadd.f32 %v415, %v590
  %v687 = vadd.f32 %v416, %v591
  %v688 = vadd.f32 %v417, %v592
  %v689 = vadd.f32 %v418, %v593
  %v690 = vadd.f32 %v419, %v594
  %v691 = vadd.f32 %v420, %v595
  %v692 = vadd.f32 %v421, %v596
  %v693 = vadd.f32 %v422, %v597
  %v694 = vadd.f32 %v423, %v598
  %v695 = vadd.f32 %v424, %v599
  %v696 = vadd.f32 %v425, %v600
  %v697 = vadd.f32 %v426, %v601
  %v698 = vadd.f32 %v427, %v602
  %v699 = vadd.f32 %v428, %v603
  %v700 = vadd.f32 %v429, %v604
  %v701 = vadd.f32 %v430, %v605
  %v702 = vadd.f32 %v431, %v606
  %v703 = vadd.f32 %v432, %v607
  %v704 = vadd.f32 %v433, %v608
  %v705 = vadd.f32 %v434, %v609
  %v706 = vadd.f32 %v435, %v610
  %v707 = vadd.f32 %v436, %v611
  %v708 = vadd.f32 %v437, %v612
  %v709 = vadd.f32 %v438, %v613
  %v710 = vadd.f32 %v439, %v614
  %v711 = vadd.f32 %v440, %v615
  %v712 = vadd.f32 %v441, %v616
  %v713 = vadd.f32 %v442, %v617
  %v714 = vadd.f32 %v443, %v618
  %v715 = vadd.f32 %v444, %v619
  %v716 = vadd.f32 %v445, %v620
  %v717 = vadd.f32 %v446, %v621
  %v718 = vadd.f32 %v447, %v622
  %v719 = vadd.f32 %v448, %v623
  %v720 = vadd.f32 %v449, %v624
  %v721 = vadd.f32 %v450, %v625
  %v722 = vadd.f32 %v451, %v626
  %v723 = vadd.f32 %v452, %v627
  %v724 = vadd.f32 %v453, %v628
  %v725 = vadd.f32 %v454, %v629
  %v726 = vadd.f32 %v455, %v630
  %v727 = vadd.f32 %v456, %v631
  %v728 = vadd.f32 %v457, %v632
  %v729 = vadd.f32 %v458, %v633
  %v730 = vadd.f32 %v459, %v634
  %v731 = vadd.f32 %v460, %v635
  %v732 = vadd.f32 %v461, %v636
  %v733 = vadd.f32 %v462, %v637
  %v734 = vadd.f32 %v463, %v638
  %v735 = vadd.f32 %v464, %v639
  %v736 = vadd.f32 %v465, %v640
  %v737 = vadd.f32 %v466, %v641
  %v738 = vadd.f32 %v467, %v642
  %v739 = vadd.f32 %v468, %v643
  %v740 = vadd.f32 %v469, %v644
  %v741 = vadd.f32 %v470, %v645
  %v742 = vadd.f32 %v471, %v646
  %v743 = vadd.f32 %v472, %v647
  %v744 = vadd.f32 %v473, %v648
  %v745 = vadd.f32 %v474, %v649
  %v746 = vadd.f32 %v475, %v650
  %v747 = vadd.f32 %v476, %v651
  %v748 = vadd.f32 %v477, %v652
  %v749 = vadd.f32 %v478, %v653
  %v750 = vadd.f32 %v479, %v654
  %v751 = vadd.f32 %v480, %v655
  %v752 = vadd.f32 %v481, %v656
  %v753 = vadd.f32 %v482, %v657
  %v754 = vadd.f32 %v483, %v658
  %v755 = vadd.f32 %v484, %v659
  %v756 = vadd.f32 %v485, %v660
  %v757 = vadd.f32 %v486, %v661
  %v758 = vadd.f32 %v487, %v662
  %v759 = vadd.f32 %v488, %v663
  %v760 = vadd.f32 %v489, %v664
  %v761 = vadd.f32 %v490, %v665
  %v762 = vadd.f32 %v491, %v666
  %v763 = vadd.f32 %v492, %v667
  %v764 = vadd.f32 %v493, %v668
  %v765 = vadd.f32 %v494, %v669
  %v766 = vadd.f32 %v495, %v670
  %v767 = vadd.f32 %v496, %v671
  %v768 = vld [vmem:[%s2] sm:$0x3f]
  %v770 = vperm.slane %v768, 0
  %v771 = vperm.slane %v768, 1
  %v772 = vperm.slane %v768, 2
  %v773 = vperm.slane %v768, 3
  %v774 = vperm.slane %v768, 4
  %v775 = vperm.slane %v768, 5
  %v782 = vadd.f32 %v672, %v770
  %v783 = vadd.f32 %v673, %v771
  %v784 = vadd.f32 %v674, %v772
  %v785 = vadd.f32 %v675, %v773
  %v786 = vadd.f32 %v676, %v774
  %v787 = vadd.f32 %v677, %v775
  %v788 = vadd.f32 %v678, %v770
  %v789 = vadd.f32 %v679, %v771
  %v790 = vadd.f32 %v680, %v772
  %v791 = vadd.f32 %v681, %v773
  %v792 = vadd.f32 %v682, %v774
  %v793 = vadd.f32 %v683, %v775
  %v794 = vadd.f32 %v684, %v770
  %v795 = vadd.f32 %v685, %v771
  %v796 = vadd.f32 %v686, %v772
  %v797 = vadd.f32 %v687, %v773
  %v798 = vadd.f32 %v688, %v774
  %v799 = vadd.f32 %v689, %v775
  %v800 = vadd.f32 %v690, %v770
  %v801 = vadd.f32 %v691, %v771
  %v802 = vadd.f32 %v692, %v772
  %v803 = vadd.f32 %v693, %v773
  %v804 = vadd.f32 %v694, %v774
  %v805 = vadd.f32 %v695, %v775
  %v806 = vadd.f32 %v696, %v770
  %v807 = vadd.f32 %v697, %v771
  %v808 = vadd.f32 %v698, %v772
  %v809 = vadd.f32 %v699, %v773
  %v810 = vadd.f32 %v700, %v774
  %v811 = vadd.f32 %v701, %v775
  %v812 = vadd.f32 %v702, %v770
  %v813 = vadd.f32 %v703, %v771
  %v814 = vadd.f32 %v704, %v772
  %v815 = vadd.f32 %v705, %v773
  %v816 = vadd.f32 %v706, %v774
  %v817 = vadd.f32 %v707, %v775
  %v818 = vadd.f32 %v708, %v770
  %v819 = vadd.f32 %v709, %v771
  %v820 = vadd.f32 %v710, %v772
  %v821 = vadd.f32 %v711, %v773
  %v822 = vadd.f32 %v712, %v774
  %v823 = vadd.f32 %v713, %v775
  %v824 = vadd.f32 %v714, %v770
  %v825 = vadd.f32 %v715, %v771
  %v826 = vadd.f32 %v716, %v772
  %v827 = vadd.f32 %v717, %v773
  %v828 = vadd.f32 %v718, %v774
  %v829 = vadd.f32 %v719, %v775
  %v830 = vadd.f32 %v720, %v770
  %v831 = vadd.f32 %v721, %v771
  %v832 = vadd.f32 %v722, %v772
  %v833 = vadd.f32 %v723, %v773
  %v834 = vadd.f32 %v724, %v774
  %v835 = vadd.f32 %v725, %v775
  %v836 = vadd.f32 %v726, %v770
  %v837 = vadd.f32 %v727, %v771
  %v838 = vadd.f32 %v728, %v772
  %v839 = vadd.f32 %v729, %v773
  %v840 = vadd.f32 %v730, %v774
  %v841 = vadd.f32 %v731, %v775
  %v842 = vadd.f32 %v732, %v770
  %v843 = vadd.f32 %v733, %v771
  %v844 = vadd.f32 %v734, %v772
  %v845 = vadd.f32 %v735, %v773
  %v846 = vadd.f32 %v736, %v774
  %v847 = vadd.f32 %v737, %v775
  %v848 = vadd.f32 %v738, %v770
  %v849 = vadd.f32 %v739, %v771
  %v850 = vadd.f32 %v740, %v772
  %v851 = vadd.f32 %v741, %v773
  %v852 = vadd.f32 %v742, %v774
  %v853 = vadd.f32 %v743, %v775
  %v854 = vadd.f32 %v744, %v770
  %v855 = vadd.f32 %v745, %v771
  %v856 = vadd.f32 %v746, %v772
  %v857 = vadd.f32 %v747, %v773
  %v858 = vadd.f32 %v748, %v774
  %v859 = vadd.f32 %v749, %v775
  %v860 = vadd.f32 %v750, %v770
  %v861 = vadd.f32 %v751, %v771
  %v862 = vadd.f32 %v752, %v772
  %v863 = vadd.f32 %v753, %v773
  %v864 = vadd.f32 %v754, %v774
  %v865 = vadd.f32 %v755, %v775
  %v866 = vadd.f32 %v756, %v770
  %v867 = vadd.f32 %v757, %v771
  %v868 = vadd.f32 %v758, %v772
  %v869 = vadd.f32 %v759, %v773
  %v870 = vadd.f32 %v760, %v774
  %v871 = vadd.f32 %v761, %v775
  %v872 = vadd.f32 %v762, %v770
  %v873 = vadd.f32 %v763, %v771
  %v874 = vadd.f32 %v764, %v772
  %v875 = vadd.f32 %v765, %v773
  %v876 = vadd.f32 %v766, %v774
  %v877 = vadd.f32 %v767, %v775
  %v878 = vmax.f32 %v782, 0.0
  %v879 = vmax.f32 %v783, 0.0
  %v880 = vmax.f32 %v784, 0.0
  %v881 = vmax.f32 %v785, 0.0
  %v882 = vmax.f32 %v786, 0.0
  %v883 = vmax.f32 %v787, 0.0
  %v884 = vmax.f32 %v788, 0.0
  %v885 = vmax.f32 %v789, 0.0
  %v886 = vmax.f32 %v790, 0.0
  %v887 = vmax.f32 %v791, 0.0
  %v888 = vmax.f32 %v792, 0.0
  %v889 = vmax.f32 %v793, 0.0
  %v890 = vmax.f32 %v794, 0.0
  %v891 = vmax.f32 %v795, 0.0
  %v892 = vmax.f32 %v796, 0.0
  %v893 = vmax.f32 %v797, 0.0
  %v894 = vmax.f32 %v798, 0.0
  %v895 = vmax.f32 %v799, 0.0
  %v896 = vmax.f32 %v800, 0.0
  %v897 = vmax.f32 %v801, 0.0
  %v898 = vmax.f32 %v802, 0.0
  %v899 = vmax.f32 %v803, 0.0
  %v900 = vmax.f32 %v804, 0.0
  %v901 = vmax.f32 %v805, 0.0
  %v902 = vmax.f32 %v806, 0.0
  %v903 = vmax.f32 %v807, 0.0
  %v904 = vmax.f32 %v808, 0.0
  %v905 = vmax.f32 %v809, 0.0
  %v906 = vmax.f32 %v810, 0.0
  %v907 = vmax.f32 %v811, 0.0
  %v908 = vmax.f32 %v812, 0.0
  %v909 = vmax.f32 %v813, 0.0
  %v910 = vmax.f32 %v814, 0.0
  %v911 = vmax.f32 %v815, 0.0
  %v912 = vmax.f32 %v816, 0.0
  %v913 = vmax.f32 %v817, 0.0
  %v914 = vmax.f32 %v818, 0.0
  %v915 = vmax.f32 %v819, 0.0
  %v916 = vmax.f32 %v820, 0.0
  %v917 = vmax.f32 %v821, 0.0
  %v918 = vmax.f32 %v822, 0.0
  %v919 = vmax.f32 %v823, 0.0
  %v920 = vmax.f32 %v824, 0.0
  %v921 = vmax.f32 %v825, 0.0
  %v922 = vmax.f32 %v826, 0.0
  %v923 = vmax.f32 %v827, 0.0
  %v924 = vmax.f32 %v828, 0.0
  %v925 = vmax.f32 %v829, 0.0
  %v926 = vmax.f32 %v830, 0.0
  %v927 = vmax.f32 %v831, 0.0
  %v928 = vmax.f32 %v832, 0.0
  %v929 = vmax.f32 %v833, 0.0
  %v930 = vmax.f32 %v834, 0.0
  %v931 = vmax.f32 %v835, 0.0
  %v932 = vmax.f32 %v836, 0.0
  %v933 = vmax.f32 %v837, 0.0
  %v934 = vmax.f32 %v838, 0.0
  %v935 = vmax.f32 %v839, 0.0
  %v936 = vmax.f32 %v840, 0.0
  %v937 = vmax.f32 %v841, 0.0
  %v938 = vmax.f32 %v842, 0.0
  %v939 = vmax.f32 %v843, 0.0
  %v940 = vmax.f32 %v844, 0.0
  %v941 = vmax.f32 %v845, 0.0
  %v942 = vmax.f32 %v846, 0.0
  %v943 = vmax.f32 %v847, 0.0
  %v944 = vmax.f32 %v848, 0.0
  %v945 = vmax.f32 %v849, 0.0
  %v946 = vmax.f32 %v850, 0.0
  %v947 = vmax.f32 %v851, 0.0
  %v948 = vmax.f32 %v852, 0.0
  %v949 = vmax.f32 %v853, 0.0
  %v950 = vmax.f32 %v854, 0.0
  %v951 = vmax.f32 %v855, 0.0
  %v952 = vmax.f32 %v856, 0.0
  %v953 = vmax.f32 %v857, 0.0
  %v954 = vmax.f32 %v858, 0.0
  %v955 = vmax.f32 %v859, 0.0
  %v956 = vmax.f32 %v860, 0.0
  %v957 = vmax.f32 %v861, 0.0
  %v958 = vmax.f32 %v862, 0.0
  %v959 = vmax.f32 %v863, 0.0
  %v960 = vmax.f32 %v864, 0.0
  %v961 = vmax.f32 %v865, 0.0
  %v962 = vmax.f32 %v866, 0.0
  %v963 = vmax.f32 %v867, 0.0
  %v964 = vmax.f32 %v868, 0.0
  %v965 = vmax.f32 %v869, 0.0
  %v966 = vmax.f32 %v870, 0.0
  %v967 = vmax.f32 %v871, 0.0
  %v968 = vmax.f32 %v872, 0.0
  %v969 = vmax.f32 %v873, 0.0
  %v970 = vmax.f32 %v874, 0.0
  %v971 = vmax.f32 %v875, 0.0
  %v972 = vmax.f32 %v876, 0.0
  %v973 = vmax.f32 %v877, 0.0
  %v974 = vpack.c.bf16 %v884, %v878
  %v975 = vpack.c.bf16 %v885, %v879
  %v976 = vpack.c.bf16 %v886, %v880
  %v977 = vpack.c.bf16 %v887, %v881
  %v978 = vpack.c.bf16 %v888, %v882
  %v979 = vpack.c.bf16 %v889, %v883
  %v980 = vpack.c.bf16 %v896, %v890
  %v981 = vpack.c.bf16 %v897, %v891
  %v982 = vpack.c.bf16 %v898, %v892
  %v983 = vpack.c.bf16 %v899, %v893
  %v984 = vpack.c.bf16 %v900, %v894
  %v985 = vpack.c.bf16 %v901, %v895
  %v986 = vpack.c.bf16 %v908, %v902
  %v987 = vpack.c.bf16 %v909, %v903
  %v988 = vpack.c.bf16 %v910, %v904
  %v989 = vpack.c.bf16 %v911, %v905
  %v990 = vpack.c.bf16 %v912, %v906
  %v991 = vpack.c.bf16 %v913, %v907
  %v992 = vpack.c.bf16 %v920, %v914
  %v993 = vpack.c.bf16 %v921, %v915
  %v994 = vpack.c.bf16 %v922, %v916
  %v995 = vpack.c.bf16 %v923, %v917
  %v996 = vpack.c.bf16 %v924, %v918
  %v997 = vpack.c.bf16 %v925, %v919
  %v998 = vpack.c.bf16 %v932, %v926
  %v999 = vpack.c.bf16 %v933, %v927
  %v1000 = vpack.c.bf16 %v934, %v928
  %v1001 = vpack.c.bf16 %v935, %v929
  %v1002 = vpack.c.bf16 %v936, %v930
  %v1003 = vpack.c.bf16 %v937, %v931
  %v1004 = vpack.c.bf16 %v944, %v938
  %v1005 = vpack.c.bf16 %v945, %v939
  %v1006 = vpack.c.bf16 %v946, %v940
  %v1007 = vpack.c.bf16 %v947, %v941
  %v1008 = vpack.c.bf16 %v948, %v942
  %v1009 = vpack.c.bf16 %v949, %v943
  %v1010 = vpack.c.bf16 %v956, %v950
  %v1011 = vpack.c.bf16 %v957, %v951
  %v1012 = vpack.c.bf16 %v958, %v952
  %v1013 = vpack.c.bf16 %v959, %v953
  %v1014 = vpack.c.bf16 %v960, %v954
  %v1015 = vpack.c.bf16 %v961, %v955
  %v1016 = vpack.c.bf16 %v968, %v962
  %v1017 = vpack.c.bf16 %v969, %v963
  %v1018 = vpack.c.bf16 %v970, %v964
  %v1019 = vpack.c.bf16 %v971, %v965
  %v1020 = vpack.c.bf16 %v972, %v966
  %v1021 = vpack.c.bf16 %v973, %v967
  %v1022 = vld [vmem:[%s3] sm:$0xff]
  %v1023 = vld [vmem:[%s3 + $0x8] sm:$0xff]
  %v1024 = vld [vmem:[%s3 + $0x10] sm:$0xff]
  %v1025 = vld [vmem:[%s3 + $0x18] sm:$0xff]
  %v1026 = vld [vmem:[%s3 + $0x20] sm:$0xff]
  %v1027 = vld [vmem:[%s3 + $0x28] sm:$0xff]
  %v1028 = vld [vmem:[%s3 + $0x30] sm:$0xff]
  %v1029 = vld [vmem:[%s3 + $0x38] sm:$0xff]
  %v1030 = vld [vmem:[%s3 + $0x40] sm:$0xff]
  %v1031 = vld [vmem:[%s3 + $0x48] sm:$0xff]
  %v1032 = vld [vmem:[%s3 + $0x50] sm:$0xff]
  %v1033 = vld [vmem:[%s3 + $0x58] sm:$0xff]
  %v1034 = vld [vmem:[%s3 + $0x60] sm:$0xff]
  %v1035 = vld [vmem:[%s3 + $0x68] sm:$0xff]
  %v1036 = vld [vmem:[%s3 + $0x70] sm:$0xff]
  %v1037 = vld [vmem:[%s3 + $0x78] sm:$0xff]
  %v1038 = vld [vmem:[%s3 + $0x80] sm:$0xff]
  %v1039 = vld [vmem:[%s3 + $0x88] sm:$0xff]
  %v1040 = vld [vmem:[%s3 + $0x90] sm:$0xff]
  %v1041 = vld [vmem:[%s3 + $0x98] sm:$0xff]
  %v1042 = vld [vmem:[%s3 + $0xa0] sm:$0xff]
  %v1043 = vld [vmem:[%s3 + $0xa8] sm:$0xff]
  %v1044 = vld [vmem:[%s3 + $0xb0] sm:$0xff]
  %v1045 = vld [vmem:[%s3 + $0xb8] sm:$0xff]
  %v1046 = vld [vmem:[%s3 + $0xc0] sm:$0xff]
  %v1047 = vld [vmem:[%s3 + $0xc8] sm:$0xff]
  %v1048 = vld [vmem:[%s3 + $0xd0] sm:$0xff]
  %v1049 = vld [vmem:[%s3 + $0xd8] sm:$0xff]
  %v1050 = vld [vmem:[%s3 + $0xe0] sm:$0xff]
  %v1051 = vld [vmem:[%s3 + $0xe8] sm:$0xff]
  %v1052 = vld [vmem:[%s3 + $0xf0] sm:$0xff]
  %v1053 = vld [vmem:[%s3 + $0xf8] sm:$0xff]
  %v1054 = vld [vmem:[%s3 + $0x100] sm:$0xff]
  %v1055 = vld [vmem:[%s3 + $0x108] sm:$0xff]
  %v1056 = vld [vmem:[%s3 + $0x110] sm:$0xff]
  %v1057 = vld [vmem:[%s3 + $0x118] sm:$0xff]
  %v1058 = vld [vmem:[%s3 + $0x120] sm:$0xff]
  %v1059 = vld [vmem:[%s3 + $0x128] sm:$0xff]
  %v1060 = vld [vmem:[%s3 + $0x130] sm:$0xff]
  %v1061 = vld [vmem:[%s3 + $0x138] sm:$0xff]
  %v1062 = vld [vmem:[%s3 + $0x140] sm:$0xff]
  %v1063 = vld [vmem:[%s3 + $0x148] sm:$0xff]
  %v1064 = vld [vmem:[%s3 + $0x150] sm:$0xff]
  %v1065 = vld [vmem:[%s3 + $0x158] sm:$0xff]
  %v1066 = vld [vmem:[%s3 + $0x160] sm:$0xff]
  %v1067 = vld [vmem:[%s3 + $0x168] sm:$0xff]
  %v1068 = vld [vmem:[%s3 + $0x170] sm:$0xff]
  %v1069 = vld [vmem:[%s3 + $0x178] sm:$0xff]
  %v1070 = vld [vmem:[%s3 + $0x180] sm:$0xff]
  %v1071 = vld [vmem:[%s3 + $0x188] sm:$0xff]
  %v1072 = vld [vmem:[%s3 + $0x190] sm:$0xff]
  %v1073 = vld [vmem:[%s3 + $0x198] sm:$0xff]
  %v1074 = vld [vmem:[%s3 + $0x1a0] sm:$0xff]
  %v1075 = vld [vmem:[%s3 + $0x1a8] sm:$0xff]
  %v1076 = vld [vmem:[%s3 + $0x1b0] sm:$0xff]
  %v1077 = vld [vmem:[%s3 + $0x1b8] sm:$0xff]
  %v1078 = vld [vmem:[%s3 + $0x1c0] sm:$0xff]
  %v1079 = vld [vmem:[%s3 + $0x1c8] sm:$0xff]
  %v1080 = vld [vmem:[%s3 + $0x1d0] sm:$0xff]
  %v1081 = vld [vmem:[%s3 + $0x1d8] sm:$0xff]
  %v1082 = vld [vmem:[%s3 + $0x1e0] sm:$0xff]
  %v1083 = vld [vmem:[%s3 + $0x1e8] sm:$0xff]
  %v1084 = vld [vmem:[%s3 + $0x1f0] sm:$0xff]
  %v1085 = vld [vmem:[%s3 + $0x1f8] sm:$0xff]
  %v1086 = vld [vmem:[%s3 + $0x200] sm:$0xff]
  %v1087 = vld [vmem:[%s3 + $0x208] sm:$0xff]
  %v1088 = vld [vmem:[%s3 + $0x210] sm:$0xff]
  %v1089 = vld [vmem:[%s3 + $0x218] sm:$0xff]
  %v1090 = vld [vmem:[%s3 + $0x220] sm:$0xff]
  %v1091 = vld [vmem:[%s3 + $0x228] sm:$0xff]
  %v1092 = vld [vmem:[%s3 + $0x230] sm:$0xff]
  %v1093 = vld [vmem:[%s3 + $0x238] sm:$0xff]
  %v1094 = vld [vmem:[%s3 + $0x240] sm:$0xff]
  %v1095 = vld [vmem:[%s3 + $0x248] sm:$0xff]
  %v1096 = vld [vmem:[%s3 + $0x250] sm:$0xff]
  %v1097 = vld [vmem:[%s3 + $0x258] sm:$0xff]
  %v1098 = vld [vmem:[%s3 + $0x260] sm:$0xff]
  %v1099 = vld [vmem:[%s3 + $0x268] sm:$0xff]
  %v1100 = vld [vmem:[%s3 + $0x270] sm:$0xff]
  %v1101 = vld [vmem:[%s3 + $0x278] sm:$0xff]
  %v1102 = vld [vmem:[%s3 + $0x280] sm:$0xff]
  %v1103 = vld [vmem:[%s3 + $0x288] sm:$0xff]
  %v1104 = vld [vmem:[%s3 + $0x290] sm:$0xff]
  %v1105 = vld [vmem:[%s3 + $0x298] sm:$0xff]
  %v1106 = vld [vmem:[%s3 + $0x2a0] sm:$0xff]
  %v1107 = vld [vmem:[%s3 + $0x2a8] sm:$0xff]
  %v1108 = vld [vmem:[%s3 + $0x2b0] sm:$0xff]
  %v1109 = vld [vmem:[%s3 + $0x2b8] sm:$0xff]
  %v1110 = vld [vmem:[%s3 + $0x2c0] sm:$0xff]
  %v1111 = vld [vmem:[%s3 + $0x2c8] sm:$0xff]
  %v1112 = vld [vmem:[%s3 + $0x2d0] sm:$0xff]
  %v1113 = vld [vmem:[%s3 + $0x2d8] sm:$0xff]
  %v1114 = vld [vmem:[%s3 + $0x2e0] sm:$0xff]
  %v1115 = vld [vmem:[%s3 + $0x2e8] sm:$0xff]
  %v1116 = vld [vmem:[%s3 + $0x2f0] sm:$0xff]
  %v1117 = vld [vmem:[%s3 + $0x2f8] sm:$0xff]
  %v1118 = vld [vmem:[%s4] sm:$0x3]
  %v1120 = vperm.slane %v1118, 0
  %v1121 = vperm.slane %v1118, 1
  %v1220 = vunpack.c.l.b16 %v1022
  %v1221 = vunpack.c.h.b16 %v1022
  %v1222 = vunpack.c.l.b16 %v1023
  %v1223 = vunpack.c.h.b16 %v1023
  %v1224 = vunpack.c.l.b16 %v1024
  %v1225 = vunpack.c.h.b16 %v1024
  %v1226 = vunpack.c.l.b16 %v1025
  %v1227 = vunpack.c.h.b16 %v1025
  %v1228 = vunpack.c.l.b16 %v1026
  %v1229 = vunpack.c.h.b16 %v1026
  %v1230 = vunpack.c.l.b16 %v1027
  %v1231 = vunpack.c.h.b16 %v1027
  %v1232 = vunpack.c.l.b16 %v1028
  %v1233 = vunpack.c.h.b16 %v1028
  %v1234 = vunpack.c.l.b16 %v1029
  %v1235 = vunpack.c.h.b16 %v1029
  %v1236 = vunpack.c.l.b16 %v1030
  %v1237 = vunpack.c.h.b16 %v1030
  %v1238 = vunpack.c.l.b16 %v1031
  %v1239 = vunpack.c.h.b16 %v1031
  %v1240 = vunpack.c.l.b16 %v1032
  %v1241 = vunpack.c.h.b16 %v1032
  %v1242 = vunpack.c.l.b16 %v1033
  %v1243 = vunpack.c.h.b16 %v1033
  %v1244 = vunpack.c.l.b16 %v1034
  %v1245 = vunpack.c.h.b16 %v1034
  %v1246 = vunpack.c.l.b16 %v1035
  %v1247 = vunpack.c.h.b16 %v1035
  %v1248 = vunpack.c.l.b16 %v1036
  %v1249 = vunpack.c.h.b16 %v1036
  %v1250 = vunpack.c.l.b16 %v1037
  %v1251 = vunpack.c.h.b16 %v1037
  %v1252 = vunpack.c.l.b16 %v1038
  %v1253 = vunpack.c.h.b16 %v1038
  %v1254 = vunpack.c.l.b16 %v1039
  %v1255 = vunpack.c.h.b16 %v1039
  %v1256 = vunpack.c.l.b16 %v1040
  %v1257 = vunpack.c.h.b16 %v1040
  %v1258 = vunpack.c.l.b16 %v1041
  %v1259 = vunpack.c.h.b16 %v1041
  %v1260 = vunpack.c.l.b16 %v1042
  %v1261 = vunpack.c.h.b16 %v1042
  %v1262 = vunpack.c.l.b16 %v1043
  %v1263 = vunpack.c.h.b16 %v1043
  %v1264 = vunpack.c.l.b16 %v1044
  %v1265 = vunpack.c.h.b16 %v1044
  %v1266 = vunpack.c.l.b16 %v1045
  %v1267 = vunpack.c.h.b16 %v1045
  %v1268 = vunpack.c.l.b16 %v1046
  %v1269 = vunpack.c.h.b16 %v1046
  %v1270 = vunpack.c.l.b16 %v1047
  %v1271 = vunpack.c.h.b16 %v1047
  %v1272 = vunpack.c.l.b16 %v1048
  %v1273 = vunpack.c.h.b16 %v1048
  %v1274 = vunpack.c.l.b16 %v1049
  %v1275 = vunpack.c.h.b16 %v1049
  %v1276 = vunpack.c.l.b16 %v1050
  %v1277 = vunpack.c.h.b16 %v1050
  %v1278 = vunpack.c.l.b16 %v1051
  %v1279 = vunpack.c.h.b16 %v1051
  %v1280 = vunpack.c.l.b16 %v1052
  %v1281 = vunpack.c.h.b16 %v1052
  %v1282 = vunpack.c.l.b16 %v1053
  %v1283 = vunpack.c.h.b16 %v1053
  %v1284 = vunpack.c.l.b16 %v1054
  %v1285 = vunpack.c.h.b16 %v1054
  %v1286 = vunpack.c.l.b16 %v1055
  %v1287 = vunpack.c.h.b16 %v1055
  %v1288 = vunpack.c.l.b16 %v1056
  %v1289 = vunpack.c.h.b16 %v1056
  %v1290 = vunpack.c.l.b16 %v1057
  %v1291 = vunpack.c.h.b16 %v1057
  %v1292 = vunpack.c.l.b16 %v1058
  %v1293 = vunpack.c.h.b16 %v1058
  %v1294 = vunpack.c.l.b16 %v1059
  %v1295 = vunpack.c.h.b16 %v1059
  %v1296 = vunpack.c.l.b16 %v1060
  %v1297 = vunpack.c.h.b16 %v1060
  %v1298 = vunpack.c.l.b16 %v1061
  %v1299 = vunpack.c.h.b16 %v1061
  %v1300 = vunpack.c.l.b16 %v1062
  %v1301 = vunpack.c.h.b16 %v1062
  %v1302 = vunpack.c.l.b16 %v1063
  %v1303 = vunpack.c.h.b16 %v1063
  %v1304 = vunpack.c.l.b16 %v1064
  %v1305 = vunpack.c.h.b16 %v1064
  %v1306 = vunpack.c.l.b16 %v1065
  %v1307 = vunpack.c.h.b16 %v1065
  %v1308 = vunpack.c.l.b16 %v1066
  %v1309 = vunpack.c.h.b16 %v1066
  %v1310 = vunpack.c.l.b16 %v1067
  %v1311 = vunpack.c.h.b16 %v1067
  %v1312 = vunpack.c.l.b16 %v1068
  %v1313 = vunpack.c.h.b16 %v1068
  %v1314 = vunpack.c.l.b16 %v1069
  %v1315 = vunpack.c.h.b16 %v1069
  %v1316 = vunpack.c.l.b16 %v1070
  %v1317 = vunpack.c.h.b16 %v1070
  %v1318 = vunpack.c.l.b16 %v1071
  %v1319 = vunpack.c.h.b16 %v1071
  %v1320 = vunpack.c.l.b16 %v1072
  %v1321 = vunpack.c.h.b16 %v1072
  %v1322 = vunpack.c.l.b16 %v1073
  %v1323 = vunpack.c.h.b16 %v1073
  %v1324 = vunpack.c.l.b16 %v1074
  %v1325 = vunpack.c.h.b16 %v1074
  %v1326 = vunpack.c.l.b16 %v1075
  %v1327 = vunpack.c.h.b16 %v1075
  %v1328 = vunpack.c.l.b16 %v1076
  %v1329 = vunpack.c.h.b16 %v1076
  %v1330 = vunpack.c.l.b16 %v1077
  %v1331 = vunpack.c.h.b16 %v1077
  %v1332 = vunpack.c.l.b16 %v1078
  %v1333 = vunpack.c.h.b16 %v1078
  %v1334 = vunpack.c.l.b16 %v1079
  %v1335 = vunpack.c.h.b16 %v1079
  %v1336 = vunpack.c.l.b16 %v1080
  %v1337 = vunpack.c.h.b16 %v1080
  %v1338 = vunpack.c.l.b16 %v1081
  %v1339 = vunpack.c.h.b16 %v1081
  %v1340 = vunpack.c.l.b16 %v1082
  %v1341 = vunpack.c.h.b16 %v1082
  %v1342 = vunpack.c.l.b16 %v1083
  %v1343 = vunpack.c.h.b16 %v1083
  %v1344 = vunpack.c.l.b16 %v1084
  %v1345 = vunpack.c.h.b16 %v1084
  %v1346 = vunpack.c.l.b16 %v1085
  %v1347 = vunpack.c.h.b16 %v1085
  %v1348 = vunpack.c.l.b16 %v1086
  %v1349 = vunpack.c.h.b16 %v1086
  %v1350 = vunpack.c.l.b16 %v1087
  %v1351 = vunpack.c.h.b16 %v1087
  %v1352 = vunpack.c.l.b16 %v1088
  %v1353 = vunpack.c.h.b16 %v1088
  %v1354 = vunpack.c.l.b16 %v1089
  %v1355 = vunpack.c.h.b16 %v1089
  %v1356 = vunpack.c.l.b16 %v1090
  %v1357 = vunpack.c.h.b16 %v1090
  %v1358 = vunpack.c.l.b16 %v1091
  %v1359 = vunpack.c.h.b16 %v1091
  %v1360 = vunpack.c.l.b16 %v1092
  %v1361 = vunpack.c.h.b16 %v1092
  %v1362 = vunpack.c.l.b16 %v1093
  %v1363 = vunpack.c.h.b16 %v1093
  %v1364 = vunpack.c.l.b16 %v1094
  %v1365 = vunpack.c.h.b16 %v1094
  %v1366 = vunpack.c.l.b16 %v1095
  %v1367 = vunpack.c.h.b16 %v1095
  %v1368 = vunpack.c.l.b16 %v1096
  %v1369 = vunpack.c.h.b16 %v1096
  %v1370 = vunpack.c.l.b16 %v1097
  %v1371 = vunpack.c.h.b16 %v1097
  %v1372 = vunpack.c.l.b16 %v1098
  %v1373 = vunpack.c.h.b16 %v1098
  %v1374 = vunpack.c.l.b16 %v1099
  %v1375 = vunpack.c.h.b16 %v1099
  %v1376 = vunpack.c.l.b16 %v1100
  %v1377 = vunpack.c.h.b16 %v1100
  %v1378 = vunpack.c.l.b16 %v1101
  %v1379 = vunpack.c.h.b16 %v1101
  %v1380 = vunpack.c.l.b16 %v1102
  %v1381 = vunpack.c.h.b16 %v1102
  %v1382 = vunpack.c.l.b16 %v1103
  %v1383 = vunpack.c.h.b16 %v1103
  %v1384 = vunpack.c.l.b16 %v1104
  %v1385 = vunpack.c.h.b16 %v1104
  %v1386 = vunpack.c.l.b16 %v1105
  %v1387 = vunpack.c.h.b16 %v1105
  %v1388 = vunpack.c.l.b16 %v1106
  %v1389 = vunpack.c.h.b16 %v1106
  %v1390 = vunpack.c.l.b16 %v1107
  %v1391 = vunpack.c.h.b16 %v1107
  %v1392 = vunpack.c.l.b16 %v1108
  %v1393 = vunpack.c.h.b16 %v1108
  %v1394 = vunpack.c.l.b16 %v1109
  %v1395 = vunpack.c.h.b16 %v1109
  %v1396 = vunpack.c.l.b16 %v1110
  %v1397 = vunpack.c.h.b16 %v1110
  %v1398 = vunpack.c.l.b16 %v1111
  %v1399 = vunpack.c.h.b16 %v1111
  %v1400 = vunpack.c.l.b16 %v1112
  %v1401 = vunpack.c.h.b16 %v1112
  %v1402 = vunpack.c.l.b16 %v1113
  %v1403 = vunpack.c.h.b16 %v1113
  %v1404 = vunpack.c.l.b16 %v1114
  %v1405 = vunpack.c.h.b16 %v1114
  %v1406 = vunpack.c.l.b16 %v1115
  %v1407 = vunpack.c.h.b16 %v1115
  %v1408 = vunpack.c.l.b16 %v1116
  %v1409 = vunpack.c.h.b16 %v1116
  %v1410 = vunpack.c.l.b16 %v1117
  %v1411 = vunpack.c.h.b16 %v1117
  %v1412 = vpack.c.b16 %v1222, %v1220
  %v1413 = vpack.c.b16 %v1223, %v1221
  %v1414 = vpack.c.b16 %v1226, %v1224
  %v1415 = vpack.c.b16 %v1227, %v1225
  %v1416 = vpack.c.b16 %v1230, %v1228
  %v1417 = vpack.c.b16 %v1231, %v1229
  %v1418 = vpack.c.b16 %v1234, %v1232
  %v1419 = vpack.c.b16 %v1235, %v1233
  %v1420 = vpack.c.b16 %v1238, %v1236
  %v1421 = vpack.c.b16 %v1239, %v1237
  %v1422 = vpack.c.b16 %v1242, %v1240
  %v1423 = vpack.c.b16 %v1243, %v1241
  %v1424 = vpack.c.b16 %v1246, %v1244
  %v1425 = vpack.c.b16 %v1247, %v1245
  %v1426 = vpack.c.b16 %v1250, %v1248
  %v1427 = vpack.c.b16 %v1251, %v1249
  %v1428 = vpack.c.b16 %v1254, %v1252
  %v1429 = vpack.c.b16 %v1255, %v1253
  %v1430 = vpack.c.b16 %v1258, %v1256
  %v1431 = vpack.c.b16 %v1259, %v1257
  %v1432 = vpack.c.b16 %v1262, %v1260
  %v1433 = vpack.c.b16 %v1263, %v1261
  %v1434 = vpack.c.b16 %v1266, %v1264
  %v1435 = vpack.c.b16 %v1267, %v1265
  %v1436 = vpack.c.b16 %v1270, %v1268
  %v1437 = vpack.c.b16 %v1271, %v1269
  %v1438 = vpack.c.b16 %v1274, %v1272
  %v1439 = vpack.c.b16 %v1275, %v1273
  %v1440 = vpack.c.b16 %v1278, %v1276
  %v1441 = vpack.c.b16 %v1279, %v1277
  %v1442 = vpack.c.b16 %v1282, %v1280
  %v1443 = vpack.c.b16 %v1283, %v1281
  %v1444 = vpack.c.b16 %v1286, %v1284
  %v1445 = vpack.c.b16 %v1287, %v1285
  %v1446 = vpack.c.b16 %v1290, %v1288
  %v1447 = vpack.c.b16 %v1291, %v1289
  %v1448 = vpack.c.b16 %v1294, %v1292
  %v1449 = vpack.c.b16 %v1295, %v1293
  %v1450 = vpack.c.b16 %v1298, %v1296
  %v1451 = vpack.c.b16 %v1299, %v1297
  %v1452 = vpack.c.b16 %v1302, %v1300
  %v1453 = vpack.c.b16 %v1303, %v1301
  %v1454 = vpack.c.b16 %v1306, %v1304
  %v1455 = vpack.c.b16 %v1307, %v1305
  %v1456 = vpack.c.b16 %v1310, %v1308
  %v1457 = vpack.c.b16 %v1311, %v1309
  %v1458 = vpack.c.b16 %v1314, %v1312
  %v1459 = vpack.c.b16 %v1315, %v1313
  %v1460 = vpack.c.b16 %v1318, %v1316
  %v1461 = vpack.c.b16 %v1319, %v1317
  %v1462 = vpack.c.b16 %v1322, %v1320
  %v1463 = vpack.c.b16 %v1323, %v1321
  %v1464 = vpack.c.b16 %v1326, %v1324
  %v1465 = vpack.c.b16 %v1327, %v1325
  %v1466 = vpack.c.b16 %v1330, %v1328
  %v1467 = vpack.c.b16 %v1331, %v1329
  %v1468 = vpack.c.b16 %v1334, %v1332
  %v1469 = vpack.c.b16 %v1335, %v1333
  %v1470 = vpack.c.b16 %v1338, %v1336
  %v1471 = vpack.c.b16 %v1339, %v1337
  %v1472 = vpack.c.b16 %v1342, %v1340
  %v1473 = vpack.c.b16 %v1343, %v1341
  %v1474 = vpack.c.b16 %v1346, %v1344
  %v1475 = vpack.c.b16 %v1347, %v1345
  %v1476 = vpack.c.b16 %v1350, %v1348
  %v1477 = vpack.c.b16 %v1351, %v1349
  %v1478 = vpack.c.b16 %v1354, %v1352
  %v1479 = vpack.c.b16 %v1355, %v1353
  %v1480 = vpack.c.b16 %v1358, %v1356
  %v1481 = vpack.c.b16 %v1359, %v1357
  %v1482 = vpack.c.b16 %v1362, %v1360
  %v1483 = vpack.c.b16 %v1363, %v1361
  %v1484 = vpack.c.b16 %v1366, %v1364
  %v1485 = vpack.c.b16 %v1367, %v1365
  %v1486 = vpack.c.b16 %v1370, %v1368
  %v1487 = vpack.c.b16 %v1371, %v1369
  %v1488 = vpack.c.b16 %v1374, %v1372
  %v1489 = vpack.c.b16 %v1375, %v1373
  %v1490 = vpack.c.b16 %v1378, %v1376
  %v1491 = vpack.c.b16 %v1379, %v1377
  %v1492 = vpack.c.b16 %v1382, %v1380
  %v1493 = vpack.c.b16 %v1383, %v1381
  %v1494 = vpack.c.b16 %v1386, %v1384
  %v1495 = vpack.c.b16 %v1387, %v1385
  %v1496 = vpack.c.b16 %v1390, %v1388
  %v1497 = vpack.c.b16 %v1391, %v1389
  %v1498 = vpack.c.b16 %v1394, %v1392
  %v1499 = vpack.c.b16 %v1395, %v1393
  %v1500 = vpack.c.b16 %v1398, %v1396
  %v1501 = vpack.c.b16 %v1399, %v1397
  %v1502 = vpack.c.b16 %v1402, %v1400
  %v1503 = vpack.c.b16 %v1403, %v1401
  %v1504 = vpack.c.b16 %v1406, %v1404
  %v1505 = vpack.c.b16 %v1407, %v1405
  %v1506 = vpack.c.b16 %v1410, %v1408
  %v1507 = vpack.c.b16 %v1411, %v1409
  %1604 = vmatpush.bf16.msra.mxu0 %v1426
  %1605 = vmatpush.bf16.msra.mxu0 %v1424
  %1606 = vmatpush.bf16.msra.mxu0 %v1422
  %1607 = vmatpush.bf16.msra.mxu0 %v1420
  %1608 = vmatpush.bf16.msra.mxu0 %v1418
  %1609 = vmatpush.bf16.msra.mxu0 %v1416
  %1610 = vmatpush.bf16.msra.mxu0 %v1414
  %1611 = vmatpush.bf16.msra.mxu0 %v1412
  %1612 = vmatmul.bf16.gmra.mxu0 %v974
  %v1613 = vpop.f32.mrf.mxu0
  %v1614 = vadd.f32 %v1120, %v1613
  %v1615 = vpop.f32.mrf.mxu0
  %v1616 = vadd.f32 %v1120, %v1615
  %1617 = vmatmul.bf16.gmra.mxu0 %v980
  %v1618 = vpop.f32.mrf.mxu0
  %v1619 = vadd.f32 %v1120, %v1618
  %v1620 = vpop.f32.mrf.mxu0
  %v1621 = vadd.f32 %v1120, %v1620
  %1622 = vmatmul.bf16.gmra.mxu0 %v986
  %v1623 = vpop.f32.mrf.mxu0
  %v1624 = vadd.f32 %v1120, %v1623
  %v1625 = vpop.f32.mrf.mxu0
  %v1626 = vadd.f32 %v1120, %v1625
  %1627 = vmatmul.bf16.gmra.mxu0 %v992
  %v1628 = vpop.f32.mrf.mxu0
  %v1629 = vadd.f32 %v1120, %v1628
  %v1630 = vpop.f32.mrf.mxu0
  %v1631 = vadd.f32 %v1120, %v1630
  %1632 = vmatmul.bf16.gmra.mxu0 %v998
  %v1633 = vpop.f32.mrf.mxu0
  %v1634 = vadd.f32 %v1120, %v1633
  %v1635 = vpop.f32.mrf.mxu0
  %v1636 = vadd.f32 %v1120, %v1635
  %1637 = vmatmul.bf16.gmra.mxu0 %v1004
  %v1638 = vpop.f32.mrf.mxu0
  %v1639 = vadd.f32 %v1120, %v1638
  %v1640 = vpop.f32.mrf.mxu0
  %v1641 = vadd.f32 %v1120, %v1640
  %1642 = vmatmul.bf16.gmra.mxu0 %v1010
  %v1643 = vpop.f32.mrf.mxu0
  %v1644 = vadd.f32 %v1120, %v1643
  %v1645 = vpop.f32.mrf.mxu0
  %v1646 = vadd.f32 %v1120, %v1645
  %1647 = vmatmul.bf16.gmra.mxu0 %v1016
  %v1648 = vpop.f32.mrf.mxu0
  %v1649 = vadd.f32 %v1120, %v1648
  %v1650 = vpop.f32.mrf.mxu0
  %v1651 = vadd.f32 %v1120, %v1650
  %1652 = vdwg.mxu0
  %1653 = vmatpush.bf16.msra.mxu0 %v1442
  %1654 = vmatpush.bf16.msra.mxu0 %v1440
  %1655 = vmatpush.bf16.msra.mxu0 %v1438
  %1656 = vmatpush.bf16.msra.mxu0 %v1436
  %1657 = vmatpush.bf16.msra.mxu0 %v1434
  %1658 = vmatpush.bf16.msra.mxu0 %v1432
  %1659 = vmatpush.bf16.msra.mxu0 %v1430
  %1660 = vmatpush.bf16.msra.mxu0 %v1428
  %1661 = vmatmul.bf16.gmra.mxu0 %v975
  %v1662 = vpop.f32.mrf.mxu0
  %v1663 = vadd.f32 %v1614, %v1662
  %v1664 = vpop.f32.mrf.mxu0
  %v1665 = vadd.f32 %v1616, %v1664
  %1666 = vmatmul.bf16.gmra.mxu0 %v981
  %v1667 = vpop.f32.mrf.mxu0
  %v1668 = vadd.f32 %v1619, %v1667
  %v1669 = vpop.f32.mrf.mxu0
  %v1670 = vadd.f32 %v1621, %v1669
  %1671 = vmatmul.bf16.gmra.mxu0 %v987
  %v1672 = vpop.f32.mrf.mxu0
  %v1673 = vadd.f32 %v1624, %v1672
  %v1674 = vpop.f32.mrf.mxu0
  %v1675 = vadd.f32 %v1626, %v1674
  %1676 = vmatmul.bf16.gmra.mxu0 %v993
  %v1677 = vpop.f32.mrf.mxu0
  %v1678 = vadd.f32 %v1629, %v1677
  %v1679 = vpop.f32.mrf.mxu0
  %v1680 = vadd.f32 %v1631, %v1679
  %1681 = vmatmul.bf16.gmra.mxu0 %v999
  %v1682 = vpop.f32.mrf.mxu0
  %v1683 = vadd.f32 %v1634, %v1682
  %v1684 = vpop.f32.mrf.mxu0
  %v1685 = vadd.f32 %v1636, %v1684
  %1686 = vmatmul.bf16.gmra.mxu0 %v1005
  %v1687 = vpop.f32.mrf.mxu0
  %v1688 = vadd.f32 %v1639, %v1687
  %v1689 = vpop.f32.mrf.mxu0
  %v1690 = vadd.f32 %v1641, %v1689
  %1691 = vmatmul.bf16.gmra.mxu0 %v1011
  %v1692 = vpop.f32.mrf.mxu0
  %v1693 = vadd.f32 %v1644, %v1692
  %v1694 = vpop.f32.mrf.mxu0
  %v1695 = vadd.f32 %v1646, %v1694
  %1696 = vmatmul.bf16.gmra.mxu0 %v1017
  %v1697 = vpop.f32.mrf.mxu0
  %v1698 = vadd.f32 %v1649, %v1697
  %v1699 = vpop.f32.mrf.mxu0
  %v1700 = vadd.f32 %v1651, %v1699
  %1701 = vdwg.mxu0
  %1702 = vmatpush.bf16.msra.mxu0 %v1458
  %1703 = vmatpush.bf16.msra.mxu0 %v1456
  %1704 = vmatpush.bf16.msra.mxu0 %v1454
  %1705 = vmatpush.bf16.msra.mxu0 %v1452
  %1706 = vmatpush.bf16.msra.mxu0 %v1450
  %1707 = vmatpush.bf16.msra.mxu0 %v1448
  %1708 = vmatpush.bf16.msra.mxu0 %v1446
  %1709 = vmatpush.bf16.msra.mxu0 %v1444
  %1710 = vmatmul.bf16.gmra.mxu0 %v976
  %v1711 = vpop.f32.mrf.mxu0
  %v1712 = vadd.f32 %v1663, %v1711
  %v1713 = vpop.f32.mrf.mxu0
  %v1714 = vadd.f32 %v1665, %v1713
  %1715 = vmatmul.bf16.gmra.mxu0 %v982
  %v1716 = vpop.f32.mrf.mxu0
  %v1717 = vadd.f32 %v1668, %v1716
  %v1718 = vpop.f32.mrf.mxu0
  %v1719 = vadd.f32 %v1670, %v1718
  %1720 = vmatmul.bf16.gmra.mxu0 %v988
  %v1721 = vpop.f32.mrf.mxu0
  %v1722 = vadd.f32 %v1673, %v1721
  %v1723 = vpop.f32.mrf.mxu0
  %v1724 = vadd.f32 %v1675, %v1723
  %1725 = vmatmul.bf16.gmra.mxu0 %v994
  %v1726 = vpop.f32.mrf.mxu0
  %v1727 = vadd.f32 %v1678, %v1726
  %v1728 = vpop.f32.mrf.mxu0
  %v1729 = vadd.f32 %v1680, %v1728
  %1730 = vmatmul.bf16.gmra.mxu0 %v1000
  %v1731 = vpop.f32.mrf.mxu0
  %v1732 = vadd.f32 %v1683, %v1731
  %v1733 = vpop.f32.mrf.mxu0
  %v1734 = vadd.f32 %v1685, %v1733
  %1735 = vmatmul.bf16.gmra.mxu0 %v1006
  %v1736 = vpop.f32.mrf.mxu0
  %v1737 = vadd.f32 %v1688, %v1736
  %v1738 = vpop.f32.mrf.mxu0
  %v1739 = vadd.f32 %v1690, %v1738
  %1740 = vmatmul.bf16.gmra.mxu0 %v1012
  %v1741 = vpop.f32.mrf.mxu0
  %v1742 = vadd.f32 %v1693, %v1741
  %v1743 = vpop.f32.mrf.mxu0
  %v1744 = vadd.f32 %v1695, %v1743
  %1745 = vmatmul.bf16.gmra.mxu0 %v1018
  %v1746 = vpop.f32.mrf.mxu0
  %v1747 = vadd.f32 %v1698, %v1746
  %v1748 = vpop.f32.mrf.mxu0
  %v1749 = vadd.f32 %v1700, %v1748
  %1750 = vdwg.mxu0
  %1751 = vmatpush.bf16.msra.mxu0 %v1474
  %1752 = vmatpush.bf16.msra.mxu0 %v1472
  %1753 = vmatpush.bf16.msra.mxu0 %v1470
  %1754 = vmatpush.bf16.msra.mxu0 %v1468
  %1755 = vmatpush.bf16.msra.mxu0 %v1466
  %1756 = vmatpush.bf16.msra.mxu0 %v1464
  %1757 = vmatpush.bf16.msra.mxu0 %v1462
  %1758 = vmatpush.bf16.msra.mxu0 %v1460
  %1759 = vmatmul.bf16.gmra.mxu0 %v977
  %v1760 = vpop.f32.mrf.mxu0
  %v1761 = vadd.f32 %v1712, %v1760
  %v1762 = vpop.f32.mrf.mxu0
  %v1763 = vadd.f32 %v1714, %v1762
  %1764 = vmatmul.bf16.gmra.mxu0 %v983
  %v1765 = vpop.f32.mrf.mxu0
  %v1766 = vadd.f32 %v1717, %v1765
  %v1767 = vpop.f32.mrf.mxu0
  %v1768 = vadd.f32 %v1719, %v1767
  %1769 = vmatmul.bf16.gmra.mxu0 %v989
  %v1770 = vpop.f32.mrf.mxu0
  %v1771 = vadd.f32 %v1722, %v1770
  %v1772 = vpop.f32.mrf.mxu0
  %v1773 = vadd.f32 %v1724, %v1772
  %1774 = vmatmul.bf16.gmra.mxu0 %v995
  %v1775 = vpop.f32.mrf.mxu0
  %v1776 = vadd.f32 %v1727, %v1775
  %v1777 = vpop.f32.mrf.mxu0
  %v1778 = vadd.f32 %v1729, %v1777
  %1779 = vmatmul.bf16.gmra.mxu0 %v1001
  %v1780 = vpop.f32.mrf.mxu0
  %v1781 = vadd.f32 %v1732, %v1780
  %v1782 = vpop.f32.mrf.mxu0
  %v1783 = vadd.f32 %v1734, %v1782
  %1784 = vmatmul.bf16.gmra.mxu0 %v1007
  %v1785 = vpop.f32.mrf.mxu0
  %v1786 = vadd.f32 %v1737, %v1785
  %v1787 = vpop.f32.mrf.mxu0
  %v1788 = vadd.f32 %v1739, %v1787
  %1789 = vmatmul.bf16.gmra.mxu0 %v1013
  %v1790 = vpop.f32.mrf.mxu0
  %v1791 = vadd.f32 %v1742, %v1790
  %v1792 = vpop.f32.mrf.mxu0
  %v1793 = vadd.f32 %v1744, %v1792
  %1794 = vmatmul.bf16.gmra.mxu0 %v1019
  %v1795 = vpop.f32.mrf.mxu0
  %v1796 = vadd.f32 %v1747, %v1795
  %v1797 = vpop.f32.mrf.mxu0
  %v1798 = vadd.f32 %v1749, %v1797
  %1799 = vdwg.mxu0
  %1800 = vmatpush.bf16.msra.mxu0 %v1490
  %1801 = vmatpush.bf16.msra.mxu0 %v1488
  %1802 = vmatpush.bf16.msra.mxu0 %v1486
  %1803 = vmatpush.bf16.msra.mxu0 %v1484
  %1804 = vmatpush.bf16.msra.mxu0 %v1482
  %1805 = vmatpush.bf16.msra.mxu0 %v1480
  %1806 = vmatpush.bf16.msra.mxu0 %v1478
  %1807 = vmatpush.bf16.msra.mxu0 %v1476
  %1808 = vmatmul.bf16.gmra.mxu0 %v978
  %v1809 = vpop.f32.mrf.mxu0
  %v1810 = vadd.f32 %v1761, %v1809
  %v1811 = vpop.f32.mrf.mxu0
  %v1812 = vadd.f32 %v1763, %v1811
  %1813 = vmatmul.bf16.gmra.mxu0 %v984
  %v1814 = vpop.f32.mrf.mxu0
  %v1815 = vadd.f32 %v1766, %v1814
  %v1816 = vpop.f32.mrf.mxu0
  %v1817 = vadd.f32 %v1768, %v1816
  %1818 = vmatmul.bf16.gmra.mxu0 %v990
  %v1819 = vpop.f32.mrf.mxu0
  %v1820 = vadd.f32 %v1771, %v1819
  %v1821 = vpop.f32.mrf.mxu0
  %v1822 = vadd.f32 %v1773, %v1821
  %1823 = vmatmul.bf16.gmra.mxu0 %v996
  %v1824 = vpop.f32.mrf.mxu0
  %v1825 = vadd.f32 %v1776, %v1824
  %v1826 = vpop.f32.mrf.mxu0
  %v1827 = vadd.f32 %v1778, %v1826
  %1828 = vmatmul.bf16.gmra.mxu0 %v1002
  %v1829 = vpop.f32.mrf.mxu0
  %v1830 = vadd.f32 %v1781, %v1829
  %v1831 = vpop.f32.mrf.mxu0
  %v1832 = vadd.f32 %v1783, %v1831
  %1833 = vmatmul.bf16.gmra.mxu0 %v1008
  %v1834 = vpop.f32.mrf.mxu0
  %v1835 = vadd.f32 %v1786, %v1834
  %v1836 = vpop.f32.mrf.mxu0
  %v1837 = vadd.f32 %v1788, %v1836
  %1838 = vmatmul.bf16.gmra.mxu0 %v1014
  %v1839 = vpop.f32.mrf.mxu0
  %v1840 = vadd.f32 %v1791, %v1839
  %v1841 = vpop.f32.mrf.mxu0
  %v1842 = vadd.f32 %v1793, %v1841
  %1843 = vmatmul.bf16.gmra.mxu0 %v1020
  %v1844 = vpop.f32.mrf.mxu0
  %v1845 = vadd.f32 %v1796, %v1844
  %v1846 = vpop.f32.mrf.mxu0
  %v1847 = vadd.f32 %v1798, %v1846
  %1848 = vdwg.mxu0
  %1849 = vmatpush.bf16.msra.mxu0 %v1506
  %1850 = vmatpush.bf16.msra.mxu0 %v1504
  %1851 = vmatpush.bf16.msra.mxu0 %v1502
  %1852 = vmatpush.bf16.msra.mxu0 %v1500
  %1853 = vmatpush.bf16.msra.mxu0 %v1498
  %1854 = vmatpush.bf16.msra.mxu0 %v1496
  %1855 = vmatpush.bf16.msra.mxu0 %v1494
  %1856 = vmatpush.bf16.msra.mxu0 %v1492
  %1857 = vmatmul.bf16.gmra.mxu0 %v979
  %v1858 = vpop.f32.mrf.mxu0
  %v1859 = vadd.f32 %v1810, %v1858
  %v1860 = vpop.f32.mrf.mxu0
  %v1861 = vadd.f32 %v1812, %v1860
  %1862 = vmatmul.bf16.gmra.mxu0 %v985
  %v1863 = vpop.f32.mrf.mxu0
  %v1864 = vadd.f32 %v1815, %v1863
  %v1865 = vpop.f32.mrf.mxu0
  %v1866 = vadd.f32 %v1817, %v1865
  %1867 = vmatmul.bf16.gmra.mxu0 %v991
  %v1868 = vpop.f32.mrf.mxu0
  %v1869 = vadd.f32 %v1820, %v1868
  %v1870 = vpop.f32.mrf.mxu0
  %v1871 = vadd.f32 %v1822, %v1870
  %1872 = vmatmul.bf16.gmra.mxu0 %v997
  %v1873 = vpop.f32.mrf.mxu0
  %v1874 = vadd.f32 %v1825, %v1873
  %v1875 = vpop.f32.mrf.mxu0
  %v1876 = vadd.f32 %v1827, %v1875
  %1877 = vmatmul.bf16.gmra.mxu0 %v1003
  %v1878 = vpop.f32.mrf.mxu0
  %v1879 = vadd.f32 %v1830, %v1878
  %v1880 = vpop.f32.mrf.mxu0
  %v1881 = vadd.f32 %v1832, %v1880
  %1882 = vmatmul.bf16.gmra.mxu0 %v1009
  %v1883 = vpop.f32.mrf.mxu0
  %v1884 = vadd.f32 %v1835, %v1883
  %v1885 = vpop.f32.mrf.mxu0
  %v1886 = vadd.f32 %v1837, %v1885
  %1887 = vmatmul.bf16.gmra.mxu0 %v1015
  %v1888 = vpop.f32.mrf.mxu0
  %v1889 = vadd.f32 %v1840, %v1888
  %v1890 = vpop.f32.mrf.mxu0
  %v1891 = vadd.f32 %v1842, %v1890
  %1892 = vmatmul.bf16.gmra.mxu0 %v1021
  %v1893 = vpop.f32.mrf.mxu0
  %v1894 = vadd.f32 %v1845, %v1893
  %v1895 = vpop.f32.mrf.mxu0
  %v1896 = vadd.f32 %v1847, %v1895
  %1897 = vdwg.mxu0
  %1898 = vmatpush.bf16.msra.mxu0 %v1427
  %1899 = vmatpush.bf16.msra.mxu0 %v1425
  %1900 = vmatpush.bf16.msra.mxu0 %v1423
  %1901 = vmatpush.bf16.msra.mxu0 %v1421
  %1902 = vmatpush.bf16.msra.mxu0 %v1419
  %1903 = vmatpush.bf16.msra.mxu0 %v1417
  %1904 = vmatpush.bf16.msra.mxu0 %v1415
  %1905 = vmatpush.bf16.msra.mxu0 %v1413
  %1906 = vmatmul.bf16.gmra.mxu0 %v974
  %v1907 = vpop.f32.mrf.mxu0
  %v1908 = vadd.f32 %v1121, %v1907
  %v1909 = vpop.f32.mrf.mxu0
  %v1910 = vadd.f32 %v1121, %v1909
  %1911 = vmatmul.bf16.gmra.mxu0 %v980
  %v1912 = vpop.f32.mrf.mxu0
  %v1913 = vadd.f32 %v1121, %v1912
  %v1914 = vpop.f32.mrf.mxu0
  %v1915 = vadd.f32 %v1121, %v1914
  %1916 = vmatmul.bf16.gmra.mxu0 %v986
  %v1917 = vpop.f32.mrf.mxu0
  %v1918 = vadd.f32 %v1121, %v1917
  %v1919 = vpop.f32.mrf.mxu0
  %v1920 = vadd.f32 %v1121, %v1919
  %1921 = vmatmul.bf16.gmra.mxu0 %v992
  %v1922 = vpop.f32.mrf.mxu0
  %v1923 = vadd.f32 %v1121, %v1922
  %v1924 = vpop.f32.mrf.mxu0
  %v1925 = vadd.f32 %v1121, %v1924
  %1926 = vmatmul.bf16.gmra.mxu0 %v998
  %v1927 = vpop.f32.mrf.mxu0
  %v1928 = vadd.f32 %v1121, %v1927
  %v1929 = vpop.f32.mrf.mxu0
  %v1930 = vadd.f32 %v1121, %v1929
  %1931 = vmatmul.bf16.gmra.mxu0 %v1004
  %v1932 = vpop.f32.mrf.mxu0
  %v1933 = vadd.f32 %v1121, %v1932
  %v1934 = vpop.f32.mrf.mxu0
  %v1935 = vadd.f32 %v1121, %v1934
  %1936 = vmatmul.bf16.gmra.mxu0 %v1010
  %v1937 = vpop.f32.mrf.mxu0
  %v1938 = vadd.f32 %v1121, %v1937
  %v1939 = vpop.f32.mrf.mxu0
  %v1940 = vadd.f32 %v1121, %v1939
  %1941 = vmatmul.bf16.gmra.mxu0 %v1016
  %v1942 = vpop.f32.mrf.mxu0
  %v1943 = vadd.f32 %v1121, %v1942
  %v1944 = vpop.f32.mrf.mxu0
  %v1945 = vadd.f32 %v1121, %v1944
  %1946 = vdwg.mxu0
  %1947 = vmatpush.bf16.msra.mxu0 %v1443
  %1948 = vmatpush.bf16.msra.mxu0 %v1441
  %1949 = vmatpush.bf16.msra.mxu0 %v1439
  %1950 = vmatpush.bf16.msra.mxu0 %v1437
  %1951 = vmatpush.bf16.msra.mxu0 %v1435
  %1952 = vmatpush.bf16.msra.mxu0 %v1433
  %1953 = vmatpush.bf16.msra.mxu0 %v1431
  %1954 = vmatpush.bf16.msra.mxu0 %v1429
  %1955 = vmatmul.bf16.gmra.mxu0 %v975
  %v1956 = vpop.f32.mrf.mxu0
  %v1957 = vadd.f32 %v1908, %v1956
  %v1958 = vpop.f32.mrf.mxu0
  %v1959 = vadd.f32 %v1910, %v1958
  %1960 = vmatmul.bf16.gmra.mxu0 %v981
  %v1961 = vpop.f32.mrf.mxu0
  %v1962 = vadd.f32 %v1913, %v1961
  %v1963 = vpop.f32.mrf.mxu0
  %v1964 = vadd.f32 %v1915, %v1963
  %1965 = vmatmul.bf16.gmra.mxu0 %v987
  %v1966 = vpop.f32.mrf.mxu0
  %v1967 = vadd.f32 %v1918, %v1966
  %v1968 = vpop.f32.mrf.mxu0
  %v1969 = vadd.f32 %v1920, %v1968
  %1970 = vmatmul.bf16.gmra.mxu0 %v993
  %v1971 = vpop.f32.mrf.mxu0
  %v1972 = vadd.f32 %v1923, %v1971
  %v1973 = vpop.f32.mrf.mxu0
  %v1974 = vadd.f32 %v1925, %v1973
  %1975 = vmatmul.bf16.gmra.mxu0 %v999
  %v1976 = vpop.f32.mrf.mxu0
  %v1977 = vadd.f32 %v1928, %v1976
  %v1978 = vpop.f32.mrf.mxu0
  %v1979 = vadd.f32 %v1930, %v1978
  %1980 = vmatmul.bf16.gmra.mxu0 %v1005
  %v1981 = vpop.f32.mrf.mxu0
  %v1982 = vadd.f32 %v1933, %v1981
  %v1983 = vpop.f32.mrf.mxu0
  %v1984 = vadd.f32 %v1935, %v1983
  %1985 = vmatmul.bf16.gmra.mxu0 %v1011
  %v1986 = vpop.f32.mrf.mxu0
  %v1987 = vadd.f32 %v1938, %v1986
  %v1988 = vpop.f32.mrf.mxu0
  %v1989 = vadd.f32 %v1940, %v1988
  %1990 = vmatmul.bf16.gmra.mxu0 %v1017
  %v1991 = vpop.f32.mrf.mxu0
  %v1992 = vadd.f32 %v1943, %v1991
  %v1993 = vpop.f32.mrf.mxu0
  %v1994 = vadd.f32 %v1945, %v1993
  %1995 = vdwg.mxu0
  %1996 = vmatpush.bf16.msra.mxu0 %v1459
  %1997 = vmatpush.bf16.msra.mxu0 %v1457
  %1998 = vmatpush.bf16.msra.mxu0 %v1455
  %1999 = vmatpush.bf16.msra.mxu0 %v1453
  %2000 = vmatpush.bf16.msra.mxu0 %v1451
  %2001 = vmatpush.bf16.msra.mxu0 %v1449
  %2002 = vmatpush.bf16.msra.mxu0 %v1447
  %2003 = vmatpush.bf16.msra.mxu0 %v1445
  %2004 = vmatmul.bf16.gmra.mxu0 %v976
  %v2005 = vpop.f32.mrf.mxu0
  %v2006 = vadd.f32 %v1957, %v2005
  %v2007 = vpop.f32.mrf.mxu0
  %v2008 = vadd.f32 %v1959, %v2007
  %2009 = vmatmul.bf16.gmra.mxu0 %v982
  %v2010 = vpop.f32.mrf.mxu0
  %v2011 = vadd.f32 %v1962, %v2010
  %v2012 = vpop.f32.mrf.mxu0
  %v2013 = vadd.f32 %v1964, %v2012
  %2014 = vmatmul.bf16.gmra.mxu0 %v988
  %v2015 = vpop.f32.mrf.mxu0
  %v2016 = vadd.f32 %v1967, %v2015
  %v2017 = vpop.f32.mrf.mxu0
  %v2018 = vadd.f32 %v1969, %v2017
  %2019 = vmatmul.bf16.gmra.mxu0 %v994
  %v2020 = vpop.f32.mrf.mxu0
  %v2021 = vadd.f32 %v1972, %v2020
  %v2022 = vpop.f32.mrf.mxu0
  %v2023 = vadd.f32 %v1974, %v2022
  %2024 = vmatmul.bf16.gmra.mxu0 %v1000
  %v2025 = vpop.f32.mrf.mxu0
  %v2026 = vadd.f32 %v1977, %v2025
  %v2027 = vpop.f32.mrf.mxu0
  %v2028 = vadd.f32 %v1979, %v2027
  %2029 = vmatmul.bf16.gmra.mxu0 %v1006
  %v2030 = vpop.f32.mrf.mxu0
  %v2031 = vadd.f32 %v1982, %v2030
  %v2032 = vpop.f32.mrf.mxu0
  %v2033 = vadd.f32 %v1984, %v2032
  %2034 = vmatmul.bf16.gmra.mxu0 %v1012
  %v2035 = vpop.f32.mrf.mxu0
  %v2036 = vadd.f32 %v1987, %v2035
  %v2037 = vpop.f32.mrf.mxu0
  %v2038 = vadd.f32 %v1989, %v2037
  %2039 = vmatmul.bf16.gmra.mxu0 %v1018
  %v2040 = vpop.f32.mrf.mxu0
  %v2041 = vadd.f32 %v1992, %v2040
  %v2042 = vpop.f32.mrf.mxu0
  %v2043 = vadd.f32 %v1994, %v2042
  %2044 = vdwg.mxu0
  %2045 = vmatpush.bf16.msra.mxu0 %v1475
  %2046 = vmatpush.bf16.msra.mxu0 %v1473
  %2047 = vmatpush.bf16.msra.mxu0 %v1471
  %2048 = vmatpush.bf16.msra.mxu0 %v1469
  %2049 = vmatpush.bf16.msra.mxu0 %v1467
  %2050 = vmatpush.bf16.msra.mxu0 %v1465
  %2051 = vmatpush.bf16.msra.mxu0 %v1463
  %2052 = vmatpush.bf16.msra.mxu0 %v1461
  %2053 = vmatmul.bf16.gmra.mxu0 %v977
  %v2054 = vpop.f32.mrf.mxu0
  %v2055 = vadd.f32 %v2006, %v2054
  %v2056 = vpop.f32.mrf.mxu0
  %v2057 = vadd.f32 %v2008, %v2056
  %2058 = vmatmul.bf16.gmra.mxu0 %v983
  %v2059 = vpop.f32.mrf.mxu0
  %v2060 = vadd.f32 %v2011, %v2059
  %v2061 = vpop.f32.mrf.mxu0
  %v2062 = vadd.f32 %v2013, %v2061
  %2063 = vmatmul.bf16.gmra.mxu0 %v989
  %v2064 = vpop.f32.mrf.mxu0
  %v2065 = vadd.f32 %v2016, %v2064
  %v2066 = vpop.f32.mrf.mxu0
  %v2067 = vadd.f32 %v2018, %v2066
  %2068 = vmatmul.bf16.gmra.mxu0 %v995
  %v2069 = vpop.f32.mrf.mxu0
  %v2070 = vadd.f32 %v2021, %v2069
  %v2071 = vpop.f32.mrf.mxu0
  %v2072 = vadd.f32 %v2023, %v2071
  %2073 = vmatmul.bf16.gmra.mxu0 %v1001
  %v2074 = vpop.f32.mrf.mxu0
  %v2075 = vadd.f32 %v2026, %v2074
  %v2076 = vpop.f32.mrf.mxu0
  %v2077 = vadd.f32 %v2028, %v2076
  %2078 = vmatmul.bf16.gmra.mxu0 %v1007
  %v2079 = vpop.f32.mrf.mxu0
  %v2080 = vadd.f32 %v2031, %v2079
  %v2081 = vpop.f32.mrf.mxu0
  %v2082 = vadd.f32 %v2033, %v2081
  %2083 = vmatmul.bf16.gmra.mxu0 %v1013
  %v2084 = vpop.f32.mrf.mxu0
  %v2085 = vadd.f32 %v2036, %v2084
  %v2086 = vpop.f32.mrf.mxu0
  %v2087 = vadd.f32 %v2038, %v2086
  %2088 = vmatmul.bf16.gmra.mxu0 %v1019
  %v2089 = vpop.f32.mrf.mxu0
  %v2090 = vadd.f32 %v2041, %v2089
  %v2091 = vpop.f32.mrf.mxu0
  %v2092 = vadd.f32 %v2043, %v2091
  %2093 = vdwg.mxu0
  %2094 = vmatpush.bf16.msra.mxu0 %v1491
  %2095 = vmatpush.bf16.msra.mxu0 %v1489
  %2096 = vmatpush.bf16.msra.mxu0 %v1487
  %2097 = vmatpush.bf16.msra.mxu0 %v1485
  %2098 = vmatpush.bf16.msra.mxu0 %v1483
  %2099 = vmatpush.bf16.msra.mxu0 %v1481
  %2100 = vmatpush.bf16.msra.mxu0 %v1479
  %2101 = vmatpush.bf16.msra.mxu0 %v1477
  %2102 = vmatmul.bf16.gmra.mxu0 %v978
  %v2103 = vpop.f32.mrf.mxu0
  %v2104 = vadd.f32 %v2055, %v2103
  %v2105 = vpop.f32.mrf.mxu0
  %v2106 = vadd.f32 %v2057, %v2105
  %2107 = vmatmul.bf16.gmra.mxu0 %v984
  %v2108 = vpop.f32.mrf.mxu0
  %v2109 = vadd.f32 %v2060, %v2108
  %v2110 = vpop.f32.mrf.mxu0
  %v2111 = vadd.f32 %v2062, %v2110
  %2112 = vmatmul.bf16.gmra.mxu0 %v990
  %v2113 = vpop.f32.mrf.mxu0
  %v2114 = vadd.f32 %v2065, %v2113
  %v2115 = vpop.f32.mrf.mxu0
  %v2116 = vadd.f32 %v2067, %v2115
  %2117 = vmatmul.bf16.gmra.mxu0 %v996
  %v2118 = vpop.f32.mrf.mxu0
  %v2119 = vadd.f32 %v2070, %v2118
  %v2120 = vpop.f32.mrf.mxu0
  %v2121 = vadd.f32 %v2072, %v2120
  %2122 = vmatmul.bf16.gmra.mxu0 %v1002
  %v2123 = vpop.f32.mrf.mxu0
  %v2124 = vadd.f32 %v2075, %v2123
  %v2125 = vpop.f32.mrf.mxu0
  %v2126 = vadd.f32 %v2077, %v2125
  %2127 = vmatmul.bf16.gmra.mxu0 %v1008
  %v2128 = vpop.f32.mrf.mxu0
  %v2129 = vadd.f32 %v2080, %v2128
  %v2130 = vpop.f32.mrf.mxu0
  %v2131 = vadd.f32 %v2082, %v2130
  %2132 = vmatmul.bf16.gmra.mxu0 %v1014
  %v2133 = vpop.f32.mrf.mxu0
  %v2134 = vadd.f32 %v2085, %v2133
  %v2135 = vpop.f32.mrf.mxu0
  %v2136 = vadd.f32 %v2087, %v2135
  %2137 = vmatmul.bf16.gmra.mxu0 %v1020
  %v2138 = vpop.f32.mrf.mxu0
  %v2139 = vadd.f32 %v2090, %v2138
  %v2140 = vpop.f32.mrf.mxu0
  %v2141 = vadd.f32 %v2092, %v2140
  %2142 = vdwg.mxu0
  %2143 = vmatpush.bf16.msra.mxu0 %v1507
  %2144 = vmatpush.bf16.msra.mxu0 %v1505
  %2145 = vmatpush.bf16.msra.mxu0 %v1503
  %2146 = vmatpush.bf16.msra.mxu0 %v1501
  %2147 = vmatpush.bf16.msra.mxu0 %v1499
  %2148 = vmatpush.bf16.msra.mxu0 %v1497
  %2149 = vmatpush.bf16.msra.mxu0 %v1495
  %2150 = vmatpush.bf16.msra.mxu0 %v1493
  %2151 = vmatmul.bf16.gmra.mxu0 %v979
  %v2152 = vpop.f32.mrf.mxu0
  %v2153 = vadd.f32 %v2104, %v2152
  %v2154 = vpop.f32.mrf.mxu0
  %v2155 = vadd.f32 %v2106, %v2154
  %2156 = vmatmul.bf16.gmra.mxu0 %v985
  %v2157 = vpop.f32.mrf.mxu0
  %v2158 = vadd.f32 %v2109, %v2157
  %v2159 = vpop.f32.mrf.mxu0
  %v2160 = vadd.f32 %v2111, %v2159
  %2161 = vmatmul.bf16.gmra.mxu0 %v991
  %v2162 = vpop.f32.mrf.mxu0
  %v2163 = vadd.f32 %v2114, %v2162
  %v2164 = vpop.f32.mrf.mxu0
  %v2165 = vadd.f32 %v2116, %v2164
  %2166 = vmatmul.bf16.gmra.mxu0 %v997
  %v2167 = vpop.f32.mrf.mxu0
  %v2168 = vadd.f32 %v2119, %v2167
  %v2169 = vpop.f32.mrf.mxu0
  %v2170 = vadd.f32 %v2121, %v2169
  %2171 = vmatmul.bf16.gmra.mxu0 %v1003
  %v2172 = vpop.f32.mrf.mxu0
  %v2173 = vadd.f32 %v2124, %v2172
  %v2174 = vpop.f32.mrf.mxu0
  %v2175 = vadd.f32 %v2126, %v2174
  %2176 = vmatmul.bf16.gmra.mxu0 %v1009
  %v2177 = vpop.f32.mrf.mxu0
  %v2178 = vadd.f32 %v2129, %v2177
  %v2179 = vpop.f32.mrf.mxu0
  %v2180 = vadd.f32 %v2131, %v2179
  %2181 = vmatmul.bf16.gmra.mxu0 %v1015
  %v2182 = vpop.f32.mrf.mxu0
  %v2183 = vadd.f32 %v2134, %v2182
  %v2184 = vpop.f32.mrf.mxu0
  %v2185 = vadd.f32 %v2136, %v2184
  %2186 = vmatmul.bf16.gmra.mxu0 %v1021
  %v2187 = vpop.f32.mrf.mxu0
  %v2188 = vadd.f32 %v2139, %v2187
  %v2189 = vpop.f32.mrf.mxu0
  %v2190 = vadd.f32 %v2141, %v2189
  %2191 = vdwg.mxu0
  %2192 = vst [vmem:[%s5] sm:$0xff] %v1859
  %vm2193 = vcmask 523264
  %2194 = vst.msk [vmem:[%s5 + $0x8] sm:$0xff] %vm2193, %v2153
  %2195 = vst [vmem:[%s5 + $0x10] sm:$0xff] %v1861
  %2196 = vst.msk [vmem:[%s5 + $0x18] sm:$0xff] %vm2193, %v2155
  %2197 = vst [vmem:[%s5 + $0x20] sm:$0xff] %v1864
  %2198 = vst.msk [vmem:[%s5 + $0x28] sm:$0xff] %vm2193, %v2158
  %2199 = vst [vmem:[%s5 + $0x30] sm:$0xff] %v1866
  %2200 = vst.msk [vmem:[%s5 + $0x38] sm:$0xff] %vm2193, %v2160
  %2201 = vst [vmem:[%s5 + $0x40] sm:$0xff] %v1869
  %2202 = vst.msk [vmem:[%s5 + $0x48] sm:$0xff] %vm2193, %v2163
  %2203 = vst [vmem:[%s5 + $0x50] sm:$0xff] %v1871
  %2204 = vst.msk [vmem:[%s5 + $0x58] sm:$0xff] %vm2193, %v2165
  %2205 = vst [vmem:[%s5 + $0x60] sm:$0xff] %v1874
  %2206 = vst.msk [vmem:[%s5 + $0x68] sm:$0xff] %vm2193, %v2168
  %2207 = vst [vmem:[%s5 + $0x70] sm:$0xff] %v1876
  %2208 = vst.msk [vmem:[%s5 + $0x78] sm:$0xff] %vm2193, %v2170
  %2209 = vst [vmem:[%s5 + $0x80] sm:$0xff] %v1879
  %2210 = vst.msk [vmem:[%s5 + $0x88] sm:$0xff] %vm2193, %v2173
  %2211 = vst [vmem:[%s5 + $0x90] sm:$0xff] %v1881
  %2212 = vst.msk [vmem:[%s5 + $0x98] sm:$0xff] %vm2193, %v2175
  %2213 = vst [vmem:[%s5 + $0xa0] sm:$0xff] %v1884
  %2214 = vst.msk [vmem:[%s5 + $0xa8] sm:$0xff] %vm2193, %v2178
  %2215 = vst [vmem:[%s5 + $0xb0] sm:$0xff] %v1886
  %2216 = vst.msk [vmem:[%s5 + $0xb8] sm:$0xff] %vm2193, %v2180
  %2217 = vst [vmem:[%s5 + $0xc0] sm:$0xff] %v1889
  %2218 = vst.msk [vmem:[%s5 + $0xc8] sm:$0xff] %vm2193, %v2183
  %2219 = vst [vmem:[%s5 + $0xd0] sm:$0xff] %v1891
  %2220 = vst.msk [vmem:[%s5 + $0xd8] sm:$0xff] %vm2193, %v2185
  %2221 = vst [vmem:[%s5 + $0xe0] sm:$0xff] %v1894
  %2222 = vst.msk [vmem:[%s5 + $0xe8] sm:$0xff] %vm2193, %v2188
  %2223 = vst [vmem:[%s5 + $0xf0] sm:$0xff] %v1896
  %2224 = vst.msk [vmem:[%s5 + $0xf8] sm:$0xff] %vm2193, %v2190
  // Predicated region
  $region22: #{_forward_impl.8} parent=0 // pred_check
    _
  $region23: #{_forward_impl.8} parent=0 // pred_check_branch
    %2226 = sbr.rel (0) target = $region25
  $region24: #{_forward_impl.8} parent=0 // pred_region
    _
  $region25: #{_forward_impl.8} parent=0 // pred_fallthru
    _
  // Predicated region
  $region26: #{_forward_impl.8} parent=0 // pred_check
    _
  $region27: #{_forward_impl.8} parent=0 // pred_check_branch
    %2228 = sbr.rel (0) target = $region29
  $region28: #{_forward_impl.8} parent=0 // pred_region
    _
  $region29: #{_forward_impl.8} parent=0 // pred_fallthru
    _

</llo_original>
